<compile_context>
chip_gen: v7x
topology: tpu7x:2x2x1
jax: 0.10.0
libtpu: 0.0.40
codegen_flags: <defaults>
</compile_context>

<pallas_src>
import functools

import jax
import jax.numpy as jnp
from jax.experimental import pallas as pl
from jax.experimental.pallas import tpu as pltpu

EPS = 1e-3  # matches render_3dscene(eps=0.001)


# ----------------------------------------------------------------------------
# Pallas kernel
# grid = (GB*C [parallel], D [arbitrary], NDY [arbitrary])
# per step: DYT matmuls (3*bg*H, W)@(W, W) -> rolled row accumulation; at the
# last dy tile of each depth plane: normalized matting + over-op compositing.
# ----------------------------------------------------------------------------
def _roll_rows(x, j, h):
    """out[:, oy, :] = x[:, (oy - j) % h, :]  for a STATIC shift j."""
    j = j % h
    if j == 0:
        return x
    return jnp.concatenate([x[:, h - j:, :], x[:, :h - j, :]], axis=1)


def _render_kernel(x_ref, kb_ref, y_ref, conv_ref, over_ref, *opt_scratch,
                   ndy, dyt, bg, h, w, eps):
    d = pl.program_id(1)
    g = pl.program_id(2)

    @pl.when(jnp.logical_and(d == 0, g == 0))
    def _():
        y_ref[...] = jnp.zeros(y_ref.shape, y_ref.dtype)
        over_ref[...] = jnp.ones(over_ref.shape, over_ref.dtype)

    @pl.when(g == 0)
    def _():
        conv_ref[...] = jnp.zeros(conv_ref.shape, conv_ref.dtype)

    # Stacked LHS: rows [0:bg*h)=scene, [bg*h:2*bg*h)=alpha, [2*bg*h:)=cumsum
    # (sections are whole (H,W) slabs -> leading-axis slices, no sublane cuts).
    x2 = x_ref[...].reshape(3 * bg * h, w)  # bf16, M = 3*bg*h

    if ndy == 1:
        # Whole dy range in this block: static row rolls, accumulate directly.
        for j in range(dyt):
            r = jnp.dot(x2, kb_ref[j], preferred_element_type=jnp.float32)
            conv_ref[...] = conv_ref[...] + _roll_rows(r.reshape(3 * bg, h, w), j, h)
    else:
        # dy tile: accumulate with static in-tile rolls, then apply the tile's
        # base shift (g*DYT) via a doubled scratch + dynamic window read.
        part_ref = opt_scratch[0]  # (3*bg, 2*h, w) f32
        part_ref[:, :h, :] = jnp.zeros((3 * bg, h, w), jnp.float32)
        for j in range(dyt):
            r = jnp.dot(x2, kb_ref[j], preferred_element_type=jnp.float32)
            part_ref[:, :h, :] = (part_ref[:, :h, :]
                                  + _roll_rows(r.reshape(3 * bg, h, w), j, h))
        part_ref[:, h:, :] = part_ref[:, :h, :]
        start = h - g * dyt                      # in [dyt, h]
        if dyt % 8 == 0:
            start = pl.multiple_of(start, dyt)
        conv_ref[...] = conv_ref[...] + part_ref[:, pl.ds(start, h), :]

    @pl.when(g == ndy - 1)
    def _():
        bv = conv_ref[0 * bg:1 * bg]             # blurred scene volume
        ba = conv_ref[1 * bg:2 * bg]             # blurred layered alpha
        bca = conv_ref[2 * bg:3 * bg]            # blurred reverse-cumsum alpha
        den = bca + eps
        inv = pl.reciprocal(den, approx=True)    # EUP slot
        inv = inv * (2.0 - den * inv)            # one Newton step -> ~exact
        y_ref[...] = y_ref[...] + over_ref[...] * (bv * inv)
        over_ref[...] = over_ref[...] * (1.0 - ba * inv)


# ----------------------------------------------------------------------------
# Plain-JAX glue (parameter / input preparation)
# ----------------------------------------------------------------------------
def _pad_psf(psf, H, W):
    """F.pad semantics from Convolve3DFFT.forward (pads last two dims)."""
    Hp, Wp = psf.shape[-2], psf.shape[-1]
    ph = (H - Hp) // 2
    pw = (W - Wp) // 2
    if Wp % 2 == 1:
        pads = [(0, 0)] * (psf.ndim - 2) + [(ph + 1, ph), (pw + 1, pw)]
    else:
        pads = [(0, 0)] * (psf.ndim - 2) + [(ph, ph), (pw, pw)]
    return jnp.pad(psf, pads)


def _layered_depth(x_depth, z_vals):
    """depthmap_to_layereddepth: one-hot nearest depth plane. (B,1,1,D,H,W)."""
    D = z_vals.shape[0]
    d_map = x_depth[:, None, None]                                   # (B,1,1,H,W)
    diff = jnp.abs(d_map[:, :, :, None] - z_vals[None, None, None, :, None, None])
    bins = jnp.argmin(diff, axis=3)                                  # (B,1,1,H,W)
    one_hot = bins[:, :, :, None] == jnp.arange(D)[None, None, None, :, None, None]
    return one_hot.astype(jnp.float32)


def _vmem_capacity():
    try:
        return int(pltpu.get_tpu_info().vmem_capacity_bytes)
    except Exception:
        return 64 * 1024 * 1024  # v7x per-TC floor; safe on every generation


def _batch_groups(B):
    """v7x has 2 TensorCores/chip: split the batch into one group per core so
    the flattened (group, color) parallel axis shards evenly.  Cost: the Kb
    stream is re-read once per group (acceptable: the kernel is compute-bound).
    1-TC chips (v5e/v6e) keep GB=1 so the stream is not duplicated."""
    try:
        kind = jax.devices()[0].device_kind.lower()
        n_tc = 2 if "7" in kind else 1
    except Exception:
        n_tc = 1
    return n_tc if (n_tc > 1 and B % n_tc == 0) else 1


def _plan(H, W, bg, vmem_cap):
    """Choose the dy-tile size (DYT | H), Kb buffer depth, and a vmem limit
    from the detected VMEM capacity (128 MiB v5e/v6e, 64 MiB v7x)."""
    bytes_x = 2 * (3 * bg * H * W * 2)        # double-buffered bf16 LHS block
    bytes_y = 2 * (bg * H * W * 4)            # output block (f32)
    bytes_conv = 3 * bg * H * W * 4           # conv accumulator scratch
    bytes_over = bg * H * W * 4               # over-op carry scratch
    fixed = bytes_x + bytes_y + bytes_conv + bytes_over
    budget = int(0.70 * vmem_cap)
    kb_slab = W * W * 2                       # one dy worth of Kb (bf16)

    dyt, extra = H, 0
    if fixed + 2 * H * kb_slab > budget:
        # tile dy; the dynamic tile-shift needs the doubled scratch buffer
        extra = 3 * bg * 2 * H * W * 4
        dyt = 1
        for t in range(H, 0, -1):
            if H % t == 0 and fixed + extra + 2 * t * kb_slab <= budget:
                dyt = t
                break

    # deepen Kb buffering only when the per-block DMA is big enough to matter
    nbuf = 2
    if dyt * kb_slab >= (512 << 10) and fixed + extra + 3 * dyt * kb_slab <= budget:
        nbuf = 3

    need = fixed + extra + nbuf * dyt * kb_slab + (4 << 20)
    vmem_limit = max(need, 32 << 20)
    return dyt, nbuf, int(vmem_limit)


@jax.jit
def convolve3dfft_forward(x_scene, x_depth, psf, z_vals):
    """Pallas implementation of Convolve3DFFT.forward ('ikoma2021')."""
    B, C, H, W = x_scene.shape
    D = z_vals.shape[0]

    # --- PSF -> per-row circulant blocks Kb[c,d,dy,ix,ox] = k[c,d,dy,(ox-ix)%W]
    psf_p = _pad_psf(psf, H, W)[0]                          # (C, D, H, W)
    k = jnp.fft.ifftshift(psf_p, axes=(-2, -1))             # index permutation only
    dxi = (jnp.arange(W)[None, :] - jnp.arange(W)[:, None]) % W   # [ix, ox]
    kb = k[:, :, :, dxi]                                    # (C, D, H, W, W)

    gb = _batch_groups(B)
    bg = B // gb
    dyt, nbuf, vmem_limit = _plan(H, W, bg, _vmem_capacity())
    ndy = H // dyt
    # pre-tile: each (dyt, W, W) grid block is one contiguous HBM region
    kb = kb.reshape(C, D, ndy, dyt, W, W).astype(jnp.bfloat16)

    # --- layered depth, scene volume, normalization, reverse cumsum (glue) ---
    layered = _layered_depth(x_depth, z_vals)               # (B,1,1,D,H,W)
    s = layered * x_scene[:, None, :, None]                 # (B,1,C,D,H,W)
    m_max = jnp.max(s)
    m_safe = jnp.where(m_max > 0, m_max, jnp.float32(1.0))  # all-black-scene guard
    s_n = (s / m_safe)[:, 0]                                # (B,C,D,H,W)
    cs = jnp.flip(jnp.cumsum(jnp.flip(layered, axis=-3), axis=-3), axis=-3)[:, 0, 0]
    la = layered[:, 0, 0]                                   # (B,D,H,W)

    # stack the three volumes; rows within a block: section-major, batch-minor
    s_p = jnp.transpose(s_n.reshape(gb, bg, C, D, H, W), (0, 2, 3, 1, 4, 5))
    la_p = jnp.transpose(la.reshape(gb, bg, D, H, W), (0, 2, 1, 3, 4))
    cs_p = jnp.transpose(cs.reshape(gb, bg, D, H, W), (0, 2, 1, 3, 4))
    la_p = jnp.broadcast_to(la_p[:, None], (gb, C, D, bg, H, W))
    cs_p = jnp.broadcast_to(cs_p[:, None], (gb, C, D, bg, H, W))
    x_st = jnp.stack([s_p, la_p, cs_p], axis=3)             # (gb,C,D,3,bg,H,W)
    x_st = x_st.reshape(gb * C, D, 3 * bg, H, W).astype(jnp.bfloat16)

    kernel = functools.partial(_render_kernel, ndy=ndy, dyt=dyt, bg=bg,
                               h=H, w=W, eps=EPS)

    scratch = [pltpu.VMEM((3 * bg, H, W), jnp.float32),     # conv accumulator
               pltpu.VMEM((bg, H, W), jnp.float32)]         # over-op carry
    if ndy > 1:
        scratch.append(pltpu.VMEM((3 * bg, 2 * H, W), jnp.float32))

    kb_spec_kwargs = {}
    if nbuf > 2:
        kb_spec_kwargs["pipeline_mode"] = pl.Buffered(nbuf)

    y = pl.pallas_call(
        kernel,
        out_shape=jax.ShapeDtypeStruct((gb * C, bg, H, W), jnp.float32),
        grid_spec=pltpu.PrefetchScalarGridSpec(
            num_scalar_prefetch=0,
            grid=(gb * C, D, ndy),
            in_specs=[
                # stacked LHS: index map ignores the innermost dy axis -> not
                # re-streamed across dy tiles.
                pl.BlockSpec((None, None, 3 * bg, H, W),
                             lambda i, d, g: (i, d, 0, 0, 0)),
                # per-row circulant blocks: contiguous (dyt, W, W) bf16 blocks
                pl.BlockSpec((None, None, None, dyt, W, W),
                             lambda i, d, g: (i % C, d, g, 0, 0, 0),
                             **kb_spec_kwargs),
            ],
            # output block resident across (d, g) -> accumulated in place
            out_specs=pl.BlockSpec((None, bg, H, W), lambda i, d, g: (i, 0, 0, 0)),
            scratch_shapes=scratch,
        ),
        compiler_params=pltpu.CompilerParams(
            dimension_semantics=("parallel", "arbitrary", "arbitrary"),
            vmem_limit_bytes=vmem_limit),
    )(x_st, kb)

    y = m_safe * y                                           # un-normalize
    y = y.reshape(gb, C, bg, H, W)
    return jnp.transpose(y, (0, 2, 1, 3, 4)).reshape(B, C, H, W)


# ----------------------------------------------------------------------------
# Pure-JAX FFT reference (mirrors the PyTorch code path exactly)
# ----------------------------------------------------------------------------
def reference_forward(x_scene, x_depth, psf, z_vals, eps=EPS):
    B, C, H, W = x_scene.shape
    psf_p = _pad_psf(psf, H, W)                             # (1,C,D,H,W)
    h = psf_p[:, None]                                      # (1,1,C,D,H,W)
    layered = _layered_depth(x_depth, z_vals)               # (B,1,1,D,H,W)
    s = layered * x_scene[:, None, :, None]
    Mm = jnp.max(s)
    s = s / Mm
    S = jnp.fft.rfft2(s)
    Hf = jnp.fft.rfft2(jnp.fft.ifftshift(h, axes=(-2, -1)))
    F_ld = jnp.fft.rfft2(layered)
    blurred_alpha = jnp.fft.irfft2(F_ld * Hf, s=(H, W))
    blurred_volume = jnp.fft.irfft2(S * Hf, s=(H, W))
    cumsum_alpha = jnp.flip(jnp.cumsum(jnp.flip(layered, axis=-3), axis=-3), axis=-3)
    bca = jnp.fft.irfft2(jnp.fft.rfft2(cumsum_alpha) * Hf, s=(H, W))
    blurred_volume = blurred_volume / (bca + eps)
    blurred_alpha = blurred_alpha / (bca + eps)
    out = jnp.cumprod(1.0 - blurred_alpha, axis=-3)
    over = jnp.concatenate([jnp.ones_like(out[..., :1, :, :]), out[..., :-1, :, :]],
                           axis=-3)
    y = jnp.sum(over * blurred_volume, axis=-3)
    y = Mm * y
    return jnp.squeeze(y, axis=1)


if __name__ == "__main__":
    key = jax.random.PRNGKey(0)
    B, C, D, H, W = 2, 3, 4, 16, 16
    Hp = Wp = 8

    k1, k2, k3 = jax.random.split(key, 3)
    # deterministic synthetic "parameters"/inputs
    z_vals = jnp.linspace(1.0, 4.0, D).astype(jnp.float32)          # args.z_vals_mm
    x_scene = jax.random.uniform(k1, (B, C, H, W), jnp.float32)
    x_depth = jax.random.uniform(k2, (B, H, W), jnp.float32, minval=1.0, maxval=4.0)
    psf = jax.random.uniform(k3, (1, C, D, Hp, Wp), jnp.float32)
    psf = psf / jnp.sum(psf, axis=(-2, -1), keepdims=True)          # normalized PSFs

    y = convolve3dfft_forward(x_scene, x_depth, psf, z_vals)
    y = jax.block_until_ready(y)

    y_ref = reference_forward(x_scene, x_depth, psf, z_vals)
    assert y.shape == (B, C, H, W), y.shape
    err = float(jnp.max(jnp.abs(y - y_ref)))
    assert err < 2e-2, f"max abs err vs FFT reference: {err}"

    print("KERNEL_OK")
</pallas_src>

<mosaic_0001>
module attributes {stable_mosaic.version = 11 : i64} {
  func.func @_render_kernel(%arg0: i32, %arg1: i32, %arg2: i32, %arg3: memref<1x1x6x16x16xbf16, #tpu.memory_space<vmem>>, %arg4: memref<1x1x1x16x16x16xbf16, #tpu.memory_space<vmem>>, %arg5: memref<1x2x16x16xf32, #tpu.memory_space<vmem>>, %arg6: memref<6x16x16xf32, #tpu.memory_space<vmem>>, %arg7: memref<2x16x16xf32, #tpu.memory_space<vmem>>) attributes {dimension_semantics = [#tpu.dimension_semantics<parallel>, #tpu.dimension_semantics<arbitrary>, #tpu.dimension_semantics<arbitrary>], iteration_bounds = array<i64: 3, 4, 1>, scalar_prefetch = 0 : i64, scratch_operands = 2 : i64, tpu.core_type = #tpu.core_type<tc>, window_params = [{transform_indices = @transform_0, window_bounds = array<i64: 1, 1, 6, 16, 16>}, {transform_indices = @transform_1, window_bounds = array<i64: 1, 1, 1, 16, 16, 16>}, {transform_indices = @transform_2, window_bounds = array<i64: 1, 2, 16, 16>}]} {
    %c0_i32 = arith.constant 0 : i32
    %0 = arith.cmpi eq, %arg1, %c0_i32 : i32
    %c0_i32_0 = arith.constant 0 : i32
    %1 = arith.cmpi eq, %arg2, %c0_i32_0 : i32
    %2 = arith.andi %0, %1 : i1
    %3 = arith.extui %2 : i1 to i32
    %c0_i32_1 = arith.constant 0 : i32
    %4 = arith.cmpi ne, %3, %c0_i32_1 : i32
    scf.if %4 {
      %cst_202 = arith.constant 0.000000e+00 : f32
      %171 = vector.broadcast %cst_202 : f32 to vector<2x16x16xf32>
      %c0_203 = arith.constant 0 : index
      %c0_204 = arith.constant 0 : index
      %c0_205 = arith.constant 0 : index
      %c0_206 = arith.constant 0 : index
      %172 = vector.load %arg5[%c0_203, %c0_204, %c0_205, %c0_206] : memref<1x2x16x16xf32, #tpu.memory_space<vmem>>, vector<1x2x16x16xf32>
      %173 = vector.shape_cast %172 : vector<1x2x16x16xf32> to vector<2x16x16xf32>
      %174 = vector.shape_cast %171 : vector<2x16x16xf32> to vector<1x2x16x16xf32>
      tpu.vector_store %arg5[%c0_203, %c0_204, %c0_205, %c0_206], %174 {strides = array<i32>} : memref<1x2x16x16xf32, #tpu.memory_space<vmem>>, vector<1x2x16x16xf32>,
      %cst_207 = arith.constant 1.000000e+00 : f32
      %175 = vector.broadcast %cst_207 : f32 to vector<2x16x16xf32>
      %c0_208 = arith.constant 0 : index
      %c0_209 = arith.constant 0 : index
      %c0_210 = arith.constant 0 : index
      %176 = vector.load %arg7[%c0_208, %c0_209, %c0_210] : memref<2x16x16xf32, #tpu.memory_space<vmem>>, vector<2x16x16xf32>
      tpu.vector_store %arg7[%c0_208, %c0_209, %c0_210], %175 {strides = array<i32>} : memref<2x16x16xf32, #tpu.memory_space<vmem>>, vector<2x16x16xf32>,
    } else {
    }
    %c0_i32_2 = arith.constant 0 : i32
    %5 = arith.cmpi eq, %arg2, %c0_i32_2 : i32
    %6 = arith.extui %5 : i1 to i32
    %c0_i32_3 = arith.constant 0 : i32
    %7 = arith.cmpi ne, %6, %c0_i32_3 : i32
    scf.if %7 {
      %cst_202 = arith.constant 0.000000e+00 : f32
      %171 = vector.broadcast %cst_202 : f32 to vector<6x16x16xf32>
      %c0_203 = arith.constant 0 : index
      %c0_204 = arith.constant 0 : index
      %c0_205 = arith.constant 0 : index
      %172 = vector.load %arg6[%c0_203, %c0_204, %c0_205] : memref<6x16x16xf32, #tpu.memory_space<vmem>>, vector<6x16x16xf32>
      tpu.vector_store %arg6[%c0_203, %c0_204, %c0_205], %171 {strides = array<i32>} : memref<6x16x16xf32, #tpu.memory_space<vmem>>, vector<6x16x16xf32>,
    } else {
    }
    %c0 = arith.constant 0 : index
    %c0_4 = arith.constant 0 : index
    %c0_5 = arith.constant 0 : index
    %c0_6 = arith.constant 0 : index
    %c0_7 = arith.constant 0 : index
    %8 = vector.load %arg3[%c0, %c0_4, %c0_5, %c0_6, %c0_7] : memref<1x1x6x16x16xbf16, #tpu.memory_space<vmem>>, vector<1x1x6x16x16xbf16>
    %9 = vector.shape_cast %8 : vector<1x1x6x16x16xbf16> to vector<6x16x16xbf16>
    %10 = vector.shape_cast %9 : vector<6x16x16xbf16> to vector<96x16xbf16>
    %c0_8 = arith.constant 0 : index
    %c0_9 = arith.constant 0 : index
    %c0_10 = arith.constant 0 : index
    %c0_11 = arith.constant 0 : index
    %c0_12 = arith.constant 0 : index
    %c0_13 = arith.constant 0 : index
    %11 = vector.load %arg4[%c0_8, %c0_9, %c0_10, %c0_11, %c0_12, %c0_13] : memref<1x1x1x16x16x16xbf16, #tpu.memory_space<vmem>>, vector<1x1x1x1x16x16xbf16>
    %12 = vector.shape_cast %11 : vector<1x1x1x1x16x16xbf16> to vector<16x16xbf16>
    %cst = arith.constant dense<0.000000e+00> : vector<96x16xf32>
    %13 = tpu.matmul %10, %12, %cst {dimension_numbers = #tpu.dot_dimension_numbers<[1], [0], [0], [1], [0, 0, 1, 1], [], []>} : vector<96x16xbf16>, vector<16x16xbf16>, vector<96x16xf32> -> vector<96x16xf32>
    %c0_14 = arith.constant 0 : index
    %c0_15 = arith.constant 0 : index
    %c0_16 = arith.constant 0 : index
    %14 = vector.load %arg6[%c0_14, %c0_15, %c0_16] : memref<6x16x16xf32, #tpu.memory_space<vmem>>, vector<6x16x16xf32>
    %15 = vector.shape_cast %13 : vector<96x16xf32> to vector<6x16x16xf32>
    %16 = arith.addf %14, %15 : vector<6x16x16xf32>
    %c0_17 = arith.constant 0 : index
    %c0_18 = arith.constant 0 : index
    %c0_19 = arith.constant 0 : index
    %17 = vector.load %arg6[%c0_17, %c0_18, %c0_19] : memref<6x16x16xf32, #tpu.memory_space<vmem>>, vector<6x16x16xf32>
    tpu.vector_store %arg6[%c0_17, %c0_18, %c0_19], %16 {strides = array<i32>} : memref<6x16x16xf32, #tpu.memory_space<vmem>>, vector<6x16x16xf32>,
    %c0_20 = arith.constant 0 : index
    %c0_21 = arith.constant 0 : index
    %c0_22 = arith.constant 0 : index
    %c1 = arith.constant 1 : index
    %c0_23 = arith.constant 0 : index
    %c0_24 = arith.constant 0 : index
    %18 = vector.load %arg4[%c0_20, %c0_21, %c0_22, %c1, %c0_23, %c0_24] : memref<1x1x1x16x16x16xbf16, #tpu.memory_space<vmem>>, vector<1x1x1x1x16x16xbf16>
    %19 = vector.shape_cast %18 : vector<1x1x1x1x16x16xbf16> to vector<16x16xbf16>
    %cst_25 = arith.constant dense<0.000000e+00> : vector<96x16xf32>
    %20 = tpu.matmul %10, %19, %cst_25 {dimension_numbers = #tpu.dot_dimension_numbers<[1], [0], [0], [1], [0, 0, 1, 1], [], []>} : vector<96x16xbf16>, vector<16x16xbf16>, vector<96x16xf32> -> vector<96x16xf32>
    %c0_26 = arith.constant 0 : index
    %c0_27 = arith.constant 0 : index
    %c0_28 = arith.constant 0 : index
    %21 = vector.load %arg6[%c0_26, %c0_27, %c0_28] : memref<6x16x16xf32, #tpu.memory_space<vmem>>, vector<6x16x16xf32>
    %22 = vector.shape_cast %20 : vector<96x16xf32> to vector<6x16x16xf32>
    %23 = vector.extract_strided_slice %22 {offsets = [0, 15, 0], sizes = [6, 1, 16], strides = [1, 1, 1]} : vector<6x16x16xf32> to vector<6x1x16xf32>
    %24 = vector.extract_strided_slice %22 {offsets = [0, 0, 0], sizes = [6, 15, 16], strides = [1, 1, 1]} : vector<6x16x16xf32> to vector<6x15x16xf32>
    %25 = tpu.concatenate %23, %24 in 1 : vector<6x1x16xf32>, vector<6x15x16xf32> -> vector<6x16x16xf32>
    %26 = arith.addf %21, %25 : vector<6x16x16xf32>
    %c0_29 = arith.constant 0 : index
    %c0_30 = arith.constant 0 : index
    %c0_31 = arith.constant 0 : index
    %27 = vector.load %arg6[%c0_29, %c0_30, %c0_31] : memref<6x16x16xf32, #tpu.memory_space<vmem>>, vector<6x16x16xf32>
    tpu.vector_store %arg6[%c0_29, %c0_30, %c0_31], %26 {strides = array<i32>} : memref<6x16x16xf32, #tpu.memory_space<vmem>>, vector<6x16x16xf32>,
    %c0_32 = arith.constant 0 : index
    %c0_33 = arith.constant 0 : index
    %c0_34 = arith.constant 0 : index
    %c2 = arith.constant 2 : index
    %c0_35 = arith.constant 0 : index
    %c0_36 = arith.constant 0 : index
    %28 = vector.load %arg4[%c0_32, %c0_33, %c0_34, %c2, %c0_35, %c0_36] : memref<1x1x1x16x16x16xbf16, #tpu.memory_space<vmem>>, vector<1x1x1x1x16x16xbf16>
    %29 = vector.shape_cast %28 : vector<1x1x1x1x16x16xbf16> to vector<16x16xbf16>
    %cst_37 = arith.constant dense<0.000000e+00> : vector<96x16xf32>
    %30 = tpu.matmul %10, %29, %cst_37 {dimension_numbers = #tpu.dot_dimension_numbers<[1], [0], [0], [1], [0, 0, 1, 1], [], []>} : vector<96x16xbf16>, vector<16x16xbf16>, vector<96x16xf32> -> vector<96x16xf32>
    %c0_38 = arith.constant 0 : index
    %c0_39 = arith.constant 0 : index
    %c0_40 = arith.constant 0 : index
    %31 = vector.load %arg6[%c0_38, %c0_39, %c0_40] : memref<6x16x16xf32, #tpu.memory_space<vmem>>, vector<6x16x16xf32>
    %32 = vector.shape_cast %30 : vector<96x16xf32> to vector<6x16x16xf32>
    %33 = vector.extract_strided_slice %32 {offsets = [0, 14, 0], sizes = [6, 2, 16], strides = [1, 1, 1]} : vector<6x16x16xf32> to vector<6x2x16xf32>
    %34 = vector.extract_strided_slice %32 {offsets = [0, 0, 0], sizes = [6, 14, 16], strides = [1, 1, 1]} : vector<6x16x16xf32> to vector<6x14x16xf32>
    %35 = tpu.concatenate %33, %34 in 1 : vector<6x2x16xf32>, vector<6x14x16xf32> -> vector<6x16x16xf32>
    %36 = arith.addf %31, %35 : vector<6x16x16xf32>
    %c0_41 = arith.constant 0 : index
    %c0_42 = arith.constant 0 : index
    %c0_43 = arith.constant 0 : index
    %37 = vector.load %arg6[%c0_41, %c0_42, %c0_43] : memref<6x16x16xf32, #tpu.memory_space<vmem>>, vector<6x16x16xf32>
    tpu.vector_store %arg6[%c0_41, %c0_42, %c0_43], %36 {strides = array<i32>} : memref<6x16x16xf32, #tpu.memory_space<vmem>>, vector<6x16x16xf32>,
    %c0_44 = arith.constant 0 : index
    %c0_45 = arith.constant 0 : index
    %c0_46 = arith.constant 0 : index
    %c3 = arith.constant 3 : index
    %c0_47 = arith.constant 0 : index
    %c0_48 = arith.constant 0 : index
    %38 = vector.load %arg4[%c0_44, %c0_45, %c0_46, %c3, %c0_47, %c0_48] : memref<1x1x1x16x16x16xbf16, #tpu.memory_space<vmem>>, vector<1x1x1x1x16x16xbf16>
    %39 = vector.shape_cast %38 : vector<1x1x1x1x16x16xbf16> to vector<16x16xbf16>
    %cst_49 = arith.constant dense<0.000000e+00> : vector<96x16xf32>
    %40 = tpu.matmul %10, %39, %cst_49 {dimension_numbers = #tpu.dot_dimension_numbers<[1], [0], [0], [1], [0, 0, 1, 1], [], []>} : vector<96x16xbf16>, vector<16x16xbf16>, vector<96x16xf32> -> vector<96x16xf32>
    %c0_50 = arith.constant 0 : index
    %c0_51 = arith.constant 0 : index
    %c0_52 = arith.constant 0 : index
    %41 = vector.load %arg6[%c0_50, %c0_51, %c0_52] : memref<6x16x16xf32, #tpu.memory_space<vmem>>, vector<6x16x16xf32>
    %42 = vector.shape_cast %40 : vector<96x16xf32> to vector<6x16x16xf32>
    %43 = vector.extract_strided_slice %42 {offsets = [0, 13, 0], sizes = [6, 3, 16], strides = [1, 1, 1]} : vector<6x16x16xf32> to vector<6x3x16xf32>
    %44 = vector.extract_strided_slice %42 {offsets = [0, 0, 0], sizes = [6, 13, 16], strides = [1, 1, 1]} : vector<6x16x16xf32> to vector<6x13x16xf32>
    %45 = tpu.concatenate %43, %44 in 1 : vector<6x3x16xf32>, vector<6x13x16xf32> -> vector<6x16x16xf32>
    %46 = arith.addf %41, %45 : vector<6x16x16xf32>
    %c0_53 = arith.constant 0 : index
    %c0_54 = arith.constant 0 : index
    %c0_55 = arith.constant 0 : index
    %47 = vector.load %arg6[%c0_53, %c0_54, %c0_55] : memref<6x16x16xf32, #tpu.memory_space<vmem>>, vector<6x16x16xf32>
    tpu.vector_store %arg6[%c0_53, %c0_54, %c0_55], %46 {strides = array<i32>} : memref<6x16x16xf32, #tpu.memory_space<vmem>>, vector<6x16x16xf32>,
    %c0_56 = arith.constant 0 : index
    %c0_57 = arith.constant 0 : index
    %c0_58 = arith.constant 0 : index
    %c4 = arith.constant 4 : index
    %c0_59 = arith.constant 0 : index
    %c0_60 = arith.constant 0 : index
    %48 = vector.load %arg4[%c0_56, %c0_57, %c0_58, %c4, %c0_59, %c0_60] : memref<1x1x1x16x16x16xbf16, #tpu.memory_space<vmem>>, vector<1x1x1x1x16x16xbf16>
    %49 = vector.shape_cast %48 : vector<1x1x1x1x16x16xbf16> to vector<16x16xbf16>
    %cst_61 = arith.constant dense<0.000000e+00> : vector<96x16xf32>
    %50 = tpu.matmul %10, %49, %cst_61 {dimension_numbers = #tpu.dot_dimension_numbers<[1], [0], [0], [1], [0, 0, 1, 1], [], []>} : vector<96x16xbf16>, vector<16x16xbf16>, vector<96x16xf32> -> vector<96x16xf32>
    %c0_62 = arith.constant 0 : index
    %c0_63 = arith.constant 0 : index
    %c0_64 = arith.constant 0 : index
    %51 = vector.load %arg6[%c0_62, %c0_63, %c0_64] : memref<6x16x16xf32, #tpu.memory_space<vmem>>, vector<6x16x16xf32>
    %52 = vector.shape_cast %50 : vector<96x16xf32> to vector<6x16x16xf32>
    %53 = vector.extract_strided_slice %52 {offsets = [0, 12, 0], sizes = [6, 4, 16], strides = [1, 1, 1]} : vector<6x16x16xf32> to vector<6x4x16xf32>
    %54 = vector.extract_strided_slice %52 {offsets = [0, 0, 0], sizes = [6, 12, 16], strides = [1, 1, 1]} : vector<6x16x16xf32> to vector<6x12x16xf32>
    %55 = tpu.concatenate %53, %54 in 1 : vector<6x4x16xf32>, vector<6x12x16xf32> -> vector<6x16x16xf32>
    %56 = arith.addf %51, %55 : vector<6x16x16xf32>
    %c0_65 = arith.constant 0 : index
    %c0_66 = arith.constant 0 : index
    %c0_67 = arith.constant 0 : index
    %57 = vector.load %arg6[%c0_65, %c0_66, %c0_67] : memref<6x16x16xf32, #tpu.memory_space<vmem>>, vector<6x16x16xf32>
    tpu.vector_store %arg6[%c0_65, %c0_66, %c0_67], %56 {strides = array<i32>} : memref<6x16x16xf32, #tpu.memory_space<vmem>>, vector<6x16x16xf32>,
    %c0_68 = arith.constant 0 : index
    %c0_69 = arith.constant 0 : index
    %c0_70 = arith.constant 0 : index
    %c5 = arith.constant 5 : index
    %c0_71 = arith.constant 0 : index
    %c0_72 = arith.constant 0 : index
    %58 = vector.load %arg4[%c0_68, %c0_69, %c0_70, %c5, %c0_71, %c0_72] : memref<1x1x1x16x16x16xbf16, #tpu.memory_space<vmem>>, vector<1x1x1x1x16x16xbf16>
    %59 = vector.shape_cast %58 : vector<1x1x1x1x16x16xbf16> to vector<16x16xbf16>
    %cst_73 = arith.constant dense<0.000000e+00> : vector<96x16xf32>
    %60 = tpu.matmul %10, %59, %cst_73 {dimension_numbers = #tpu.dot_dimension_numbers<[1], [0], [0], [1], [0, 0, 1, 1], [], []>} : vector<96x16xbf16>, vector<16x16xbf16>, vector<96x16xf32> -> vector<96x16xf32>
    %c0_74 = arith.constant 0 : index
    %c0_75 = arith.constant 0 : index
    %c0_76 = arith.constant 0 : index
    %61 = vector.load %arg6[%c0_74, %c0_75, %c0_76] : memref<6x16x16xf32, #tpu.memory_space<vmem>>, vector<6x16x16xf32>
    %62 = vector.shape_cast %60 : vector<96x16xf32> to vector<6x16x16xf32>
    %63 = vector.extract_strided_slice %62 {offsets = [0, 11, 0], sizes = [6, 5, 16], strides = [1, 1, 1]} : vector<6x16x16xf32> to vector<6x5x16xf32>
    %64 = vector.extract_strided_slice %62 {offsets = [0, 0, 0], sizes = [6, 11, 16], strides = [1, 1, 1]} : vector<6x16x16xf32> to vector<6x11x16xf32>
    %65 = tpu.concatenate %63, %64 in 1 : vector<6x5x16xf32>, vector<6x11x16xf32> -> vector<6x16x16xf32>
    %66 = arith.addf %61, %65 : vector<6x16x16xf32>
    %c0_77 = arith.constant 0 : index
    %c0_78 = arith.constant 0 : index
    %c0_79 = arith.constant 0 : index
    %67 = vector.load %arg6[%c0_77, %c0_78, %c0_79] : memref<6x16x16xf32, #tpu.memory_space<vmem>>, vector<6x16x16xf32>
    tpu.vector_store %arg6[%c0_77, %c0_78, %c0_79], %66 {strides = array<i32>} : memref<6x16x16xf32, #tpu.memory_space<vmem>>, vector<6x16x16xf32>,
    %c0_80 = arith.constant 0 : index
    %c0_81 = arith.constant 0 : index
    %c0_82 = arith.constant 0 : index
    %c6 = arith.constant 6 : index
    %c0_83 = arith.constant 0 : index
    %c0_84 = arith.constant 0 : index
    %68 = vector.load %arg4[%c0_80, %c0_81, %c0_82, %c6, %c0_83, %c0_84] : memref<1x1x1x16x16x16xbf16, #tpu.memory_space<vmem>>, vector<1x1x1x1x16x16xbf16>
    %69 = vector.shape_cast %68 : vector<1x1x1x1x16x16xbf16> to vector<16x16xbf16>
    %cst_85 = arith.constant dense<0.000000e+00> : vector<96x16xf32>
    %70 = tpu.matmul %10, %69, %cst_85 {dimension_numbers = #tpu.dot_dimension_numbers<[1], [0], [0], [1], [0, 0, 1, 1], [], []>} : vector<96x16xbf16>, vector<16x16xbf16>, vector<96x16xf32> -> vector<96x16xf32>
    %c0_86 = arith.constant 0 : index
    %c0_87 = arith.constant 0 : index
    %c0_88 = arith.constant 0 : index
    %71 = vector.load %arg6[%c0_86, %c0_87, %c0_88] : memref<6x16x16xf32, #tpu.memory_space<vmem>>, vector<6x16x16xf32>
    %72 = vector.shape_cast %70 : vector<96x16xf32> to vector<6x16x16xf32>
    %73 = vector.extract_strided_slice %72 {offsets = [0, 10, 0], sizes = [6, 6, 16], strides = [1, 1, 1]} : vector<6x16x16xf32> to vector<6x6x16xf32>
    %74 = vector.extract_strided_slice %72 {offsets = [0, 0, 0], sizes = [6, 10, 16], strides = [1, 1, 1]} : vector<6x16x16xf32> to vector<6x10x16xf32>
    %75 = tpu.concatenate %73, %74 in 1 : vector<6x6x16xf32>, vector<6x10x16xf32> -> vector<6x16x16xf32>
    %76 = arith.addf %71, %75 : vector<6x16x16xf32>
    %c0_89 = arith.constant 0 : index
    %c0_90 = arith.constant 0 : index
    %c0_91 = arith.constant 0 : index
    %77 = vector.load %arg6[%c0_89, %c0_90, %c0_91] : memref<6x16x16xf32, #tpu.memory_space<vmem>>, vector<6x16x16xf32>
    tpu.vector_store %arg6[%c0_89, %c0_90, %c0_91], %76 {strides = array<i32>} : memref<6x16x16xf32, #tpu.memory_space<vmem>>, vector<6x16x16xf32>,
    %c0_92 = arith.constant 0 : index
    %c0_93 = arith.constant 0 : index
    %c0_94 = arith.constant 0 : index
    %c7 = arith.constant 7 : index
    %c0_95 = arith.constant 0 : index
    %c0_96 = arith.constant 0 : index
    %78 = vector.load %arg4[%c0_92, %c0_93, %c0_94, %c7, %c0_95, %c0_96] : memref<1x1x1x16x16x16xbf16, #tpu.memory_space<vmem>>, vector<1x1x1x1x16x16xbf16>
    %79 = vector.shape_cast %78 : vector<1x1x1x1x16x16xbf16> to vector<16x16xbf16>
    %cst_97 = arith.constant dense<0.000000e+00> : vector<96x16xf32>
    %80 = tpu.matmul %10, %79, %cst_97 {dimension_numbers = #tpu.dot_dimension_numbers<[1], [0], [0], [1], [0, 0, 1, 1], [], []>} : vector<96x16xbf16>, vector<16x16xbf16>, vector<96x16xf32> -> vector<96x16xf32>
    %c0_98 = arith.constant 0 : index
    %c0_99 = arith.constant 0 : index
    %c0_100 = arith.constant 0 : index
    %81 = vector.load %arg6[%c0_98, %c0_99, %c0_100] : memref<6x16x16xf32, #tpu.memory_space<vmem>>, vector<6x16x16xf32>
    %82 = vector.shape_cast %80 : vector<96x16xf32> to vector<6x16x16xf32>
    %83 = vector.extract_strided_slice %82 {offsets = [0, 9, 0], sizes = [6, 7, 16], strides = [1, 1, 1]} : vector<6x16x16xf32> to vector<6x7x16xf32>
    %84 = vector.extract_strided_slice %82 {offsets = [0, 0, 0], sizes = [6, 9, 16], strides = [1, 1, 1]} : vector<6x16x16xf32> to vector<6x9x16xf32>
    %85 = tpu.concatenate %83, %84 in 1 : vector<6x7x16xf32>, vector<6x9x16xf32> -> vector<6x16x16xf32>
    %86 = arith.addf %81, %85 : vector<6x16x16xf32>
    %c0_101 = arith.constant 0 : index
    %c0_102 = arith.constant 0 : index
    %c0_103 = arith.constant 0 : index
    %87 = vector.load %arg6[%c0_101, %c0_102, %c0_103] : memref<6x16x16xf32, #tpu.memory_space<vmem>>, vector<6x16x16xf32>
    tpu.vector_store %arg6[%c0_101, %c0_102, %c0_103], %86 {strides = array<i32>} : memref<6x16x16xf32, #tpu.memory_space<vmem>>, vector<6x16x16xf32>,
    %c0_104 = arith.constant 0 : index
    %c0_105 = arith.constant 0 : index
    %c0_106 = arith.constant 0 : index
    %c8 = arith.constant 8 : index
    %c0_107 = arith.constant 0 : index
    %c0_108 = arith.constant 0 : index
    %88 = vector.load %arg4[%c0_104, %c0_105, %c0_106, %c8, %c0_107, %c0_108] : memref<1x1x1x16x16x16xbf16, #tpu.memory_space<vmem>>, vector<1x1x1x1x16x16xbf16>
    %89 = vector.shape_cast %88 : vector<1x1x1x1x16x16xbf16> to vector<16x16xbf16>
    %cst_109 = arith.constant dense<0.000000e+00> : vector<96x16xf32>
    %90 = tpu.matmul %10, %89, %cst_109 {dimension_numbers = #tpu.dot_dimension_numbers<[1], [0], [0], [1], [0, 0, 1, 1], [], []>} : vector<96x16xbf16>, vector<16x16xbf16>, vector<96x16xf32> -> vector<96x16xf32>
    %c0_110 = arith.constant 0 : index
    %c0_111 = arith.constant 0 : index
    %c0_112 = arith.constant 0 : index
    %91 = vector.load %arg6[%c0_110, %c0_111, %c0_112] : memref<6x16x16xf32, #tpu.memory_space<vmem>>, vector<6x16x16xf32>
    %92 = vector.shape_cast %90 : vector<96x16xf32> to vector<6x16x16xf32>
    %93 = vector.extract_strided_slice %92 {offsets = [0, 8, 0], sizes = [6, 8, 16], strides = [1, 1, 1]} : vector<6x16x16xf32> to vector<6x8x16xf32>
    %94 = vector.extract_strided_slice %92 {offsets = [0, 0, 0], sizes = [6, 8, 16], strides = [1, 1, 1]} : vector<6x16x16xf32> to vector<6x8x16xf32>
    %95 = tpu.concatenate %93, %94 in 1 : vector<6x8x16xf32>, vector<6x8x16xf32> -> vector<6x16x16xf32>
    %96 = arith.addf %91, %95 : vector<6x16x16xf32>
    %c0_113 = arith.constant 0 : index
    %c0_114 = arith.constant 0 : index
    %c0_115 = arith.constant 0 : index
    %97 = vector.load %arg6[%c0_113, %c0_114, %c0_115] : memref<6x16x16xf32, #tpu.memory_space<vmem>>, vector<6x16x16xf32>
    tpu.vector_store %arg6[%c0_113, %c0_114, %c0_115], %96 {strides = array<i32>} : memref<6x16x16xf32, #tpu.memory_space<vmem>>, vector<6x16x16xf32>,
    %c0_116 = arith.constant 0 : index
    %c0_117 = arith.constant 0 : index
    %c0_118 = arith.constant 0 : index
    %c9 = arith.constant 9 : index
    %c0_119 = arith.constant 0 : index
    %c0_120 = arith.constant 0 : index
    %98 = vector.load %arg4[%c0_116, %c0_117, %c0_118, %c9, %c0_119, %c0_120] : memref<1x1x1x16x16x16xbf16, #tpu.memory_space<vmem>>, vector<1x1x1x1x16x16xbf16>
    %99 = vector.shape_cast %98 : vector<1x1x1x1x16x16xbf16> to vector<16x16xbf16>
    %cst_121 = arith.constant dense<0.000000e+00> : vector<96x16xf32>
    %100 = tpu.matmul %10, %99, %cst_121 {dimension_numbers = #tpu.dot_dimension_numbers<[1], [0], [0], [1], [0, 0, 1, 1], [], []>} : vector<96x16xbf16>, vector<16x16xbf16>, vector<96x16xf32> -> vector<96x16xf32>
    %c0_122 = arith.constant 0 : index
    %c0_123 = arith.constant 0 : index
    %c0_124 = arith.constant 0 : index
    %101 = vector.load %arg6[%c0_122, %c0_123, %c0_124] : memref<6x16x16xf32, #tpu.memory_space<vmem>>, vector<6x16x16xf32>
    %102 = vector.shape_cast %100 : vector<96x16xf32> to vector<6x16x16xf32>
    %103 = vector.extract_strided_slice %102 {offsets = [0, 7, 0], sizes = [6, 9, 16], strides = [1, 1, 1]} : vector<6x16x16xf32> to vector<6x9x16xf32>
    %104 = vector.extract_strided_slice %102 {offsets = [0, 0, 0], sizes = [6, 7, 16], strides = [1, 1, 1]} : vector<6x16x16xf32> to vector<6x7x16xf32>
    %105 = tpu.concatenate %103, %104 in 1 : vector<6x9x16xf32>, vector<6x7x16xf32> -> vector<6x16x16xf32>
    %106 = arith.addf %101, %105 : vector<6x16x16xf32>
    %c0_125 = arith.constant 0 : index
    %c0_126 = arith.constant 0 : index
    %c0_127 = arith.constant 0 : index
    %107 = vector.load %arg6[%c0_125, %c0_126, %c0_127] : memref<6x16x16xf32, #tpu.memory_space<vmem>>, vector<6x16x16xf32>
    tpu.vector_store %arg6[%c0_125, %c0_126, %c0_127], %106 {strides = array<i32>} : memref<6x16x16xf32, #tpu.memory_space<vmem>>, vector<6x16x16xf32>,
    %c0_128 = arith.constant 0 : index
    %c0_129 = arith.constant 0 : index
    %c0_130 = arith.constant 0 : index
    %c10 = arith.constant 10 : index
    %c0_131 = arith.constant 0 : index
    %c0_132 = arith.constant 0 : index
    %108 = vector.load %arg4[%c0_128, %c0_129, %c0_130, %c10, %c0_131, %c0_132] : memref<1x1x1x16x16x16xbf16, #tpu.memory_space<vmem>>, vector<1x1x1x1x16x16xbf16>
    %109 = vector.shape_cast %108 : vector<1x1x1x1x16x16xbf16> to vector<16x16xbf16>
    %cst_133 = arith.constant dense<0.000000e+00> : vector<96x16xf32>
    %110 = tpu.matmul %10, %109, %cst_133 {dimension_numbers = #tpu.dot_dimension_numbers<[1], [0], [0], [1], [0, 0, 1, 1], [], []>} : vector<96x16xbf16>, vector<16x16xbf16>, vector<96x16xf32> -> vector<96x16xf32>
    %c0_134 = arith.constant 0 : index
    %c0_135 = arith.constant 0 : index
    %c0_136 = arith.constant 0 : index
    %111 = vector.load %arg6[%c0_134, %c0_135, %c0_136] : memref<6x16x16xf32, #tpu.memory_space<vmem>>, vector<6x16x16xf32>
    %112 = vector.shape_cast %110 : vector<96x16xf32> to vector<6x16x16xf32>
    %113 = vector.extract_strided_slice %112 {offsets = [0, 6, 0], sizes = [6, 10, 16], strides = [1, 1, 1]} : vector<6x16x16xf32> to vector<6x10x16xf32>
    %114 = vector.extract_strided_slice %112 {offsets = [0, 0, 0], sizes = [6, 6, 16], strides = [1, 1, 1]} : vector<6x16x16xf32> to vector<6x6x16xf32>
    %115 = tpu.concatenate %113, %114 in 1 : vector<6x10x16xf32>, vector<6x6x16xf32> -> vector<6x16x16xf32>
    %116 = arith.addf %111, %115 : vector<6x16x16xf32>
    %c0_137 = arith.constant 0 : index
    %c0_138 = arith.constant 0 : index
    %c0_139 = arith.constant 0 : index
    %117 = vector.load %arg6[%c0_137, %c0_138, %c0_139] : memref<6x16x16xf32, #tpu.memory_space<vmem>>, vector<6x16x16xf32>
    tpu.vector_store %arg6[%c0_137, %c0_138, %c0_139], %116 {strides = array<i32>} : memref<6x16x16xf32, #tpu.memory_space<vmem>>, vector<6x16x16xf32>,
    %c0_140 = arith.constant 0 : index
    %c0_141 = arith.constant 0 : index
    %c0_142 = arith.constant 0 : index
    %c11 = arith.constant 11 : index
    %c0_143 = arith.constant 0 : index
    %c0_144 = arith.constant 0 : index
    %118 = vector.load %arg4[%c0_140, %c0_141, %c0_142, %c11, %c0_143, %c0_144] : memref<1x1x1x16x16x16xbf16, #tpu.memory_space<vmem>>, vector<1x1x1x1x16x16xbf16>
    %119 = vector.shape_cast %118 : vector<1x1x1x1x16x16xbf16> to vector<16x16xbf16>
    %cst_145 = arith.constant dense<0.000000e+00> : vector<96x16xf32>
    %120 = tpu.matmul %10, %119, %cst_145 {dimension_numbers = #tpu.dot_dimension_numbers<[1], [0], [0], [1], [0, 0, 1, 1], [], []>} : vector<96x16xbf16>, vector<16x16xbf16>, vector<96x16xf32> -> vector<96x16xf32>
    %c0_146 = arith.constant 0 : index
    %c0_147 = arith.constant 0 : index
    %c0_148 = arith.constant 0 : index
    %121 = vector.load %arg6[%c0_146, %c0_147, %c0_148] : memref<6x16x16xf32, #tpu.memory_space<vmem>>, vector<6x16x16xf32>
    %122 = vector.shape_cast %120 : vector<96x16xf32> to vector<6x16x16xf32>
    %123 = vector.extract_strided_slice %122 {offsets = [0, 5, 0], sizes = [6, 11, 16], strides = [1, 1, 1]} : vector<6x16x16xf32> to vector<6x11x16xf32>
    %124 = vector.extract_strided_slice %122 {offsets = [0, 0, 0], sizes = [6, 5, 16], strides = [1, 1, 1]} : vector<6x16x16xf32> to vector<6x5x16xf32>
    %125 = tpu.concatenate %123, %124 in 1 : vector<6x11x16xf32>, vector<6x5x16xf32> -> vector<6x16x16xf32>
    %126 = arith.addf %121, %125 : vector<6x16x16xf32>
    %c0_149 = arith.constant 0 : index
    %c0_150 = arith.constant 0 : index
    %c0_151 = arith.constant 0 : index
    %127 = vector.load %arg6[%c0_149, %c0_150, %c0_151] : memref<6x16x16xf32, #tpu.memory_space<vmem>>, vector<6x16x16xf32>
    tpu.vector_store %arg6[%c0_149, %c0_150, %c0_151], %126 {strides = array<i32>} : memref<6x16x16xf32, #tpu.memory_space<vmem>>, vector<6x16x16xf32>,
    %c0_152 = arith.constant 0 : index
    %c0_153 = arith.constant 0 : index
    %c0_154 = arith.constant 0 : index
    %c12 = arith.constant 12 : index
    %c0_155 = arith.constant 0 : index
    %c0_156 = arith.constant 0 : index
    %128 = vector.load %arg4[%c0_152, %c0_153, %c0_154, %c12, %c0_155, %c0_156] : memref<1x1x1x16x16x16xbf16, #tpu.memory_space<vmem>>, vector<1x1x1x1x16x16xbf16>
    %129 = vector.shape_cast %128 : vector<1x1x1x1x16x16xbf16> to vector<16x16xbf16>
    %cst_157 = arith.constant dense<0.000000e+00> : vector<96x16xf32>
    %130 = tpu.matmul %10, %129, %cst_157 {dimension_numbers = #tpu.dot_dimension_numbers<[1], [0], [0], [1], [0, 0, 1, 1], [], []>} : vector<96x16xbf16>, vector<16x16xbf16>, vector<96x16xf32> -> vector<96x16xf32>
    %c0_158 = arith.constant 0 : index
    %c0_159 = arith.constant 0 : index
    %c0_160 = arith.constant 0 : index
    %131 = vector.load %arg6[%c0_158, %c0_159, %c0_160] : memref<6x16x16xf32, #tpu.memory_space<vmem>>, vector<6x16x16xf32>
    %132 = vector.shape_cast %130 : vector<96x16xf32> to vector<6x16x16xf32>
    %133 = vector.extract_strided_slice %132 {offsets = [0, 4, 0], sizes = [6, 12, 16], strides = [1, 1, 1]} : vector<6x16x16xf32> to vector<6x12x16xf32>
    %134 = vector.extract_strided_slice %132 {offsets = [0, 0, 0], sizes = [6, 4, 16], strides = [1, 1, 1]} : vector<6x16x16xf32> to vector<6x4x16xf32>
    %135 = tpu.concatenate %133, %134 in 1 : vector<6x12x16xf32>, vector<6x4x16xf32> -> vector<6x16x16xf32>
    %136 = arith.addf %131, %135 : vector<6x16x16xf32>
    %c0_161 = arith.constant 0 : index
    %c0_162 = arith.constant 0 : index
    %c0_163 = arith.constant 0 : index
    %137 = vector.load %arg6[%c0_161, %c0_162, %c0_163] : memref<6x16x16xf32, #tpu.memory_space<vmem>>, vector<6x16x16xf32>
    tpu.vector_store %arg6[%c0_161, %c0_162, %c0_163], %136 {strides = array<i32>} : memref<6x16x16xf32, #tpu.memory_space<vmem>>, vector<6x16x16xf32>,
    %c0_164 = arith.constant 0 : index
    %c0_165 = arith.constant 0 : index
    %c0_166 = arith.constant 0 : index
    %c13 = arith.constant 13 : index
    %c0_167 = arith.constant 0 : index
    %c0_168 = arith.constant 0 : index
    %138 = vector.load %arg4[%c0_164, %c0_165, %c0_166, %c13, %c0_167, %c0_168] : memref<1x1x1x16x16x16xbf16, #tpu.memory_space<vmem>>, vector<1x1x1x1x16x16xbf16>
    %139 = vector.shape_cast %138 : vector<1x1x1x1x16x16xbf16> to vector<16x16xbf16>
    %cst_169 = arith.constant dense<0.000000e+00> : vector<96x16xf32>
    %140 = tpu.matmul %10, %139, %cst_169 {dimension_numbers = #tpu.dot_dimension_numbers<[1], [0], [0], [1], [0, 0, 1, 1], [], []>} : vector<96x16xbf16>, vector<16x16xbf16>, vector<96x16xf32> -> vector<96x16xf32>
    %c0_170 = arith.constant 0 : index
    %c0_171 = arith.constant 0 : index
    %c0_172 = arith.constant 0 : index
    %141 = vector.load %arg6[%c0_170, %c0_171, %c0_172] : memref<6x16x16xf32, #tpu.memory_space<vmem>>, vector<6x16x16xf32>
    %142 = vector.shape_cast %140 : vector<96x16xf32> to vector<6x16x16xf32>
    %143 = vector.extract_strided_slice %142 {offsets = [0, 3, 0], sizes = [6, 13, 16], strides = [1, 1, 1]} : vector<6x16x16xf32> to vector<6x13x16xf32>
    %144 = vector.extract_strided_slice %142 {offsets = [0, 0, 0], sizes = [6, 3, 16], strides = [1, 1, 1]} : vector<6x16x16xf32> to vector<6x3x16xf32>
    %145 = tpu.concatenate %143, %144 in 1 : vector<6x13x16xf32>, vector<6x3x16xf32> -> vector<6x16x16xf32>
    %146 = arith.addf %141, %145 : vector<6x16x16xf32>
    %c0_173 = arith.constant 0 : index
    %c0_174 = arith.constant 0 : index
    %c0_175 = arith.constant 0 : index
    %147 = vector.load %arg6[%c0_173, %c0_174, %c0_175] : memref<6x16x16xf32, #tpu.memory_space<vmem>>, vector<6x16x16xf32>
    tpu.vector_store %arg6[%c0_173, %c0_174, %c0_175], %146 {strides = array<i32>} : memref<6x16x16xf32, #tpu.memory_space<vmem>>, vector<6x16x16xf32>,
    %c0_176 = arith.constant 0 : index
    %c0_177 = arith.constant 0 : index
    %c0_178 = arith.constant 0 : index
    %c14 = arith.constant 14 : index
    %c0_179 = arith.constant 0 : index
    %c0_180 = arith.constant 0 : index
    %148 = vector.load %arg4[%c0_176, %c0_177, %c0_178, %c14, %c0_179, %c0_180] : memref<1x1x1x16x16x16xbf16, #tpu.memory_space<vmem>>, vector<1x1x1x1x16x16xbf16>
    %149 = vector.shape_cast %148 : vector<1x1x1x1x16x16xbf16> to vector<16x16xbf16>
    %cst_181 = arith.constant dense<0.000000e+00> : vector<96x16xf32>
    %150 = tpu.matmul %10, %149, %cst_181 {dimension_numbers = #tpu.dot_dimension_numbers<[1], [0], [0], [1], [0, 0, 1, 1], [], []>} : vector<96x16xbf16>, vector<16x16xbf16>, vector<96x16xf32> -> vector<96x16xf32>
    %c0_182 = arith.constant 0 : index
    %c0_183 = arith.constant 0 : index
    %c0_184 = arith.constant 0 : index
    %151 = vector.load %arg6[%c0_182, %c0_183, %c0_184] : memref<6x16x16xf32, #tpu.memory_space<vmem>>, vector<6x16x16xf32>
    %152 = vector.shape_cast %150 : vector<96x16xf32> to vector<6x16x16xf32>
    %153 = vector.extract_strided_slice %152 {offsets = [0, 2, 0], sizes = [6, 14, 16], strides = [1, 1, 1]} : vector<6x16x16xf32> to vector<6x14x16xf32>
    %154 = vector.extract_strided_slice %152 {offsets = [0, 0, 0], sizes = [6, 2, 16], strides = [1, 1, 1]} : vector<6x16x16xf32> to vector<6x2x16xf32>
    %155 = tpu.concatenate %153, %154 in 1 : vector<6x14x16xf32>, vector<6x2x16xf32> -> vector<6x16x16xf32>
    %156 = arith.addf %151, %155 : vector<6x16x16xf32>
    %c0_185 = arith.constant 0 : index
    %c0_186 = arith.constant 0 : index
    %c0_187 = arith.constant 0 : index
    %157 = vector.load %arg6[%c0_185, %c0_186, %c0_187] : memref<6x16x16xf32, #tpu.memory_space<vmem>>, vector<6x16x16xf32>
    tpu.vector_store %arg6[%c0_185, %c0_186, %c0_187], %156 {strides = array<i32>} : memref<6x16x16xf32, #tpu.memory_space<vmem>>, vector<6x16x16xf32>,
    %c0_188 = arith.constant 0 : index
    %c0_189 = arith.constant 0 : index
    %c0_190 = arith.constant 0 : index
    %c15 = arith.constant 15 : index
    %c0_191 = arith.constant 0 : index
    %c0_192 = arith.constant 0 : index
    %158 = vector.load %arg4[%c0_188, %c0_189, %c0_190, %c15, %c0_191, %c0_192] : memref<1x1x1x16x16x16xbf16, #tpu.memory_space<vmem>>, vector<1x1x1x1x16x16xbf16>
    %159 = vector.shape_cast %158 : vector<1x1x1x1x16x16xbf16> to vector<16x16xbf16>
    %cst_193 = arith.constant dense<0.000000e+00> : vector<96x16xf32>
    %160 = tpu.matmul %10, %159, %cst_193 {dimension_numbers = #tpu.dot_dimension_numbers<[1], [0], [0], [1], [0, 0, 1, 1], [], []>} : vector<96x16xbf16>, vector<16x16xbf16>, vector<96x16xf32> -> vector<96x16xf32>
    %c0_194 = arith.constant 0 : index
    %c0_195 = arith.constant 0 : index
    %c0_196 = arith.constant 0 : index
    %161 = vector.load %arg6[%c0_194, %c0_195, %c0_196] : memref<6x16x16xf32, #tpu.memory_space<vmem>>, vector<6x16x16xf32>
    %162 = vector.shape_cast %160 : vector<96x16xf32> to vector<6x16x16xf32>
    %163 = vector.extract_strided_slice %162 {offsets = [0, 1, 0], sizes = [6, 15, 16], strides = [1, 1, 1]} : vector<6x16x16xf32> to vector<6x15x16xf32>
    %164 = vector.extract_strided_slice %162 {offsets = [0, 0, 0], sizes = [6, 1, 16], strides = [1, 1, 1]} : vector<6x16x16xf32> to vector<6x1x16xf32>
    %165 = tpu.concatenate %163, %164 in 1 : vector<6x15x16xf32>, vector<6x1x16xf32> -> vector<6x16x16xf32>
    %166 = arith.addf %161, %165 : vector<6x16x16xf32>
    %c0_197 = arith.constant 0 : index
    %c0_198 = arith.constant 0 : index
    %c0_199 = arith.constant 0 : index
    %167 = vector.load %arg6[%c0_197, %c0_198, %c0_199] : memref<6x16x16xf32, #tpu.memory_space<vmem>>, vector<6x16x16xf32>
    tpu.vector_store %arg6[%c0_197, %c0_198, %c0_199], %166 {strides = array<i32>} : memref<6x16x16xf32, #tpu.memory_space<vmem>>, vector<6x16x16xf32>,
    %c0_i32_200 = arith.constant 0 : i32
    %168 = arith.cmpi eq, %arg2, %c0_i32_200 : i32
    %169 = arith.extui %168 : i1 to i32
    %c0_i32_201 = arith.constant 0 : i32
    %170 = arith.cmpi ne, %169, %c0_i32_201 : i32
    scf.if %170 {
      %c0_202 = arith.constant 0 : index
      %c0_203 = arith.constant 0 : index
      %c0_204 = arith.constant 0 : index
      %171 = vector.load %arg6[%c0_202, %c0_203, %c0_204] : memref<6x16x16xf32, #tpu.memory_space<vmem>>, vector<2x16x16xf32>
      %c2_205 = arith.constant 2 : index
      %c0_206 = arith.constant 0 : index
      %c0_207 = arith.constant 0 : index
      %172 = vector.load %arg6[%c2_205, %c0_206, %c0_207] : memref<6x16x16xf32, #tpu.memory_space<vmem>>, vector<2x16x16xf32>
      %c4_208 = arith.constant 4 : index
      %c0_209 = arith.constant 0 : index
      %c0_210 = arith.constant 0 : index
      %173 = vector.load %arg6[%c4_208, %c0_209, %c0_210] : memref<6x16x16xf32, #tpu.memory_space<vmem>>, vector<2x16x16xf32>
      %cst_211 = arith.constant 1.000000e-03 : f32
      %174 = vector.broadcast %cst_211 : f32 to vector<2x16x16xf32>
      %175 = arith.addf %173, %174 : vector<2x16x16xf32>
      %176 = tpu.reciprocal %175 {approx = true} : vector<2x16x16xf32> -> vector<2x16x16xf32>
      %177 = arith.mulf %175, %176 : vector<2x16x16xf32>
      %cst_212 = arith.constant 2.000000e+00 : f32
      %178 = vector.broadcast %cst_212 : f32 to vector<2x16x16xf32>
      %179 = arith.subf %178, %177 : vector<2x16x16xf32>
      %180 = arith.mulf %176, %179 : vector<2x16x16xf32>
      %c0_213 = arith.constant 0 : index
      %c0_214 = arith.constant 0 : index
      %c0_215 = arith.constant 0 : index
      %c0_216 = arith.constant 0 : index
      %181 = vector.load %arg5[%c0_213, %c0_214, %c0_215, %c0_216] : memref<1x2x16x16xf32, #tpu.memory_space<vmem>>, vector<1x2x16x16xf32>
      %182 = vector.shape_cast %181 : vector<1x2x16x16xf32> to vector<2x16x16xf32>
      %c0_217 = arith.constant 0 : index
      %c0_218 = arith.constant 0 : index
      %c0_219 = arith.constant 0 : index
      %183 = vector.load %arg7[%c0_217, %c0_218, %c0_219] : memref<2x16x16xf32, #tpu.memory_space<vmem>>, vector<2x16x16xf32>
      %184 = arith.mulf %171, %180 : vector<2x16x16xf32>
      %185 = arith.mulf %183, %184 : vector<2x16x16xf32>
      %186 = arith.addf %182, %185 : vector<2x16x16xf32>
      %c0_220 = arith.constant 0 : index
      %c0_221 = arith.constant 0 : index
      %c0_222 = arith.constant 0 : index
      %c0_223 = arith.constant 0 : index
      %187 = vector.load %arg5[%c0_220, %c0_221, %c0_222, %c0_223] : memref<1x2x16x16xf32, #tpu.memory_space<vmem>>, vector<1x2x16x16xf32>
      %188 = vector.shape_cast %187 : vector<1x2x16x16xf32> to vector<2x16x16xf32>
      %189 = vector.shape_cast %186 : vector<2x16x16xf32> to vector<1x2x16x16xf32>
      tpu.vector_store %arg5[%c0_220, %c0_221, %c0_222, %c0_223], %189 {strides = array<i32>} : memref<1x2x16x16xf32, #tpu.memory_space<vmem>>, vector<1x2x16x16xf32>,
      %c0_224 = arith.constant 0 : index
      %c0_225 = arith.constant 0 : index
      %c0_226 = arith.constant 0 : index
      %190 = vector.load %arg7[%c0_224, %c0_225, %c0_226] : memref<2x16x16xf32, #tpu.memory_space<vmem>>, vector<2x16x16xf32>
      %191 = arith.mulf %172, %180 : vector<2x16x16xf32>
      %cst_227 = arith.constant 1.000000e+00 : f32
      %192 = vector.broadcast %cst_227 : f32 to vector<2x16x16xf32>
      %193 = arith.subf %192, %191 : vector<2x16x16xf32>
      %194 = arith.mulf %190, %193 : vector<2x16x16xf32>
      %c0_228 = arith.constant 0 : index
      %c0_229 = arith.constant 0 : index
      %c0_230 = arith.constant 0 : index
      %195 = vector.load %arg7[%c0_228, %c0_229, %c0_230] : memref<2x16x16xf32, #tpu.memory_space<vmem>>, vector<2x16x16xf32>
      tpu.vector_store %arg7[%c0_228, %c0_229, %c0_230], %194 {strides = array<i32>} : memref<2x16x16xf32, #tpu.memory_space<vmem>>, vector<2x16x16xf32>,
    } else {
    }
    return
  }
  func.func @transform_0(%arg0: i32, %arg1: i32, %arg2: i32) -> (i32, i32, i32, i32, i32) {
    %c0_i32 = arith.constant 0 : i32
    %c0_i32_0 = arith.constant 0 : i32
    %c0_i32_1 = arith.constant 0 : i32
    %c0_i32_2 = arith.constant 0 : i32
    return %arg0, %arg1, %c0_i32, %c0_i32_0, %c0_i32_1 : i32, i32, i32, i32, i32
  }
  func.func @transform_1(%arg0: i32, %arg1: i32, %arg2: i32) -> (i32, i32, i32, i32, i32, i32) {
    %c3_i32 = arith.constant 3 : i32
    %c0_i32 = arith.constant 0 : i32
    %0 = arith.cmpi eq, %c3_i32, %c0_i32 : i32
    %c1_i32 = arith.constant 1 : i32
    %1 = arith.select %0, %c1_i32, %c3_i32 : i32
    %2 = arith.remsi %arg0, %1 : i32
    %c0_i32_0 = arith.constant 0 : i32
    %3 = arith.cmpi ne, %2, %c0_i32_0 : i32
    %c0_i32_1 = arith.constant 0 : i32
    %4 = arith.cmpi slt, %2, %c0_i32_1 : i32
    %c0_i32_2 = arith.constant 0 : i32
    %5 = arith.cmpi slt, %1, %c0_i32_2 : i32
    %6 = arith.xori %4, %5 : i1
    %7 = arith.andi %6, %3 : i1
    %8 = arith.addi %2, %1 : i32
    %9 = arith.select %7, %8, %2 : i32
    %c0_i32_3 = arith.constant 0 : i32
    %c0_i32_4 = arith.constant 0 : i32
    %c0_i32_5 = arith.constant 0 : i32
    %c0_i32_6 = arith.constant 0 : i32
    return %9, %arg1, %arg2, %c0_i32_3, %c0_i32_4, %c0_i32_5 : i32, i32, i32, i32, i32, i32
  }
  func.func @transform_2(%arg0: i32, %arg1: i32, %arg2: i32) -> (i32, i32, i32, i32) {
    %c0_i32 = arith.constant 0 : i32
    %c0_i32_0 = arith.constant 0 : i32
    %c0_i32_1 = arith.constant 0 : i32
    %c0_i32_2 = arith.constant 0 : i32
    return %arg0, %c0_i32, %c0_i32_0, %c0_i32_1 : i32, i32, i32, i32
  }
}

</mosaic_0001>

<llo_original>
// kernel: convolve3dfft_forward.1
$region0: #{convolve3dfft_forward.1}
  #allocation0 [shape = 'u32[]', space=smem, size = 0x4, offset = 0x4, fixed_abs, tag = 'smem constant byte address 0x4 - core index']
  #allocation1 [shape = 'u32[144,128]{1,0:T(1,128)}', space=vmem, size = 0x12000, scoped, tag = 'internal scratch']
  #allocation2 [shape = 'f32[6,16,16]{2,1,0:T(8,128)}', space=vmem, size = 0xc000, scoped, tag = 'scratch operand']
  #allocation3 [shape = 'f32[2,16,16]{2,1,0:T(8,128)}', space=vmem, size = 0x4000, scoped, tag = 'scratch operand']
  %s0 = inlined_call_operand.vmem [shape: bf16[3,4,6,16,16], index: 0, kind: input, shape index: {}]
  %s1 = inlined_call_operand.vmem [shape: bf16[3,4,1,16,16,16], index: 1, kind: input, shape index: {}]
  %s2 = inlined_call_operand.vmem [shape: f32[3,2,16,16], index: 2, kind: output, shape index: {}]
  %s3 = sld [smem:[#allocation0]]
  $region53: #{convolve3dfft_forward.1} parent=0
    _
  %s5 = ssub.s32 1, %s3
  %s6 = scalar_select 0, %s5, %s3
  loop: start=0, step=1, limit=14
  $region2: #{convolve3dfft_forward.1} parent=0 // loop_pre_header
    _
  $region3: #{convolve3dfft_forward.1} parent=0 // loop_header
    %s8 = sphi 0, %s12
    %p9 = scmp.ge.s32.totalorder %s8, 14
    %s15 = sphi 0, %s34
    %s16 = sphi 0, %s30
    %s17 = sphi 0, %s26
    %s18 = sphi 0, %s15
    %s19 = sphi 0, %s16
    %s20 = sphi 0, %s17
    %s21 = sphi 0, %s18
    %s22 = sphi 0, %s19
    %s23 = sphi 0, %s20
    %s39 = sphi 0, %s41
    %s42 = sphi 0, %s39
    %s43 = sphi 0, %s42
    %s59 = sphi 0, %s43
    %s95 = sphi 0, %s97
    %s98 = sphi 0, %s95
    %s99 = sphi 0, %s98
    %s115 = sphi 0, %s99
    %s121 = sphi 0, %s123
    %s124 = sphi 0, %s121
    %s125 = sphi 0, %s124
    %s141 = sphi 0, %s125
  $region4: #{convolve3dfft_forward.1} parent=0 // loop_header_branch
    %11 = sbr.rel (%p9) target = $region8
  $region5: #{convolve3dfft_forward.1} parent=0 // loop_body
    %s13 = ssub.s32 %s8, 1
    %s14 = ssub.s32 %s8, 2
    %s24 = sadd.s32 1, %s17
    %p25 = scmp.ge.s32.totalorder %s24, 1
    %s26 = scalar_select %p25, 0, %s24
    %s27 = sadd.s32 1, %s16
    %s28 = scalar_select %p25, %s27, %s16
    %p29 = scmp.ge.s32.totalorder %s28, 4
    %s30 = scalar_select %p29, 0, %s28
    %s31 = sadd.s32 1, %s15
    %s32 = scalar_select %p29, %s31, %s15
    %p33 = scmp.ge.s32.totalorder %s32, 3
    %s34 = scalar_select %p33, 0, %s32
    %s35 = ssub.s32 %s15, %s34
    %s36 = ssub.s32 %s16, %s30
    %s37 = sor.u32 %s35, %s36
    %p38 = scmp.eq.s32.totalorder %s37, 0
    %s40 = sadd.s32 %s39, 1
    %s41 = scalar_select %p38, %s39, %s40
    %p44 = pneg %p38
    %p45 = scmp.eq.s32.totalorder %s8, 11
    %p46 = por %p44, %p45
    %p47 = scmp.ne.s32.totalorder %s39, %s42
    %p48 = scmp.eq.s32.totalorder %s8, 0
    %p49 = por %p47, %p48
    %p50 = scmp.ne.s32.totalorder %s39, %s42
    %p51 = scmp.eq.s32.totalorder %s13, 11
    %p52 = por %p50, %p51
    %p53 = scmp.ne.s32.totalorder %s42, %s43
    %p54 = scmp.eq.s32.totalorder %s13, 0
    %p55 = por %p53, %p54
    %p56 = scmp.ne.s32.totalorder %s42, %s43
    %p57 = scmp.eq.s32.totalorder %s14, 11
    %p58 = por %p56, %p57
    %p60 = scmp.ne.s32.totalorder %s43, %s59
    %p61 = scmp.eq.s32.totalorder %s14, 0
    %p62 = por %p60, %p61
    %p63 = scmp.lt.s32.totalorder %s15, 0
    %s64 = ssub.s32 0, %s15
    %s65 = scalar_select %p63, %s64, %s15
    %s66 = sdiv.u32.pop %s65, 3
    %s67 = srem.u32.pop %s65, 3
    %s68 = ssub.s32 0, %s67
    %s69 = scalar_select %p63, %s68, %s67
    %p70 = scmp.ne.s32.totalorder %s69, 0
    %p71 = scmp.lt.s32.totalorder %s69, 0
    %p72 = pnand %p71, %p70
    %p73 = pneg %p72
    %s74 = sadd.s32 %s69, 3
    %s75 = scalar_select %p73, %s74, %s69
    %p76 = scmp.lt.s32.totalorder %s34, 0
    %s77 = ssub.s32 0, %s34
    %s78 = scalar_select %p76, %s77, %s34
    %s79 = sdiv.u32.pop %s78, 3
    %s80 = srem.u32.pop %s78, 3
    %s81 = ssub.s32 0, %s80
    %s82 = scalar_select %p76, %s81, %s80
    %p83 = scmp.ne.s32.totalorder %s82, 0
    %p84 = scmp.lt.s32.totalorder %s82, 0
    %p85 = pnand %p84, %p83
    %p86 = pneg %p85
    %s87 = sadd.s32 %s82, 3
    %s88 = scalar_select %p86, %s87, %s82
    %s89 = ssub.s32 %s75, %s88
    %s90 = ssub.s32 %s16, %s30
    %s91 = sor.u32 %s89, %s90
    %s92 = ssub.s32 %s17, %s26
    %s93 = sor.u32 %s91, %s92
    %p94 = scmp.eq.s32.totalorder %s93, 0
    %s96 = sadd.s32 %s95, 1
    %s97 = scalar_select %p94, %s95, %s96
    %p100 = pneg %p94
    %p101 = scmp.eq.s32.totalorder %s8, 11
    %p102 = por %p100, %p101
    %p103 = scmp.ne.s32.totalorder %s95, %s98
    %p104 = scmp.eq.s32.totalorder %s8, 0
    %p105 = por %p103, %p104
    %p106 = scmp.ne.s32.totalorder %s95, %s98
    %p107 = scmp.eq.s32.totalorder %s13, 11
    %p108 = por %p106, %p107
    %p109 = scmp.ne.s32.totalorder %s98, %s99
    %p110 = scmp.eq.s32.totalorder %s13, 0
    %p111 = por %p109, %p110
    %p112 = scmp.ne.s32.totalorder %s98, %s99
    %p113 = scmp.eq.s32.totalorder %s14, 11
    %p114 = por %p112, %p113
    %p116 = scmp.ne.s32.totalorder %s99, %s115
    %p117 = scmp.eq.s32.totalorder %s14, 0
    %p118 = por %p116, %p117
    %s119 = ssub.s32 %s15, %s34
    %p120 = scmp.eq.s32.totalorder %s119, 0
    %s122 = sadd.s32 %s121, 1
    %s123 = scalar_select %p120, %s121, %s122
    %p126 = pneg %p120
    %p127 = scmp.eq.s32.totalorder %s8, 11
    %p128 = por %p126, %p127
    %p129 = scmp.ne.s32.totalorder %s121, %s124
    %p130 = scmp.eq.s32.totalorder %s8, 0
    %p131 = por %p129, %p130
    %p132 = scmp.ne.s32.totalorder %s121, %s124
    %p133 = scmp.eq.s32.totalorder %s13, 11
    %p134 = por %p132, %p133
    %p135 = scmp.ne.s32.totalorder %s124, %s125
    %p136 = scmp.eq.s32.totalorder %s13, 0
    %p137 = por %p135, %p136
    %p138 = scmp.ne.s32.totalorder %s124, %s125
    %p139 = scmp.eq.s32.totalorder %s14, 11
    %p140 = por %p138, %p139
    %p142 = scmp.ne.s32.totalorder %s125, %s141
    %p143 = scmp.eq.s32.totalorder %s14, 0
    %p144 = por %p142, %p143
    %p145 = scmp.le.s32.totalorder 1, %s8
    %p146 = scmp.lt.s32.totalorder %s8, 13
    %p147 = pnand %p145, %p146
    %p148 = pneg %p147
    // Predicated region
    $region9: #{convolve3dfft_forward.1} parent=5 // pred_check
      _
    $region10: #{convolve3dfft_forward.1} parent=5 // pred_check_branch
      %150 = sbr.rel (%p147) target = $region12
    $region11: #{convolve3dfft_forward.1} parent=5 // pred_region
      %s151 = ssub.s32 %s8, 1
    $region12: #{convolve3dfft_forward.1} parent=5 // pred_fallthru
      _
    %p152 = scmp.lt.s32.totalorder %s8, 12
    // Predicated region
    $region13: #{convolve3dfft_forward.1} parent=5 // pred_check
      %p153 = pneg %p152
    $region14: #{convolve3dfft_forward.1} parent=5 // pred_check_branch
      %155 = sbr.rel (%p153) target = $region16
    $region15: #{convolve3dfft_forward.1} parent=5 // pred_region
      // Predicated region
      $region17: #{convolve3dfft_forward.1} parent=15 // pred_check
        %p156 = pneg %p49
      $region18: #{convolve3dfft_forward.1} parent=15 // pred_check_branch
        %158 = sbr.rel (%p156) target = $region20
      $region19: #{convolve3dfft_forward.1} parent=15 // pred_region
        %p159 = scmp.lt.s32.totalorder %s15, 2
        %s160 = scalar_select %p159, %s15, 2
        %p161 = scmp.lt.s32.totalorder %s16, 3
        %s162 = scalar_select %p161, %s16, 3
        %s163 = smul.addr %s162, 12
        %s164 = smul.addr %s160, 48
        %s165 = sadd.s32 %s163, %s164
        %s166 = smul.addr %s165, 4
        %s167 = scalar_lea.vmem %s0, %s166
      $region20: #{convolve3dfft_forward.1} parent=15 // pred_fallthru
        _
      // Predicated region
      $region21: #{convolve3dfft_forward.1} parent=15 // pred_check
        %p168 = pneg %p105
      $region22: #{convolve3dfft_forward.1} parent=15 // pred_check_branch
        %170 = sbr.rel (%p168) target = $region24
      $region23: #{convolve3dfft_forward.1} parent=15 // pred_region
        %p171 = scmp.lt.s32.totalorder %s15, 0
        %s172 = ssub.s32 0, %s15
        %s173 = scalar_select %p171, %s172, %s15
        %s174 = sdiv.u32.pop %s173, 3
        %s175 = srem.u32.pop %s173, 3
        %s176 = ssub.s32 0, %s175
        %s177 = scalar_select %p171, %s176, %s175
        %p178 = scmp.ne.s32.totalorder %s177, 0
        %p179 = scmp.lt.s32.totalorder %s177, 0
        %p180 = pnand %p179, %p178
        %p181 = pneg %p180
        %s182 = sadd.s32 %s177, 3
        %s183 = scalar_select %p181, %s182, %s177
        %p184 = scmp.lt.s32.totalorder %s183, 2
        %s185 = scalar_select %p184, %s183, 2
        %p186 = scmp.lt.s32.totalorder %s16, 3
        %s187 = scalar_select %p186, %s16, 3
        %p188 = scmp.lt.s32.totalorder %s17, 0
        %s189 = scalar_select %p188, %s17, 0
        %s190 = smul.addr %s189, 32
        %s191 = smul.addr %s187, 32
        %s192 = sadd.s32 %s190, %s191
        %s193 = smul.addr %s185, 128
        %s194 = sadd.s32 %s192, %s193
        %s195 = smul.addr %s194, 4
        %s196 = scalar_lea.vmem %s1, %s195
        %p197 = scmp.lt.s32.totalorder %s15, 0
        %s198 = ssub.s32 0, %s15
        %s199 = scalar_select %p197, %s198, %s15
        %s200 = sdiv.u32.pop %s199, 3
        %s201 = srem.u32.pop %s199, 3
        %s202 = ssub.s32 0, %s201
        %s203 = scalar_select %p197, %s202, %s201
        %p204 = scmp.ne.s32.totalorder %s203, 0
        %p205 = scmp.lt.s32.totalorder %s203, 0
        %p206 = pnand %p205, %p204
        %p207 = pneg %p206
        %s208 = sadd.s32 %s203, 3
        %s209 = scalar_select %p207, %s208, %s203
      $region24: #{convolve3dfft_forward.1} parent=15 // pred_fallthru
        _
    $region16: #{convolve3dfft_forward.1} parent=5 // pred_fallthru
      _
    %p210 = scmp.le.s32.totalorder 1, %s8
    %p211 = scmp.lt.s32.totalorder %s8, 13
    %p212 = pnand %p210, %p211
    %p213 = pneg %p212
    // Predicated region
    $region25: #{convolve3dfft_forward.1} parent=5 // pred_check
      _
    $region26: #{convolve3dfft_forward.1} parent=5 // pred_check_branch
      %215 = sbr.rel (%p212) target = $region28
    $region27: #{convolve3dfft_forward.1} parent=5 // pred_region
      %s216 = ssub.s32 %s8, 1
      %p217 = scmp.lt.s32.totalorder %s18, 2
      %s218 = scalar_select %p217, %s18, 2
      %p219 = scmp.lt.s32.totalorder %s19, 3
      %s220 = scalar_select %p219, %s19, 3
      %s221 = smul.addr %s220, 12
      %s222 = smul.addr %s218, 48
      %s223 = sadd.s32 %s221, %s222
      %s224 = smul.addr %s223, 4
      %s225 = scalar_lea.vmem %s0, %s224
      %p226 = pneg %p55
      %p227 = pneg %p52
      %p228 = scmp.lt.s32.totalorder %s18, 0
      %s229 = ssub.s32 0, %s18
      %s230 = scalar_select %p228, %s229, %s18
      %s231 = sdiv.u32.pop %s230, 3
      %s232 = srem.u32.pop %s230, 3
      %s233 = ssub.s32 0, %s232
      %s234 = scalar_select %p228, %s233, %s232
      %p235 = scmp.ne.s32.totalorder %s234, 0
      %p236 = scmp.lt.s32.totalorder %s234, 0
      %p237 = pnand %p236, %p235
      %p238 = pneg %p237
      %s239 = sadd.s32 %s234, 3
      %s240 = scalar_select %p238, %s239, %s234
      %p241 = scmp.lt.s32.totalorder %s240, 2
      %s242 = scalar_select %p241, %s240, 2
      %p243 = scmp.lt.s32.totalorder %s19, 3
      %s244 = scalar_select %p243, %s19, 3
      %p245 = scmp.lt.s32.totalorder %s20, 0
      %s246 = scalar_select %p245, %s20, 0
      %s247 = smul.addr %s246, 32
      %s248 = smul.addr %s244, 32
      %s249 = sadd.s32 %s247, %s248
      %s250 = smul.addr %s242, 128
      %s251 = sadd.s32 %s249, %s250
      %s252 = smul.addr %s251, 4
      %s253 = scalar_lea.vmem %s1, %s252
      %p254 = pneg %p111
      %p255 = pneg %p108
      %p256 = pneg %p137
      %p257 = pneg %p134
      %p258 = scmp.lt.s32.totalorder %s18, 2
      %s259 = scalar_select %p258, %s18, 2
      %s260 = smul.addr %s259, 4
      %s261 = smul.addr %s260, 8
      %s262 = scalar_lea.vmem %s2, %s261
      %p263 = scmp.lt.s32.totalorder %s18, 2
      %s264 = scalar_select %p263, %s18, 2
      %p265 = scmp.lt.s32.totalorder %s19, 3
      %s266 = scalar_select %p265, %s19, 3
      %s267 = smul.addr %s266, 12
      %s268 = smul.addr %s264, 48
      %s269 = sadd.s32 %s267, %s268
      %s270 = smul.addr %s269, 4
      %s271 = scalar_lea.vmem %s0, %s270
      %p272 = scmp.lt.s32.totalorder %s18, 0
      %s273 = ssub.s32 0, %s18
      %s274 = scalar_select %p272, %s273, %s18
      %s275 = sdiv.u32.pop %s274, 3
      %s276 = srem.u32.pop %s274, 3
      %s277 = ssub.s32 0, %s276
      %s278 = scalar_select %p272, %s277, %s276
      %p279 = scmp.ne.s32.totalorder %s278, 0
      %p280 = scmp.lt.s32.totalorder %s278, 0
      %p281 = pnand %p280, %p279
      %p282 = pneg %p281
      %s283 = sadd.s32 %s278, 3
      %s284 = scalar_select %p282, %s283, %s278
      %p285 = scmp.lt.s32.totalorder %s284, 2
      %s286 = scalar_select %p285, %s284, 2
      %p287 = scmp.lt.s32.totalorder %s19, 3
      %s288 = scalar_select %p287, %s19, 3
      %p289 = scmp.lt.s32.totalorder %s20, 0
      %s290 = scalar_select %p289, %s20, 0
      %s291 = smul.addr %s290, 32
      %s292 = smul.addr %s288, 32
      %s293 = sadd.s32 %s291, %s292
      %s294 = smul.addr %s286, 128
      %s295 = sadd.s32 %s293, %s294
      %s296 = smul.addr %s295, 4
      %s297 = scalar_lea.vmem %s1, %s296
      %p298 = scmp.lt.s32.totalorder %s18, 0
      %s299 = ssub.s32 0, %s18
      %s300 = scalar_select %p298, %s299, %s18
      %s301 = sdiv.u32.pop %s300, 3
      %s302 = srem.u32.pop %s300, 3
      %s303 = ssub.s32 0, %s302
      %s304 = scalar_select %p298, %s303, %s302
      %p305 = scmp.ne.s32.totalorder %s304, 0
      %p306 = scmp.lt.s32.totalorder %s304, 0
      %p307 = pnand %p306, %p305
      %p308 = pneg %p307
      %s309 = sadd.s32 %s304, 3
      %s310 = scalar_select %p308, %s309, %s304
      %p311 = scmp.lt.s32.totalorder %s18, 2
      %s312 = scalar_select %p311, %s18, 2
      %s313 = smul.addr %s312, 4
      %s314 = smul.addr %s313, 8
      %s315 = scalar_lea.vmem %s2, %s314
      %p317 = scmp.eq.s32.totalorder %s19, 0
      %p318 = scmp.eq.s32.totalorder %s20, 0
      %p319 = pnand %p317, %p318
      %p320 = pneg %p319
      // Predicated region
      $region29: #{convolve3dfft_forward.1} parent=27 // pred_check
        _
      $region30: #{convolve3dfft_forward.1} parent=27 // pred_check_branch
        %322 = sbr.rel (%p319) target = $region32
      $region31: #{convolve3dfft_forward.1} parent=27 // pred_region
        %vm323 = vcmask 130048
        %324 = vst.msk [vmem:[%s315] sm:$0xff] %vm323, 0.0
        %325 = vst.msk [vmem:[%s315 + $0x8] sm:$0xff] %vm323, 0.0
        %326 = vst.msk [vmem:[%s315 + $0x10] sm:$0xff] %vm323, 0.0
        %327 = vst.msk [vmem:[%s315 + $0x18] sm:$0xff] %vm323, 0.0
        %328 = vst.msk [vmem:[#allocation3] sm:$0xff] %vm323, 1.0
        %329 = vst.msk [vmem:[#allocation3 + $0x8] sm:$0xff] %vm323, 1.0
        %330 = vst.msk [vmem:[#allocation3 + $0x10] sm:$0xff] %vm323, 1.0
        %331 = vst.msk [vmem:[#allocation3 + $0x18] sm:$0xff] %vm323, 1.0
      $region32: #{convolve3dfft_forward.1} parent=27 // pred_fallthru
        _
      // Predicated region
      $region33: #{convolve3dfft_forward.1} parent=27 // pred_check
        %p332 = pneg %p318
      $region34: #{convolve3dfft_forward.1} parent=27 // pred_check_branch
        %334 = sbr.rel (%p332) target = $region36
      $region35: #{convolve3dfft_forward.1} parent=27 // pred_region
        %vm335 = vcmask 130048
        %336 = vst.msk [vmem:[#allocation2] sm:$0xff] %vm335, 0.0
        %337 = vst.msk [vmem:[#allocation2 + $0x8] sm:$0xff] %vm335, 0.0
        %338 = vst.msk [vmem:[#allocation2 + $0x10] sm:$0xff] %vm335, 0.0
        %339 = vst.msk [vmem:[#allocation2 + $0x18] sm:$0xff] %vm335, 0.0
        %340 = vst.msk [vmem:[#allocation2 + $0x20] sm:$0xff] %vm335, 0.0
        %341 = vst.msk [vmem:[#allocation2 + $0x28] sm:$0xff] %vm335, 0.0
        %342 = vst.msk [vmem:[#allocation2 + $0x30] sm:$0xff] %vm335, 0.0
        %343 = vst.msk [vmem:[#allocation2 + $0x38] sm:$0xff] %vm335, 0.0
        %344 = vst.msk [vmem:[#allocation2 + $0x40] sm:$0xff] %vm335, 0.0
        %345 = vst.msk [vmem:[#allocation2 + $0x48] sm:$0xff] %vm335, 0.0
        %346 = vst.msk [vmem:[#allocation2 + $0x50] sm:$0xff] %vm335, 0.0
        %347 = vst.msk [vmem:[#allocation2 + $0x58] sm:$0xff] %vm335, 0.0
      $region36: #{convolve3dfft_forward.1} parent=27 // pred_fallthru
        _
      %v348 = vld [vmem:[%s271] sm:$0xf]
      %v349 = vld [vmem:[%s271 + $0x4] sm:$0xf]
      %v350 = vld [vmem:[%s271 + $0x8] sm:$0xf]
      %v351 = vld [vmem:[%s271 + $0xc] sm:$0xf]
      %v352 = vld [vmem:[%s271 + $0x10] sm:$0xf]
      %v353 = vld [vmem:[%s271 + $0x14] sm:$0xf]
      %v354 = vld [vmem:[%s271 + $0x18] sm:$0xf]
      %v355 = vld [vmem:[%s271 + $0x1c] sm:$0xf]
      %v356 = vld [vmem:[%s271 + $0x20] sm:$0xf]
      %v357 = vld [vmem:[%s271 + $0x24] sm:$0xf]
      %v358 = vld [vmem:[%s271 + $0x28] sm:$0xf]
      %v359 = vld [vmem:[%s271 + $0x2c] sm:$0xf]
      %v360 = vld [vmem:[%s297] sm:$0xf]
      %v361 = vld [vmem:[%s297 + $0x4] sm:$0xf]
      %v374 = vunpack.c.l.b16 %v348
      %v375 = vunpack.c.l.b16 %v349
      %v376 = vunpack.c.l.b16 %v350
      %v377 = vunpack.c.l.b16 %v351
      %v378 = vunpack.c.l.b16 %v352
      %v379 = vunpack.c.l.b16 %v353
      %v380 = vunpack.c.l.b16 %v354
      %v381 = vunpack.c.l.b16 %v355
      %v382 = vunpack.c.l.b16 %v356
      %v383 = vunpack.c.l.b16 %v357
      %v384 = vunpack.c.l.b16 %v358
      %v385 = vunpack.c.l.b16 %v359
      %v386 = vpack.c.b16 %v375, %v374
      %v387 = vpack.c.b16 %v377, %v376
      %v388 = vpack.c.b16 %v379, %v378
      %v389 = vpack.c.b16 %v381, %v380
      %v390 = vpack.c.b16 %v383, %v382
      %v391 = vpack.c.b16 %v385, %v384
      %v394 = vunpack.c.l.b16 %v360
      %v395 = vunpack.c.l.b16 %v361
      %v396 = vpack.c.b16 %v395, %v394
      %vm398 = vcmask 130048
      %v400 = vsel %vm398, %v386, 0
      %v403 = vsel %vm398, %v387, 0
      %v406 = vsel %vm398, %v388, 0
      %v409 = vsel %vm398, %v389, 0
      %v412 = vsel %vm398, %v390, 0
      %v415 = vsel %vm398, %v391, 0
      %417 = vmatprep.subr.bf16.mxu0 0
      %418 = vmatpush1.bf16.msra.mxu0 %v396
      %419 = vmatprep.subr.bf16.mxu0 0
      %420 = vmatpush1.bf16.msra.mxu0 0
      %421 = vmatprep.subr.bf16.mxu0 0
      %422 = vmatpush1.bf16.msra.mxu0 0
      %423 = vmatprep.subr.bf16.mxu0 0
      %424 = vmatpush1.bf16.msra.mxu0 0
      %425 = vmatprep.subr.bf16.mxu0 0
      %426 = vmatpush1.bf16.msra.mxu0 0
      %427 = vmatprep.subr.bf16.mxu0 0
      %428 = vmatpush1.bf16.msra.mxu0 0
      %429 = vmatprep.subr.bf16.mxu0 0
      %430 = vmatpush1.bf16.msra.mxu0 0
      %431 = vmatprep.subr.bf16.mxu0 0
      %432 = vmatpush1.bf16.msra.mxu0 0
      %433 = vmatprep.subr.bf16.mxu0 0
      %434 = vmatpush1.bf16.msra.mxu0 0
      %435 = vmatprep.subr.bf16.mxu0 0
      %436 = vmatpush1.bf16.msra.mxu0 0
      %437 = vmatprep.subr.bf16.mxu0 0
      %438 = vmatpush1.bf16.msra.mxu0 0
      %439 = vmatprep.subr.bf16.mxu0 0
      %440 = vmatpush1.bf16.msra.mxu0 0
      %441 = vmatprep.subr.bf16.mxu0 0
      %442 = vmatpush1.bf16.msra.mxu0 0
      %443 = vmatprep.subr.bf16.mxu0 0
      %444 = vmatpush1.bf16.msra.mxu0 0
      %445 = vmatprep.subr.bf16.mxu0 0
      %446 = vmatpush1.bf16.msra.mxu0 0
      %447 = vmatprep.subr.bf16.mxu0 0
      %448 = vmatpush1.bf16.msra.mxu0 0
      %449 = vmatprep.mubr.bf16.mxu0 0
      %450 = vmatmul.mubr.bf16.gmra.mrb[0].mxu0 %v400
      %v451 = vpop.f32.mrb[0].mxu0
      %v452 = vadd.f32 0.0, %v451
      %v453 = vpop.f32.mrb[0].mxu0
      %v454 = vpop.f32.mrb[0].mxu0
      %v455 = vadd.f32 0.0, %v454
      %v456 = vpop.f32.mrb[0].mxu0
      %457 = vmatprep.mubr.bf16.mxu0 0
      %458 = vmatmul.mubr.bf16.gmra.mrb[0].mxu0 %v403
      %v459 = vpop.f32.mrb[0].mxu0
      %v460 = vadd.f32 0.0, %v459
      %v461 = vpop.f32.mrb[0].mxu0
      %v462 = vpop.f32.mrb[0].mxu0
      %v463 = vadd.f32 0.0, %v462
      %v464 = vpop.f32.mrb[0].mxu0
      %465 = vmatprep.mubr.bf16.mxu0 0
      %466 = vmatmul.mubr.bf16.gmra.mrb[0].mxu0 %v406
      %v467 = vpop.f32.mrb[0].mxu0
      %v468 = vadd.f32 0.0, %v467
      %v469 = vpop.f32.mrb[0].mxu0
      %v470 = vpop.f32.mrb[0].mxu0
      %v471 = vadd.f32 0.0, %v470
      %v472 = vpop.f32.mrb[0].mxu0
      %473 = vmatprep.mubr.bf16.mxu0 0
      %474 = vmatmul.mubr.bf16.gmra.mrb[0].mxu0 %v409
      %v475 = vpop.f32.mrb[0].mxu0
      %v476 = vadd.f32 0.0, %v475
      %v477 = vpop.f32.mrb[0].mxu0
      %v478 = vpop.f32.mrb[0].mxu0
      %v479 = vadd.f32 0.0, %v478
      %v480 = vpop.f32.mrb[0].mxu0
      %481 = vmatprep.mubr.bf16.mxu0 0
      %482 = vmatmul.mubr.bf16.gmra.mrb[0].mxu0 %v412
      %v483 = vpop.f32.mrb[0].mxu0
      %v484 = vadd.f32 0.0, %v483
      %v485 = vpop.f32.mrb[0].mxu0
      %v486 = vpop.f32.mrb[0].mxu0
      %v487 = vadd.f32 0.0, %v486
      %v488 = vpop.f32.mrb[0].mxu0
      %489 = vmatprep.mubr.bf16.mxu0 0
      %490 = vmatmul.mubr.bf16.gmra.mrb[0].mxu0 %v415
      %v491 = vpop.f32.mrb[0].mxu0
      %v492 = vadd.f32 0.0, %v491
      %v493 = vpop.f32.mrb[0].mxu0
      %v494 = vpop.f32.mrb[0].mxu0
      %v495 = vadd.f32 0.0, %v494
      %v496 = vpop.f32.mrb[0].mxu0
      %497 = vdwg.mxu0
      %v498 = vld [vmem:[#allocation2] sm:$0xff]
      %v499 = vld [vmem:[#allocation2 + $0x8] sm:$0xff]
      %v500 = vld [vmem:[#allocation2 + $0x10] sm:$0xff]
      %v501 = vld [vmem:[#allocation2 + $0x18] sm:$0xff]
      %v502 = vld [vmem:[#allocation2 + $0x20] sm:$0xff]
      %v503 = vld [vmem:[#allocation2 + $0x28] sm:$0xff]
      %v504 = vld [vmem:[#allocation2 + $0x30] sm:$0xff]
      %v505 = vld [vmem:[#allocation2 + $0x38] sm:$0xff]
      %v506 = vld [vmem:[#allocation2 + $0x40] sm:$0xff]
      %v507 = vld [vmem:[#allocation2 + $0x48] sm:$0xff]
      %v508 = vld [vmem:[#allocation2 + $0x50] sm:$0xff]
      %v509 = vld [vmem:[#allocation2 + $0x58] sm:$0xff]
      %v510 = vadd.f32 %v498, %v452
      %v511 = vadd.f32 %v499, %v455
      %v512 = vadd.f32 %v500, %v460
      %v513 = vadd.f32 %v501, %v463
      %v514 = vadd.f32 %v502, %v468
      %v515 = vadd.f32 %v503, %v471
      %v516 = vadd.f32 %v504, %v476
      %v517 = vadd.f32 %v505, %v479
      %v518 = vadd.f32 %v506, %v484
      %v519 = vadd.f32 %v507, %v487
      %v520 = vadd.f32 %v508, %v492
      %v521 = vadd.f32 %v509, %v495
      %522 = vst.msk [vmem:[#allocation2] sm:$0xff] %vm398, %v510
      %523 = vst.msk [vmem:[#allocation2 + $0x8] sm:$0xff] %vm398, %v511
      %524 = vst.msk [vmem:[#allocation2 + $0x10] sm:$0xff] %vm398, %v512
      %525 = vst.msk [vmem:[#allocation2 + $0x18] sm:$0xff] %vm398, %v513
      %526 = vst.msk [vmem:[#allocation2 + $0x20] sm:$0xff] %vm398, %v514
      %527 = vst.msk [vmem:[#allocation2 + $0x28] sm:$0xff] %vm398, %v515
      %528 = vst.msk [vmem:[#allocation2 + $0x30] sm:$0xff] %vm398, %v516
      %529 = vst.msk [vmem:[#allocation2 + $0x38] sm:$0xff] %vm398, %v517
      %530 = vst.msk [vmem:[#allocation2 + $0x40] sm:$0xff] %vm398, %v518
      %531 = vst.msk [vmem:[#allocation2 + $0x48] sm:$0xff] %vm398, %v519
      %532 = vst.msk [vmem:[#allocation2 + $0x50] sm:$0xff] %vm398, %v520
      %533 = vst.msk [vmem:[#allocation2 + $0x58] sm:$0xff] %vm398, %v521
      %s534 = scalar_lea.vmem %s297, 8
      %v535 = vld [vmem:[%s534] sm:$0xf]
      %v536 = vld [vmem:[%s534 + $0x4] sm:$0xf]
      %v539 = vunpack.c.l.b16 %v535
      %v540 = vunpack.c.l.b16 %v536
      %v541 = vpack.c.b16 %v540, %v539
      %543 = vmatprep.subr.bf16.mxu0 0
      %544 = vmatpush1.bf16.msra.mxu0 %v541
      %545 = vmatprep.subr.bf16.mxu0 0
      %546 = vmatpush1.bf16.msra.mxu0 0
      %547 = vmatprep.subr.bf16.mxu0 0
      %548 = vmatpush1.bf16.msra.mxu0 0
      %549 = vmatprep.subr.bf16.mxu0 0
      %550 = vmatpush1.bf16.msra.mxu0 0
      %551 = vmatprep.subr.bf16.mxu0 0
      %552 = vmatpush1.bf16.msra.mxu0 0
      %553 = vmatprep.subr.bf16.mxu0 0
      %554 = vmatpush1.bf16.msra.mxu0 0
      %555 = vmatprep.subr.bf16.mxu0 0
      %556 = vmatpush1.bf16.msra.mxu0 0
      %557 = vmatprep.subr.bf16.mxu0 0
      %558 = vmatpush1.bf16.msra.mxu0 0
      %559 = vmatprep.subr.bf16.mxu0 0
      %560 = vmatpush1.bf16.msra.mxu0 0
      %561 = vmatprep.subr.bf16.mxu0 0
      %562 = vmatpush1.bf16.msra.mxu0 0
      %563 = vmatprep.subr.bf16.mxu0 0
      %564 = vmatpush1.bf16.msra.mxu0 0
      %565 = vmatprep.subr.bf16.mxu0 0
      %566 = vmatpush1.bf16.msra.mxu0 0
      %567 = vmatprep.subr.bf16.mxu0 0
      %568 = vmatpush1.bf16.msra.mxu0 0
      %569 = vmatprep.subr.bf16.mxu0 0
      %570 = vmatpush1.bf16.msra.mxu0 0
      %571 = vmatprep.subr.bf16.mxu0 0
      %572 = vmatpush1.bf16.msra.mxu0 0
      %573 = vmatprep.subr.bf16.mxu0 0
      %574 = vmatpush1.bf16.msra.mxu0 0
      %575 = vmatprep.mubr.bf16.mxu0 0
      %576 = vmatmul.mubr.bf16.gmra.mrb[0].mxu0 %v400
      %v577 = vpop.f32.mrb[0].mxu0
      %v578 = vadd.f32 0.0, %v577
      %v579 = vpop.f32.mrb[0].mxu0
      %v580 = vpop.f32.mrb[0].mxu0
      %v581 = vadd.f32 0.0, %v580
      %v582 = vpop.f32.mrb[0].mxu0
      %583 = vmatprep.mubr.bf16.mxu0 0
      %584 = vmatmul.mubr.bf16.gmra.mrb[0].mxu0 %v403
      %v585 = vpop.f32.mrb[0].mxu0
      %v586 = vadd.f32 0.0, %v585
      %v587 = vpop.f32.mrb[0].mxu0
      %v588 = vpop.f32.mrb[0].mxu0
      %v589 = vadd.f32 0.0, %v588
      %v590 = vpop.f32.mrb[0].mxu0
      %591 = vmatprep.mubr.bf16.mxu0 0
      %592 = vmatmul.mubr.bf16.gmra.mrb[0].mxu0 %v406
      %v593 = vpop.f32.mrb[0].mxu0
      %v594 = vadd.f32 0.0, %v593
      %v595 = vpop.f32.mrb[0].mxu0
      %v596 = vpop.f32.mrb[0].mxu0
      %v597 = vadd.f32 0.0, %v596
      %v598 = vpop.f32.mrb[0].mxu0
      %599 = vmatprep.mubr.bf16.mxu0 0
      %600 = vmatmul.mubr.bf16.gmra.mrb[0].mxu0 %v409
      %v601 = vpop.f32.mrb[0].mxu0
      %v602 = vadd.f32 0.0, %v601
      %v603 = vpop.f32.mrb[0].mxu0
      %v604 = vpop.f32.mrb[0].mxu0
      %v605 = vadd.f32 0.0, %v604
      %v606 = vpop.f32.mrb[0].mxu0
      %607 = vmatprep.mubr.bf16.mxu0 0
      %608 = vmatmul.mubr.bf16.gmra.mrb[0].mxu0 %v412
      %v609 = vpop.f32.mrb[0].mxu0
      %v610 = vadd.f32 0.0, %v609
      %v611 = vpop.f32.mrb[0].mxu0
      %v612 = vpop.f32.mrb[0].mxu0
      %v613 = vadd.f32 0.0, %v612
      %v614 = vpop.f32.mrb[0].mxu0
      %615 = vmatprep.mubr.bf16.mxu0 0
      %616 = vmatmul.mubr.bf16.gmra.mrb[0].mxu0 %v415
      %v617 = vpop.f32.mrb[0].mxu0
      %v618 = vadd.f32 0.0, %v617
      %v619 = vpop.f32.mrb[0].mxu0
      %v620 = vpop.f32.mrb[0].mxu0
      %v621 = vadd.f32 0.0, %v620
      %v622 = vpop.f32.mrb[0].mxu0
      %623 = vdwg.mxu0
      %v624 = vld [vmem:[#allocation2] sm:$0xff]
      %v625 = vld [vmem:[#allocation2 + $0x8] sm:$0xff]
      %v626 = vld [vmem:[#allocation2 + $0x10] sm:$0xff]
      %v627 = vld [vmem:[#allocation2 + $0x18] sm:$0xff]
      %v628 = vld [vmem:[#allocation2 + $0x20] sm:$0xff]
      %v629 = vld [vmem:[#allocation2 + $0x28] sm:$0xff]
      %v630 = vld [vmem:[#allocation2 + $0x30] sm:$0xff]
      %v631 = vld [vmem:[#allocation2 + $0x38] sm:$0xff]
      %v632 = vld [vmem:[#allocation2 + $0x40] sm:$0xff]
      %v633 = vld [vmem:[#allocation2 + $0x48] sm:$0xff]
      %v634 = vld [vmem:[#allocation2 + $0x50] sm:$0xff]
      %v635 = vld [vmem:[#allocation2 + $0x58] sm:$0xff]
      %v642 = vrot.slane %v581, 7
      %v643 = vrot.slane %v589, 7
      %v644 = vrot.slane %v597, 7
      %v645 = vrot.slane %v605, 7
      %v646 = vrot.slane %v613, 7
      %v647 = vrot.slane %v621, 7
      %vm660 = vcmask 1040384
      %v661 = vrot.slane %v578, 7
      %v662 = vsel %vm660, %v661, %v642
      %v663 = vrot.slane %v586, 7
      %v664 = vsel %vm660, %v663, %v643
      %v665 = vrot.slane %v594, 7
      %v666 = vsel %vm660, %v665, %v644
      %v667 = vrot.slane %v602, 7
      %v668 = vsel %vm660, %v667, %v645
      %v669 = vrot.slane %v610, 7
      %v670 = vsel %vm660, %v669, %v646
      %v671 = vrot.slane %v618, 7
      %v672 = vsel %vm660, %v671, %v647
      %v685 = vsel %vm660, %v642, %v661
      %v686 = vsel %vm660, %v643, %v663
      %v687 = vsel %vm660, %v644, %v665
      %v688 = vsel %vm660, %v645, %v667
      %v689 = vsel %vm660, %v646, %v669
      %v690 = vsel %vm660, %v647, %v671
      %v691 = vadd.f32 %v624, %v685
      %v692 = vadd.f32 %v625, %v662
      %v693 = vadd.f32 %v626, %v686
      %v694 = vadd.f32 %v627, %v664
      %v695 = vadd.f32 %v628, %v687
      %v696 = vadd.f32 %v629, %v666
      %v697 = vadd.f32 %v630, %v688
      %v698 = vadd.f32 %v631, %v668
      %v699 = vadd.f32 %v632, %v689
      %v700 = vadd.f32 %v633, %v670
      %v701 = vadd.f32 %v634, %v690
      %v702 = vadd.f32 %v635, %v672
      %703 = vst.msk [vmem:[#allocation2] sm:$0xff] %vm398, %v691
      %704 = vst.msk [vmem:[#allocation2 + $0x8] sm:$0xff] %vm398, %v692
      %705 = vst.msk [vmem:[#allocation2 + $0x10] sm:$0xff] %vm398, %v693
      %706 = vst.msk [vmem:[#allocation2 + $0x18] sm:$0xff] %vm398, %v694
      %707 = vst.msk [vmem:[#allocation2 + $0x20] sm:$0xff] %vm398, %v695
      %708 = vst.msk [vmem:[#allocation2 + $0x28] sm:$0xff] %vm398, %v696
      %709 = vst.msk [vmem:[#allocation2 + $0x30] sm:$0xff] %vm398, %v697
      %710 = vst.msk [vmem:[#allocation2 + $0x38] sm:$0xff] %vm398, %v698
      %711 = vst.msk [vmem:[#allocation2 + $0x40] sm:$0xff] %vm398, %v699
      %712 = vst.msk [vmem:[#allocation2 + $0x48] sm:$0xff] %vm398, %v700
      %713 = vst.msk [vmem:[#allocation2 + $0x50] sm:$0xff] %vm398, %v701
      %714 = vst.msk [vmem:[#allocation2 + $0x58] sm:$0xff] %vm398, %v702
      %s715 = scalar_lea.vmem %s297, 16
      %v716 = vld [vmem:[%s715] sm:$0xf]
      %v717 = vld [vmem:[%s715 + $0x4] sm:$0xf]
      %v720 = vunpack.c.l.b16 %v716
      %v721 = vunpack.c.l.b16 %v717
      %v722 = vpack.c.b16 %v721, %v720
      %724 = vmatprep.subr.bf16.mxu0 0
      %725 = vmatpush1.bf16.msra.mxu0 %v722
      %726 = vmatprep.subr.bf16.mxu0 0
      %727 = vmatpush1.bf16.msra.mxu0 0
      %728 = vmatprep.subr.bf16.mxu0 0
      %729 = vmatpush1.bf16.msra.mxu0 0
      %730 = vmatprep.subr.bf16.mxu0 0
      %731 = vmatpush1.bf16.msra.mxu0 0
      %732 = vmatprep.subr.bf16.mxu0 0
      %733 = vmatpush1.bf16.msra.mxu0 0
      %734 = vmatprep.subr.bf16.mxu0 0
      %735 = vmatpush1.bf16.msra.mxu0 0
      %736 = vmatprep.subr.bf16.mxu0 0
      %737 = vmatpush1.bf16.msra.mxu0 0
      %738 = vmatprep.subr.bf16.mxu0 0
      %739 = vmatpush1.bf16.msra.mxu0 0
      %740 = vmatprep.subr.bf16.mxu0 0
      %741 = vmatpush1.bf16.msra.mxu0 0
      %742 = vmatprep.subr.bf16.mxu0 0
      %743 = vmatpush1.bf16.msra.mxu0 0
      %744 = vmatprep.subr.bf16.mxu0 0
      %745 = vmatpush1.bf16.msra.mxu0 0
      %746 = vmatprep.subr.bf16.mxu0 0
      %747 = vmatpush1.bf16.msra.mxu0 0
      %748 = vmatprep.subr.bf16.mxu0 0
      %749 = vmatpush1.bf16.msra.mxu0 0
      %750 = vmatprep.subr.bf16.mxu0 0
      %751 = vmatpush1.bf16.msra.mxu0 0
      %752 = vmatprep.subr.bf16.mxu0 0
      %753 = vmatpush1.bf16.msra.mxu0 0
      %754 = vmatprep.subr.bf16.mxu0 0
      %755 = vmatpush1.bf16.msra.mxu0 0
      %756 = vmatprep.mubr.bf16.mxu0 0
      %757 = vmatmul.mubr.bf16.gmra.mrb[0].mxu0 %v400
      %v758 = vpop.f32.mrb[0].mxu0
      %v759 = vadd.f32 0.0, %v758
      %v760 = vpop.f32.mrb[0].mxu0
      %v761 = vpop.f32.mrb[0].mxu0
      %v762 = vadd.f32 0.0, %v761
      %v763 = vpop.f32.mrb[0].mxu0
      %764 = vmatprep.mubr.bf16.mxu0 0
      %765 = vmatmul.mubr.bf16.gmra.mrb[0].mxu0 %v403
      %v766 = vpop.f32.mrb[0].mxu0
      %v767 = vadd.f32 0.0, %v766
      %v768 = vpop.f32.mrb[0].mxu0
      %v769 = vpop.f32.mrb[0].mxu0
      %v770 = vadd.f32 0.0, %v769
      %v771 = vpop.f32.mrb[0].mxu0
      %772 = vmatprep.mubr.bf16.mxu0 0
      %773 = vmatmul.mubr.bf16.gmra.mrb[0].mxu0 %v406
      %v774 = vpop.f32.mrb[0].mxu0
      %v775 = vadd.f32 0.0, %v774
      %v776 = vpop.f32.mrb[0].mxu0
      %v777 = vpop.f32.mrb[0].mxu0
      %v778 = vadd.f32 0.0, %v777
      %v779 = vpop.f32.mrb[0].mxu0
      %780 = vmatprep.mubr.bf16.mxu0 0
      %781 = vmatmul.mubr.bf16.gmra.mrb[0].mxu0 %v409
      %v782 = vpop.f32.mrb[0].mxu0
      %v783 = vadd.f32 0.0, %v782
      %v784 = vpop.f32.mrb[0].mxu0
      %v785 = vpop.f32.mrb[0].mxu0
      %v786 = vadd.f32 0.0, %v785
      %v787 = vpop.f32.mrb[0].mxu0
      %788 = vmatprep.mubr.bf16.mxu0 0
      %789 = vmatmul.mubr.bf16.gmra.mrb[0].mxu0 %v412
      %v790 = vpop.f32.mrb[0].mxu0
      %v791 = vadd.f32 0.0, %v790
      %v792 = vpop.f32.mrb[0].mxu0
      %v793 = vpop.f32.mrb[0].mxu0
      %v794 = vadd.f32 0.0, %v793
      %v795 = vpop.f32.mrb[0].mxu0
      %796 = vmatprep.mubr.bf16.mxu0 0
      %797 = vmatmul.mubr.bf16.gmra.mrb[0].mxu0 %v415
      %v798 = vpop.f32.mrb[0].mxu0
      %v799 = vadd.f32 0.0, %v798
      %v800 = vpop.f32.mrb[0].mxu0
      %v801 = vpop.f32.mrb[0].mxu0
      %v802 = vadd.f32 0.0, %v801
      %v803 = vpop.f32.mrb[0].mxu0
      %804 = vdwg.mxu0
      %v805 = vld [vmem:[#allocation2] sm:$0xff]
      %v806 = vld [vmem:[#allocation2 + $0x8] sm:$0xff]
      %v807 = vld [vmem:[#allocation2 + $0x10] sm:$0xff]
      %v808 = vld [vmem:[#allocation2 + $0x18] sm:$0xff]
      %v809 = vld [vmem:[#allocation2 + $0x20] sm:$0xff]
      %v810 = vld [vmem:[#allocation2 + $0x28] sm:$0xff]
      %v811 = vld [vmem:[#allocation2 + $0x30] sm:$0xff]
      %v812 = vld [vmem:[#allocation2 + $0x38] sm:$0xff]
      %v813 = vld [vmem:[#allocation2 + $0x40] sm:$0xff]
      %v814 = vld [vmem:[#allocation2 + $0x48] sm:$0xff]
      %v815 = vld [vmem:[#allocation2 + $0x50] sm:$0xff]
      %v816 = vld [vmem:[#allocation2 + $0x58] sm:$0xff]
      %v823 = vrot.slane %v762, 6
      %v824 = vrot.slane %v770, 6
      %v825 = vrot.slane %v778, 6
      %v826 = vrot.slane %v786, 6
      %v827 = vrot.slane %v794, 6
      %v828 = vrot.slane %v802, 6
      %vm841 = vcmask 1041408
      %v842 = vrot.slane %v759, 6
      %v843 = vsel %vm841, %v842, %v823
      %v844 = vrot.slane %v767, 6
      %v845 = vsel %vm841, %v844, %v824
      %v846 = vrot.slane %v775, 6
      %v847 = vsel %vm841, %v846, %v825
      %v848 = vrot.slane %v783, 6
      %v849 = vsel %vm841, %v848, %v826
      %v850 = vrot.slane %v791, 6
      %v851 = vsel %vm841, %v850, %v827
      %v852 = vrot.slane %v799, 6
      %v853 = vsel %vm841, %v852, %v828
      %v866 = vsel %vm841, %v823, %v842
      %v867 = vsel %vm841, %v824, %v844
      %v868 = vsel %vm841, %v825, %v846
      %v869 = vsel %vm841, %v826, %v848
      %v870 = vsel %vm841, %v827, %v850
      %v871 = vsel %vm841, %v828, %v852
      %v872 = vadd.f32 %v805, %v866
      %v873 = vadd.f32 %v806, %v843
      %v874 = vadd.f32 %v807, %v867
      %v875 = vadd.f32 %v808, %v845
      %v876 = vadd.f32 %v809, %v868
      %v877 = vadd.f32 %v810, %v847
      %v878 = vadd.f32 %v811, %v869
      %v879 = vadd.f32 %v812, %v849
      %v880 = vadd.f32 %v813, %v870
      %v881 = vadd.f32 %v814, %v851
      %v882 = vadd.f32 %v815, %v871
      %v883 = vadd.f32 %v816, %v853
      %884 = vst.msk [vmem:[#allocation2] sm:$0xff] %vm398, %v872
      %885 = vst.msk [vmem:[#allocation2 + $0x8] sm:$0xff] %vm398, %v873
      %886 = vst.msk [vmem:[#allocation2 + $0x10] sm:$0xff] %vm398, %v874
      %887 = vst.msk [vmem:[#allocation2 + $0x18] sm:$0xff] %vm398, %v875
      %888 = vst.msk [vmem:[#allocation2 + $0x20] sm:$0xff] %vm398, %v876
      %889 = vst.msk [vmem:[#allocation2 + $0x28] sm:$0xff] %vm398, %v877
      %890 = vst.msk [vmem:[#allocation2 + $0x30] sm:$0xff] %vm398, %v878
      %891 = vst.msk [vmem:[#allocation2 + $0x38] sm:$0xff] %vm398, %v879
      %892 = vst.msk [vmem:[#allocation2 + $0x40] sm:$0xff] %vm398, %v880
      %893 = vst.msk [vmem:[#allocation2 + $0x48] sm:$0xff] %vm398, %v881
      %894 = vst.msk [vmem:[#allocation2 + $0x50] sm:$0xff] %vm398, %v882
      %895 = vst.msk [vmem:[#allocation2 + $0x58] sm:$0xff] %vm398, %v883
      %s896 = scalar_lea.vmem %s297, 24
      %v897 = vld [vmem:[%s896] sm:$0xf]
      %v898 = vld [vmem:[%s896 + $0x4] sm:$0xf]
      %v901 = vunpack.c.l.b16 %v897
      %v902 = vunpack.c.l.b16 %v898
      %v903 = vpack.c.b16 %v902, %v901
      %905 = vmatprep.subr.bf16.mxu0 0
      %906 = vmatpush1.bf16.msra.mxu0 %v903
      %907 = vmatprep.subr.bf16.mxu0 0
      %908 = vmatpush1.bf16.msra.mxu0 0
      %909 = vmatprep.subr.bf16.mxu0 0
      %910 = vmatpush1.bf16.msra.mxu0 0
      %911 = vmatprep.subr.bf16.mxu0 0
      %912 = vmatpush1.bf16.msra.mxu0 0
      %913 = vmatprep.subr.bf16.mxu0 0
      %914 = vmatpush1.bf16.msra.mxu0 0
      %915 = vmatprep.subr.bf16.mxu0 0
      %916 = vmatpush1.bf16.msra.mxu0 0
      %917 = vmatprep.subr.bf16.mxu0 0
      %918 = vmatpush1.bf16.msra.mxu0 0
      %919 = vmatprep.subr.bf16.mxu0 0
      %920 = vmatpush1.bf16.msra.mxu0 0
      %921 = vmatprep.subr.bf16.mxu0 0
      %922 = vmatpush1.bf16.msra.mxu0 0
      %923 = vmatprep.subr.bf16.mxu0 0
      %924 = vmatpush1.bf16.msra.mxu0 0
      %925 = vmatprep.subr.bf16.mxu0 0
      %926 = vmatpush1.bf16.msra.mxu0 0
      %927 = vmatprep.subr.bf16.mxu0 0
      %928 = vmatpush1.bf16.msra.mxu0 0
      %929 = vmatprep.subr.bf16.mxu0 0
      %930 = vmatpush1.bf16.msra.mxu0 0
      %931 = vmatprep.subr.bf16.mxu0 0
      %932 = vmatpush1.bf16.msra.mxu0 0
      %933 = vmatprep.subr.bf16.mxu0 0
      %934 = vmatpush1.bf16.msra.mxu0 0
      %935 = vmatprep.subr.bf16.mxu0 0
      %936 = vmatpush1.bf16.msra.mxu0 0
      %937 = vmatprep.mubr.bf16.mxu0 0
      %938 = vmatmul.mubr.bf16.gmra.mrb[0].mxu0 %v400
      %v939 = vpop.f32.mrb[0].mxu0
      %v940 = vadd.f32 0.0, %v939
      %v941 = vpop.f32.mrb[0].mxu0
      %v942 = vpop.f32.mrb[0].mxu0
      %v943 = vadd.f32 0.0, %v942
      %v944 = vpop.f32.mrb[0].mxu0
      %945 = vmatprep.mubr.bf16.mxu0 0
      %946 = vmatmul.mubr.bf16.gmra.mrb[0].mxu0 %v403
      %v947 = vpop.f32.mrb[0].mxu0
      %v948 = vadd.f32 0.0, %v947
      %v949 = vpop.f32.mrb[0].mxu0
      %v950 = vpop.f32.mrb[0].mxu0
      %v951 = vadd.f32 0.0, %v950
      %v952 = vpop.f32.mrb[0].mxu0
      %953 = vmatprep.mubr.bf16.mxu0 0
      %954 = vmatmul.mubr.bf16.gmra.mrb[0].mxu0 %v406
      %v955 = vpop.f32.mrb[0].mxu0
      %v956 = vadd.f32 0.0, %v955
      %v957 = vpop.f32.mrb[0].mxu0
      %v958 = vpop.f32.mrb[0].mxu0
      %v959 = vadd.f32 0.0, %v958
      %v960 = vpop.f32.mrb[0].mxu0
      %961 = vmatprep.mubr.bf16.mxu0 0
      %962 = vmatmul.mubr.bf16.gmra.mrb[0].mxu0 %v409
      %v963 = vpop.f32.mrb[0].mxu0
      %v964 = vadd.f32 0.0, %v963
      %v965 = vpop.f32.mrb[0].mxu0
      %v966 = vpop.f32.mrb[0].mxu0
      %v967 = vadd.f32 0.0, %v966
      %v968 = vpop.f32.mrb[0].mxu0
      %969 = vmatprep.mubr.bf16.mxu0 0
      %970 = vmatmul.mubr.bf16.gmra.mrb[0].mxu0 %v412
      %v971 = vpop.f32.mrb[0].mxu0
      %v972 = vadd.f32 0.0, %v971
      %v973 = vpop.f32.mrb[0].mxu0
      %v974 = vpop.f32.mrb[0].mxu0
      %v975 = vadd.f32 0.0, %v974
      %v976 = vpop.f32.mrb[0].mxu0
      %977 = vmatprep.mubr.bf16.mxu0 0
      %978 = vmatmul.mubr.bf16.gmra.mrb[0].mxu0 %v415
      %v979 = vpop.f32.mrb[0].mxu0
      %v980 = vadd.f32 0.0, %v979
      %v981 = vpop.f32.mrb[0].mxu0
      %v982 = vpop.f32.mrb[0].mxu0
      %v983 = vadd.f32 0.0, %v982
      %v984 = vpop.f32.mrb[0].mxu0
      %985 = vdwg.mxu0
      %v986 = vld [vmem:[#allocation2] sm:$0xff]
      %v987 = vld [vmem:[#allocation2 + $0x8] sm:$0xff]
      %v988 = vld [vmem:[#allocation2 + $0x10] sm:$0xff]
      %v989 = vld [vmem:[#allocation2 + $0x18] sm:$0xff]
      %v990 = vld [vmem:[#allocation2 + $0x20] sm:$0xff]
      %v991 = vld [vmem:[#allocation2 + $0x28] sm:$0xff]
      %v992 = vld [vmem:[#allocation2 + $0x30] sm:$0xff]
      %v993 = vld [vmem:[#allocation2 + $0x38] sm:$0xff]
      %v994 = vld [vmem:[#allocation2 + $0x40] sm:$0xff]
      %v995 = vld [vmem:[#allocation2 + $0x48] sm:$0xff]
      %v996 = vld [vmem:[#allocation2 + $0x50] sm:$0xff]
      %v997 = vld [vmem:[#allocation2 + $0x58] sm:$0xff]
      %v1004 = vrot.slane %v943, 5
      %v1005 = vrot.slane %v951, 5
      %v1006 = vrot.slane %v959, 5
      %v1007 = vrot.slane %v967, 5
      %v1008 = vrot.slane %v975, 5
      %v1009 = vrot.slane %v983, 5
      %vm1022 = vcmask 1042432
      %v1023 = vrot.slane %v940, 5
      %v1024 = vsel %vm1022, %v1023, %v1004
      %v1025 = vrot.slane %v948, 5
      %v1026 = vsel %vm1022, %v1025, %v1005
      %v1027 = vrot.slane %v956, 5
      %v1028 = vsel %vm1022, %v1027, %v1006
      %v1029 = vrot.slane %v964, 5
      %v1030 = vsel %vm1022, %v1029, %v1007
      %v1031 = vrot.slane %v972, 5
      %v1032 = vsel %vm1022, %v1031, %v1008
      %v1033 = vrot.slane %v980, 5
      %v1034 = vsel %vm1022, %v1033, %v1009
      %v1047 = vsel %vm1022, %v1004, %v1023
      %v1048 = vsel %vm1022, %v1005, %v1025
      %v1049 = vsel %vm1022, %v1006, %v1027
      %v1050 = vsel %vm1022, %v1007, %v1029
      %v1051 = vsel %vm1022, %v1008, %v1031
      %v1052 = vsel %vm1022, %v1009, %v1033
      %v1053 = vadd.f32 %v986, %v1047
      %v1054 = vadd.f32 %v987, %v1024
      %v1055 = vadd.f32 %v988, %v1048
      %v1056 = vadd.f32 %v989, %v1026
      %v1057 = vadd.f32 %v990, %v1049
      %v1058 = vadd.f32 %v991, %v1028
      %v1059 = vadd.f32 %v992, %v1050
      %v1060 = vadd.f32 %v993, %v1030
      %v1061 = vadd.f32 %v994, %v1051
      %v1062 = vadd.f32 %v995, %v1032
      %v1063 = vadd.f32 %v996, %v1052
      %v1064 = vadd.f32 %v997, %v1034
      %1065 = vst.msk [vmem:[#allocation2] sm:$0xff] %vm398, %v1053
      %1066 = vst.msk [vmem:[#allocation2 + $0x8] sm:$0xff] %vm398, %v1054
      %1067 = vst.msk [vmem:[#allocation2 + $0x10] sm:$0xff] %vm398, %v1055
      %1068 = vst.msk [vmem:[#allocation2 + $0x18] sm:$0xff] %vm398, %v1056
      %1069 = vst.msk [vmem:[#allocation2 + $0x20] sm:$0xff] %vm398, %v1057
      %1070 = vst.msk [vmem:[#allocation2 + $0x28] sm:$0xff] %vm398, %v1058
      %1071 = vst.msk [vmem:[#allocation2 + $0x30] sm:$0xff] %vm398, %v1059
      %1072 = vst.msk [vmem:[#allocation2 + $0x38] sm:$0xff] %vm398, %v1060
      %1073 = vst.msk [vmem:[#allocation2 + $0x40] sm:$0xff] %vm398, %v1061
      %1074 = vst.msk [vmem:[#allocation2 + $0x48] sm:$0xff] %vm398, %v1062
      %1075 = vst.msk [vmem:[#allocation2 + $0x50] sm:$0xff] %vm398, %v1063
      %1076 = vst.msk [vmem:[#allocation2 + $0x58] sm:$0xff] %vm398, %v1064
      %s1077 = scalar_lea.vmem %s297, 32
      %v1078 = vld [vmem:[%s1077] sm:$0xf]
      %v1079 = vld [vmem:[%s1077 + $0x4] sm:$0xf]
      %v1082 = vunpack.c.l.b16 %v1078
      %v1083 = vunpack.c.l.b16 %v1079
      %v1084 = vpack.c.b16 %v1083, %v1082
      %1086 = vmatprep.subr.bf16.mxu0 0
      %1087 = vmatpush1.bf16.msra.mxu0 %v1084
      %1088 = vmatprep.subr.bf16.mxu0 0
      %1089 = vmatpush1.bf16.msra.mxu0 0
      %1090 = vmatprep.subr.bf16.mxu0 0
      %1091 = vmatpush1.bf16.msra.mxu0 0
      %1092 = vmatprep.subr.bf16.mxu0 0
      %1093 = vmatpush1.bf16.msra.mxu0 0
      %1094 = vmatprep.subr.bf16.mxu0 0
      %1095 = vmatpush1.bf16.msra.mxu0 0
      %1096 = vmatprep.subr.bf16.mxu0 0
      %1097 = vmatpush1.bf16.msra.mxu0 0
      %1098 = vmatprep.subr.bf16.mxu0 0
      %1099 = vmatpush1.bf16.msra.mxu0 0
      %1100 = vmatprep.subr.bf16.mxu0 0
      %1101 = vmatpush1.bf16.msra.mxu0 0
      %1102 = vmatprep.subr.bf16.mxu0 0
      %1103 = vmatpush1.bf16.msra.mxu0 0
      %1104 = vmatprep.subr.bf16.mxu0 0
      %1105 = vmatpush1.bf16.msra.mxu0 0
      %1106 = vmatprep.subr.bf16.mxu0 0
      %1107 = vmatpush1.bf16.msra.mxu0 0
      %1108 = vmatprep.subr.bf16.mxu0 0
      %1109 = vmatpush1.bf16.msra.mxu0 0
      %1110 = vmatprep.subr.bf16.mxu0 0
      %1111 = vmatpush1.bf16.msra.mxu0 0
      %1112 = vmatprep.subr.bf16.mxu0 0
      %1113 = vmatpush1.bf16.msra.mxu0 0
      %1114 = vmatprep.subr.bf16.mxu0 0
      %1115 = vmatpush1.bf16.msra.mxu0 0
      %1116 = vmatprep.subr.bf16.mxu0 0
      %1117 = vmatpush1.bf16.msra.mxu0 0
      %1118 = vmatprep.mubr.bf16.mxu0 0
      %1119 = vmatmul.mubr.bf16.gmra.mrb[0].mxu0 %v400
      %v1120 = vpop.f32.mrb[0].mxu0
      %v1121 = vadd.f32 0.0, %v1120
      %v1122 = vpop.f32.mrb[0].mxu0
      %v1123 = vpop.f32.mrb[0].mxu0
      %v1124 = vadd.f32 0.0, %v1123
      %v1125 = vpop.f32.mrb[0].mxu0
      %1126 = vmatprep.mubr.bf16.mxu0 0
      %1127 = vmatmul.mubr.bf16.gmra.mrb[0].mxu0 %v403
      %v1128 = vpop.f32.mrb[0].mxu0
      %v1129 = vadd.f32 0.0, %v1128
      %v1130 = vpop.f32.mrb[0].mxu0
      %v1131 = vpop.f32.mrb[0].mxu0
      %v1132 = vadd.f32 0.0, %v1131
      %v1133 = vpop.f32.mrb[0].mxu0
      %1134 = vmatprep.mubr.bf16.mxu0 0
      %1135 = vmatmul.mubr.bf16.gmra.mrb[0].mxu0 %v406
      %v1136 = vpop.f32.mrb[0].mxu0
      %v1137 = vadd.f32 0.0, %v1136
      %v1138 = vpop.f32.mrb[0].mxu0
      %v1139 = vpop.f32.mrb[0].mxu0
      %v1140 = vadd.f32 0.0, %v1139
      %v1141 = vpop.f32.mrb[0].mxu0
      %1142 = vmatprep.mubr.bf16.mxu0 0
      %1143 = vmatmul.mubr.bf16.gmra.mrb[0].mxu0 %v409
      %v1144 = vpop.f32.mrb[0].mxu0
      %v1145 = vadd.f32 0.0, %v1144
      %v1146 = vpop.f32.mrb[0].mxu0
      %v1147 = vpop.f32.mrb[0].mxu0
      %v1148 = vadd.f32 0.0, %v1147
      %v1149 = vpop.f32.mrb[0].mxu0
      %1150 = vmatprep.mubr.bf16.mxu0 0
      %1151 = vmatmul.mubr.bf16.gmra.mrb[0].mxu0 %v412
      %v1152 = vpop.f32.mrb[0].mxu0
      %v1153 = vadd.f32 0.0, %v1152
      %v1154 = vpop.f32.mrb[0].mxu0
      %v1155 = vpop.f32.mrb[0].mxu0
      %v1156 = vadd.f32 0.0, %v1155
      %v1157 = vpop.f32.mrb[0].mxu0
      %1158 = vmatprep.mubr.bf16.mxu0 0
      %1159 = vmatmul.mubr.bf16.gmra.mrb[0].mxu0 %v415
      %v1160 = vpop.f32.mrb[0].mxu0
      %v1161 = vadd.f32 0.0, %v1160
      %v1162 = vpop.f32.mrb[0].mxu0
      %v1163 = vpop.f32.mrb[0].mxu0
      %v1164 = vadd.f32 0.0, %v1163
      %v1165 = vpop.f32.mrb[0].mxu0
      %1166 = vdwg.mxu0
      %v1167 = vld [vmem:[#allocation2] sm:$0xff]
      %v1168 = vld [vmem:[#allocation2 + $0x8] sm:$0xff]
      %v1169 = vld [vmem:[#allocation2 + $0x10] sm:$0xff]
      %v1170 = vld [vmem:[#allocation2 + $0x18] sm:$0xff]
      %v1171 = vld [vmem:[#allocation2 + $0x20] sm:$0xff]
      %v1172 = vld [vmem:[#allocation2 + $0x28] sm:$0xff]
      %v1173 = vld [vmem:[#allocation2 + $0x30] sm:$0xff]
      %v1174 = vld [vmem:[#allocation2 + $0x38] sm:$0xff]
      %v1175 = vld [vmem:[#allocation2 + $0x40] sm:$0xff]
      %v1176 = vld [vmem:[#allocation2 + $0x48] sm:$0xff]
      %v1177 = vld [vmem:[#allocation2 + $0x50] sm:$0xff]
      %v1178 = vld [vmem:[#allocation2 + $0x58] sm:$0xff]
      %v1185 = vrot.slane %v1124, 4
      %v1186 = vrot.slane %v1132, 4
      %v1187 = vrot.slane %v1140, 4
      %v1188 = vrot.slane %v1148, 4
      %v1189 = vrot.slane %v1156, 4
      %v1190 = vrot.slane %v1164, 4
      %vm1203 = vcmask 1043456
      %v1204 = vrot.slane %v1121, 4
      %v1205 = vsel %vm1203, %v1204, %v1185
      %v1206 = vrot.slane %v1129, 4
      %v1207 = vsel %vm1203, %v1206, %v1186
      %v1208 = vrot.slane %v1137, 4
      %v1209 = vsel %vm1203, %v1208, %v1187
      %v1210 = vrot.slane %v1145, 4
      %v1211 = vsel %vm1203, %v1210, %v1188
      %v1212 = vrot.slane %v1153, 4
      %v1213 = vsel %vm1203, %v1212, %v1189
      %v1214 = vrot.slane %v1161, 4
      %v1215 = vsel %vm1203, %v1214, %v1190
      %v1228 = vsel %vm1203, %v1185, %v1204
      %v1229 = vsel %vm1203, %v1186, %v1206
      %v1230 = vsel %vm1203, %v1187, %v1208
      %v1231 = vsel %vm1203, %v1188, %v1210
      %v1232 = vsel %vm1203, %v1189, %v1212
      %v1233 = vsel %vm1203, %v1190, %v1214
      %v1234 = vadd.f32 %v1167, %v1228
      %v1235 = vadd.f32 %v1168, %v1205
      %v1236 = vadd.f32 %v1169, %v1229
      %v1237 = vadd.f32 %v1170, %v1207
      %v1238 = vadd.f32 %v1171, %v1230
      %v1239 = vadd.f32 %v1172, %v1209
      %v1240 = vadd.f32 %v1173, %v1231
      %v1241 = vadd.f32 %v1174, %v1211
      %v1242 = vadd.f32 %v1175, %v1232
      %v1243 = vadd.f32 %v1176, %v1213
      %v1244 = vadd.f32 %v1177, %v1233
      %v1245 = vadd.f32 %v1178, %v1215
      %1246 = vst.msk [vmem:[#allocation2] sm:$0xff] %vm398, %v1234
      %1247 = vst.msk [vmem:[#allocation2 + $0x8] sm:$0xff] %vm398, %v1235
      %1248 = vst.msk [vmem:[#allocation2 + $0x10] sm:$0xff] %vm398, %v1236
      %1249 = vst.msk [vmem:[#allocation2 + $0x18] sm:$0xff] %vm398, %v1237
      %1250 = vst.msk [vmem:[#allocation2 + $0x20] sm:$0xff] %vm398, %v1238
      %1251 = vst.msk [vmem:[#allocation2 + $0x28] sm:$0xff] %vm398, %v1239
      %1252 = vst.msk [vmem:[#allocation2 + $0x30] sm:$0xff] %vm398, %v1240
      %1253 = vst.msk [vmem:[#allocation2 + $0x38] sm:$0xff] %vm398, %v1241
      %1254 = vst.msk [vmem:[#allocation2 + $0x40] sm:$0xff] %vm398, %v1242
      %1255 = vst.msk [vmem:[#allocation2 + $0x48] sm:$0xff] %vm398, %v1243
      %1256 = vst.msk [vmem:[#allocation2 + $0x50] sm:$0xff] %vm398, %v1244
      %1257 = vst.msk [vmem:[#allocation2 + $0x58] sm:$0xff] %vm398, %v1245
      %s1258 = scalar_lea.vmem %s297, 40
      %v1259 = vld [vmem:[%s1258] sm:$0xf]
      %v1260 = vld [vmem:[%s1258 + $0x4] sm:$0xf]
      %v1263 = vunpack.c.l.b16 %v1259
      %v1264 = vunpack.c.l.b16 %v1260
      %v1265 = vpack.c.b16 %v1264, %v1263
      %1267 = vmatprep.subr.bf16.mxu0 0
      %1268 = vmatpush1.bf16.msra.mxu0 %v1265
      %1269 = vmatprep.subr.bf16.mxu0 0
      %1270 = vmatpush1.bf16.msra.mxu0 0
      %1271 = vmatprep.subr.bf16.mxu0 0
      %1272 = vmatpush1.bf16.msra.mxu0 0
      %1273 = vmatprep.subr.bf16.mxu0 0
      %1274 = vmatpush1.bf16.msra.mxu0 0
      %1275 = vmatprep.subr.bf16.mxu0 0
      %1276 = vmatpush1.bf16.msra.mxu0 0
      %1277 = vmatprep.subr.bf16.mxu0 0
      %1278 = vmatpush1.bf16.msra.mxu0 0
      %1279 = vmatprep.subr.bf16.mxu0 0
      %1280 = vmatpush1.bf16.msra.mxu0 0
      %1281 = vmatprep.subr.bf16.mxu0 0
      %1282 = vmatpush1.bf16.msra.mxu0 0
      %1283 = vmatprep.subr.bf16.mxu0 0
      %1284 = vmatpush1.bf16.msra.mxu0 0
      %1285 = vmatprep.subr.bf16.mxu0 0
      %1286 = vmatpush1.bf16.msra.mxu0 0
      %1287 = vmatprep.subr.bf16.mxu0 0
      %1288 = vmatpush1.bf16.msra.mxu0 0
      %1289 = vmatprep.subr.bf16.mxu0 0
      %1290 = vmatpush1.bf16.msra.mxu0 0
      %1291 = vmatprep.subr.bf16.mxu0 0
      %1292 = vmatpush1.bf16.msra.mxu0 0
      %1293 = vmatprep.subr.bf16.mxu0 0
      %1294 = vmatpush1.bf16.msra.mxu0 0
      %1295 = vmatprep.subr.bf16.mxu0 0
      %1296 = vmatpush1.bf16.msra.mxu0 0
      %1297 = vmatprep.subr.bf16.mxu0 0
      %1298 = vmatpush1.bf16.msra.mxu0 0
      %1299 = vmatprep.mubr.bf16.mxu0 0
      %1300 = vmatmul.mubr.bf16.gmra.mrb[0].mxu0 %v400
      %v1301 = vpop.f32.mrb[0].mxu0
      %v1302 = vadd.f32 0.0, %v1301
      %v1303 = vpop.f32.mrb[0].mxu0
      %v1304 = vpop.f32.mrb[0].mxu0
      %v1305 = vadd.f32 0.0, %v1304
      %v1306 = vpop.f32.mrb[0].mxu0
      %1307 = vmatprep.mubr.bf16.mxu0 0
      %1308 = vmatmul.mubr.bf16.gmra.mrb[0].mxu0 %v403
      %v1309 = vpop.f32.mrb[0].mxu0
      %v1310 = vadd.f32 0.0, %v1309
      %v1311 = vpop.f32.mrb[0].mxu0
      %v1312 = vpop.f32.mrb[0].mxu0
      %v1313 = vadd.f32 0.0, %v1312
      %v1314 = vpop.f32.mrb[0].mxu0
      %1315 = vmatprep.mubr.bf16.mxu0 0
      %1316 = vmatmul.mubr.bf16.gmra.mrb[0].mxu0 %v406
      %v1317 = vpop.f32.mrb[0].mxu0
      %v1318 = vadd.f32 0.0, %v1317
      %v1319 = vpop.f32.mrb[0].mxu0
      %v1320 = vpop.f32.mrb[0].mxu0
      %v1321 = vadd.f32 0.0, %v1320
      %v1322 = vpop.f32.mrb[0].mxu0
      %1323 = vmatprep.mubr.bf16.mxu0 0
      %1324 = vmatmul.mubr.bf16.gmra.mrb[0].mxu0 %v409
      %v1325 = vpop.f32.mrb[0].mxu0
      %v1326 = vadd.f32 0.0, %v1325
      %v1327 = vpop.f32.mrb[0].mxu0
      %v1328 = vpop.f32.mrb[0].mxu0
      %v1329 = vadd.f32 0.0, %v1328
      %v1330 = vpop.f32.mrb[0].mxu0
      %1331 = vmatprep.mubr.bf16.mxu0 0
      %1332 = vmatmul.mubr.bf16.gmra.mrb[0].mxu0 %v412
      %v1333 = vpop.f32.mrb[0].mxu0
      %v1334 = vadd.f32 0.0, %v1333
      %v1335 = vpop.f32.mrb[0].mxu0
      %v1336 = vpop.f32.mrb[0].mxu0
      %v1337 = vadd.f32 0.0, %v1336
      %v1338 = vpop.f32.mrb[0].mxu0
      %1339 = vmatprep.mubr.bf16.mxu0 0
      %1340 = vmatmul.mubr.bf16.gmra.mrb[0].mxu0 %v415
      %v1341 = vpop.f32.mrb[0].mxu0
      %v1342 = vadd.f32 0.0, %v1341
      %v1343 = vpop.f32.mrb[0].mxu0
      %v1344 = vpop.f32.mrb[0].mxu0
      %v1345 = vadd.f32 0.0, %v1344
      %v1346 = vpop.f32.mrb[0].mxu0
      %1347 = vdwg.mxu0
      %v1348 = vld [vmem:[#allocation2] sm:$0xff]
      %v1349 = vld [vmem:[#allocation2 + $0x8] sm:$0xff]
      %v1350 = vld [vmem:[#allocation2 + $0x10] sm:$0xff]
      %v1351 = vld [vmem:[#allocation2 + $0x18] sm:$0xff]
      %v1352 = vld [vmem:[#allocation2 + $0x20] sm:$0xff]
      %v1353 = vld [vmem:[#allocation2 + $0x28] sm:$0xff]
      %v1354 = vld [vmem:[#allocation2 + $0x30] sm:$0xff]
      %v1355 = vld [vmem:[#allocation2 + $0x38] sm:$0xff]
      %v1356 = vld [vmem:[#allocation2 + $0x40] sm:$0xff]
      %v1357 = vld [vmem:[#allocation2 + $0x48] sm:$0xff]
      %v1358 = vld [vmem:[#allocation2 + $0x50] sm:$0xff]
      %v1359 = vld [vmem:[#allocation2 + $0x58] sm:$0xff]
      %v1366 = vrot.slane %v1305, 3
      %v1367 = vrot.slane %v1313, 3
      %v1368 = vrot.slane %v1321, 3
      %v1369 = vrot.slane %v1329, 3
      %v1370 = vrot.slane %v1337, 3
      %v1371 = vrot.slane %v1345, 3
      %vm1384 = vcmask 1044480
      %v1385 = vrot.slane %v1302, 3
      %v1386 = vsel %vm1384, %v1385, %v1366
      %v1387 = vrot.slane %v1310, 3
      %v1388 = vsel %vm1384, %v1387, %v1367
      %v1389 = vrot.slane %v1318, 3
      %v1390 = vsel %vm1384, %v1389, %v1368
      %v1391 = vrot.slane %v1326, 3
      %v1392 = vsel %vm1384, %v1391, %v1369
      %v1393 = vrot.slane %v1334, 3
      %v1394 = vsel %vm1384, %v1393, %v1370
      %v1395 = vrot.slane %v1342, 3
      %v1396 = vsel %vm1384, %v1395, %v1371
      %v1409 = vsel %vm1384, %v1366, %v1385
      %v1410 = vsel %vm1384, %v1367, %v1387
      %v1411 = vsel %vm1384, %v1368, %v1389
      %v1412 = vsel %vm1384, %v1369, %v1391
      %v1413 = vsel %vm1384, %v1370, %v1393
      %v1414 = vsel %vm1384, %v1371, %v1395
      %v1415 = vadd.f32 %v1348, %v1409
      %v1416 = vadd.f32 %v1349, %v1386
      %v1417 = vadd.f32 %v1350, %v1410
      %v1418 = vadd.f32 %v1351, %v1388
      %v1419 = vadd.f32 %v1352, %v1411
      %v1420 = vadd.f32 %v1353, %v1390
      %v1421 = vadd.f32 %v1354, %v1412
      %v1422 = vadd.f32 %v1355, %v1392
      %v1423 = vadd.f32 %v1356, %v1413
      %v1424 = vadd.f32 %v1357, %v1394
      %v1425 = vadd.f32 %v1358, %v1414
      %v1426 = vadd.f32 %v1359, %v1396
      %1427 = vst.msk [vmem:[#allocation2] sm:$0xff] %vm398, %v1415
      %1428 = vst.msk [vmem:[#allocation2 + $0x8] sm:$0xff] %vm398, %v1416
      %1429 = vst.msk [vmem:[#allocation2 + $0x10] sm:$0xff] %vm398, %v1417
      %1430 = vst.msk [vmem:[#allocation2 + $0x18] sm:$0xff] %vm398, %v1418
      %1431 = vst.msk [vmem:[#allocation2 + $0x20] sm:$0xff] %vm398, %v1419
      %1432 = vst.msk [vmem:[#allocation2 + $0x28] sm:$0xff] %vm398, %v1420
      %1433 = vst.msk [vmem:[#allocation2 + $0x30] sm:$0xff] %vm398, %v1421
      %1434 = vst.msk [vmem:[#allocation2 + $0x38] sm:$0xff] %vm398, %v1422
      %1435 = vst.msk [vmem:[#allocation2 + $0x40] sm:$0xff] %vm398, %v1423
      %1436 = vst.msk [vmem:[#allocation2 + $0x48] sm:$0xff] %vm398, %v1424
      %1437 = vst.msk [vmem:[#allocation2 + $0x50] sm:$0xff] %vm398, %v1425
      %1438 = vst.msk [vmem:[#allocation2 + $0x58] sm:$0xff] %vm398, %v1426
      %s1439 = scalar_lea.vmem %s297, 48
      %v1440 = vld [vmem:[%s1439] sm:$0xf]
      %v1441 = vld [vmem:[%s1439 + $0x4] sm:$0xf]
      %v1444 = vunpack.c.l.b16 %v1440
      %v1445 = vunpack.c.l.b16 %v1441
      %v1446 = vpack.c.b16 %v1445, %v1444
      %1448 = vmatprep.subr.bf16.mxu0 0
      %1449 = vmatpush1.bf16.msra.mxu0 %v1446
      %1450 = vmatprep.subr.bf16.mxu0 0
      %1451 = vmatpush1.bf16.msra.mxu0 0
      %1452 = vmatprep.subr.bf16.mxu0 0
      %1453 = vmatpush1.bf16.msra.mxu0 0
      %1454 = vmatprep.subr.bf16.mxu0 0
      %1455 = vmatpush1.bf16.msra.mxu0 0
      %1456 = vmatprep.subr.bf16.mxu0 0
      %1457 = vmatpush1.bf16.msra.mxu0 0
      %1458 = vmatprep.subr.bf16.mxu0 0
      %1459 = vmatpush1.bf16.msra.mxu0 0
      %1460 = vmatprep.subr.bf16.mxu0 0
      %1461 = vmatpush1.bf16.msra.mxu0 0
      %1462 = vmatprep.subr.bf16.mxu0 0
      %1463 = vmatpush1.bf16.msra.mxu0 0
      %1464 = vmatprep.subr.bf16.mxu0 0
      %1465 = vmatpush1.bf16.msra.mxu0 0
      %1466 = vmatprep.subr.bf16.mxu0 0
      %1467 = vmatpush1.bf16.msra.mxu0 0
      %1468 = vmatprep.subr.bf16.mxu0 0
      %1469 = vmatpush1.bf16.msra.mxu0 0
      %1470 = vmatprep.subr.bf16.mxu0 0
      %1471 = vmatpush1.bf16.msra.mxu0 0
      %1472 = vmatprep.subr.bf16.mxu0 0
      %1473 = vmatpush1.bf16.msra.mxu0 0
      %1474 = vmatprep.subr.bf16.mxu0 0
      %1475 = vmatpush1.bf16.msra.mxu0 0
      %1476 = vmatprep.subr.bf16.mxu0 0
      %1477 = vmatpush1.bf16.msra.mxu0 0
      %1478 = vmatprep.subr.bf16.mxu0 0
      %1479 = vmatpush1.bf16.msra.mxu0 0
      %1480 = vmatprep.mubr.bf16.mxu0 0
      %1481 = vmatmul.mubr.bf16.gmra.mrb[0].mxu0 %v400
      %v1482 = vpop.f32.mrb[0].mxu0
      %v1483 = vadd.f32 0.0, %v1482
      %v1484 = vpop.f32.mrb[0].mxu0
      %v1485 = vpop.f32.mrb[0].mxu0
      %v1486 = vadd.f32 0.0, %v1485
      %v1487 = vpop.f32.mrb[0].mxu0
      %1488 = vmatprep.mubr.bf16.mxu0 0
      %1489 = vmatmul.mubr.bf16.gmra.mrb[0].mxu0 %v403
      %v1490 = vpop.f32.mrb[0].mxu0
      %v1491 = vadd.f32 0.0, %v1490
      %v1492 = vpop.f32.mrb[0].mxu0
      %v1493 = vpop.f32.mrb[0].mxu0
      %v1494 = vadd.f32 0.0, %v1493
      %v1495 = vpop.f32.mrb[0].mxu0
      %1496 = vmatprep.mubr.bf16.mxu0 0
      %1497 = vmatmul.mubr.bf16.gmra.mrb[0].mxu0 %v406
      %v1498 = vpop.f32.mrb[0].mxu0
      %v1499 = vadd.f32 0.0, %v1498
      %v1500 = vpop.f32.mrb[0].mxu0
      %v1501 = vpop.f32.mrb[0].mxu0
      %v1502 = vadd.f32 0.0, %v1501
      %v1503 = vpop.f32.mrb[0].mxu0
      %1504 = vmatprep.mubr.bf16.mxu0 0
      %1505 = vmatmul.mubr.bf16.gmra.mrb[0].mxu0 %v409
      %v1506 = vpop.f32.mrb[0].mxu0
      %v1507 = vadd.f32 0.0, %v1506
      %v1508 = vpop.f32.mrb[0].mxu0
      %v1509 = vpop.f32.mrb[0].mxu0
      %v1510 = vadd.f32 0.0, %v1509
      %v1511 = vpop.f32.mrb[0].mxu0
      %1512 = vmatprep.mubr.bf16.mxu0 0
      %1513 = vmatmul.mubr.bf16.gmra.mrb[0].mxu0 %v412
      %v1514 = vpop.f32.mrb[0].mxu0
      %v1515 = vadd.f32 0.0, %v1514
      %v1516 = vpop.f32.mrb[0].mxu0
      %v1517 = vpop.f32.mrb[0].mxu0
      %v1518 = vadd.f32 0.0, %v1517
      %v1519 = vpop.f32.mrb[0].mxu0
      %1520 = vmatprep.mubr.bf16.mxu0 0
      %1521 = vmatmul.mubr.bf16.gmra.mrb[0].mxu0 %v415
      %v1522 = vpop.f32.mrb[0].mxu0
      %v1523 = vadd.f32 0.0, %v1522
      %v1524 = vpop.f32.mrb[0].mxu0
      %v1525 = vpop.f32.mrb[0].mxu0
      %v1526 = vadd.f32 0.0, %v1525
      %v1527 = vpop.f32.mrb[0].mxu0
      %1528 = vdwg.mxu0
      %v1529 = vld [vmem:[#allocation2] sm:$0xff]
      %v1530 = vld [vmem:[#allocation2 + $0x8] sm:$0xff]
      %v1531 = vld [vmem:[#allocation2 + $0x10] sm:$0xff]
      %v1532 = vld [vmem:[#allocation2 + $0x18] sm:$0xff]
      %v1533 = vld [vmem:[#allocation2 + $0x20] sm:$0xff]
      %v1534 = vld [vmem:[#allocation2 + $0x28] sm:$0xff]
      %v1535 = vld [vmem:[#allocation2 + $0x30] sm:$0xff]
      %v1536 = vld [vmem:[#allocation2 + $0x38] sm:$0xff]
      %v1537 = vld [vmem:[#allocation2 + $0x40] sm:$0xff]
      %v1538 = vld [vmem:[#allocation2 + $0x48] sm:$0xff]
      %v1539 = vld [vmem:[#allocation2 + $0x50] sm:$0xff]
      %v1540 = vld [vmem:[#allocation2 + $0x58] sm:$0xff]
      %v1547 = vrot.slane %v1486, 2
      %v1548 = vrot.slane %v1494, 2
      %v1549 = vrot.slane %v1502, 2
      %v1550 = vrot.slane %v1510, 2
      %v1551 = vrot.slane %v1518, 2
      %v1552 = vrot.slane %v1526, 2
      %vm1565 = vcmask 1045504
      %v1566 = vrot.slane %v1483, 2
      %v1567 = vsel %vm1565, %v1566, %v1547
      %v1568 = vrot.slane %v1491, 2
      %v1569 = vsel %vm1565, %v1568, %v1548
      %v1570 = vrot.slane %v1499, 2
      %v1571 = vsel %vm1565, %v1570, %v1549
      %v1572 = vrot.slane %v1507, 2
      %v1573 = vsel %vm1565, %v1572, %v1550
      %v1574 = vrot.slane %v1515, 2
      %v1575 = vsel %vm1565, %v1574, %v1551
      %v1576 = vrot.slane %v1523, 2
      %v1577 = vsel %vm1565, %v1576, %v1552
      %v1590 = vsel %vm1565, %v1547, %v1566
      %v1591 = vsel %vm1565, %v1548, %v1568
      %v1592 = vsel %vm1565, %v1549, %v1570
      %v1593 = vsel %vm1565, %v1550, %v1572
      %v1594 = vsel %vm1565, %v1551, %v1574
      %v1595 = vsel %vm1565, %v1552, %v1576
      %v1596 = vadd.f32 %v1529, %v1590
      %v1597 = vadd.f32 %v1530, %v1567
      %v1598 = vadd.f32 %v1531, %v1591
      %v1599 = vadd.f32 %v1532, %v1569
      %v1600 = vadd.f32 %v1533, %v1592
      %v1601 = vadd.f32 %v1534, %v1571
      %v1602 = vadd.f32 %v1535, %v1593
      %v1603 = vadd.f32 %v1536, %v1573
      %v1604 = vadd.f32 %v1537, %v1594
      %v1605 = vadd.f32 %v1538, %v1575
      %v1606 = vadd.f32 %v1539, %v1595
      %v1607 = vadd.f32 %v1540, %v1577
      %1608 = vst.msk [vmem:[#allocation2] sm:$0xff] %vm398, %v1596
      %1609 = vst.msk [vmem:[#allocation2 + $0x8] sm:$0xff] %vm398, %v1597
      %1610 = vst.msk [vmem:[#allocation2 + $0x10] sm:$0xff] %vm398, %v1598
      %1611 = vst.msk [vmem:[#allocation2 + $0x18] sm:$0xff] %vm398, %v1599
      %1612 = vst.msk [vmem:[#allocation2 + $0x20] sm:$0xff] %vm398, %v1600
      %1613 = vst.msk [vmem:[#allocation2 + $0x28] sm:$0xff] %vm398, %v1601
      %1614 = vst.msk [vmem:[#allocation2 + $0x30] sm:$0xff] %vm398, %v1602
      %1615 = vst.msk [vmem:[#allocation2 + $0x38] sm:$0xff] %vm398, %v1603
      %1616 = vst.msk [vmem:[#allocation2 + $0x40] sm:$0xff] %vm398, %v1604
      %1617 = vst.msk [vmem:[#allocation2 + $0x48] sm:$0xff] %vm398, %v1605
      %1618 = vst.msk [vmem:[#allocation2 + $0x50] sm:$0xff] %vm398, %v1606
      %1619 = vst.msk [vmem:[#allocation2 + $0x58] sm:$0xff] %vm398, %v1607
      %s1620 = scalar_lea.vmem %s297, 56
      %v1621 = vld [vmem:[%s1620] sm:$0xf]
      %v1622 = vld [vmem:[%s1620 + $0x4] sm:$0xf]
      %v1625 = vunpack.c.l.b16 %v1621
      %v1626 = vunpack.c.l.b16 %v1622
      %v1627 = vpack.c.b16 %v1626, %v1625
      %1629 = vmatprep.subr.bf16.mxu0 0
      %1630 = vmatpush1.bf16.msra.mxu0 %v1627
      %1631 = vmatprep.subr.bf16.mxu0 0
      %1632 = vmatpush1.bf16.msra.mxu0 0
      %1633 = vmatprep.subr.bf16.mxu0 0
      %1634 = vmatpush1.bf16.msra.mxu0 0
      %1635 = vmatprep.subr.bf16.mxu0 0
      %1636 = vmatpush1.bf16.msra.mxu0 0
      %1637 = vmatprep.subr.bf16.mxu0 0
      %1638 = vmatpush1.bf16.msra.mxu0 0
      %1639 = vmatprep.subr.bf16.mxu0 0
      %1640 = vmatpush1.bf16.msra.mxu0 0
      %1641 = vmatprep.subr.bf16.mxu0 0
      %1642 = vmatpush1.bf16.msra.mxu0 0
      %1643 = vmatprep.subr.bf16.mxu0 0
      %1644 = vmatpush1.bf16.msra.mxu0 0
      %1645 = vmatprep.subr.bf16.mxu0 0
      %1646 = vmatpush1.bf16.msra.mxu0 0
      %1647 = vmatprep.subr.bf16.mxu0 0
      %1648 = vmatpush1.bf16.msra.mxu0 0
      %1649 = vmatprep.subr.bf16.mxu0 0
      %1650 = vmatpush1.bf16.msra.mxu0 0
      %1651 = vmatprep.subr.bf16.mxu0 0
      %1652 = vmatpush1.bf16.msra.mxu0 0
      %1653 = vmatprep.subr.bf16.mxu0 0
      %1654 = vmatpush1.bf16.msra.mxu0 0
      %1655 = vmatprep.subr.bf16.mxu0 0
      %1656 = vmatpush1.bf16.msra.mxu0 0
      %1657 = vmatprep.subr.bf16.mxu0 0
      %1658 = vmatpush1.bf16.msra.mxu0 0
      %1659 = vmatprep.subr.bf16.mxu0 0
      %1660 = vmatpush1.bf16.msra.mxu0 0
      %1661 = vmatprep.mubr.bf16.mxu0 0
      %1662 = vmatmul.mubr.bf16.gmra.mrb[0].mxu0 %v400
      %v1663 = vpop.f32.mrb[0].mxu0
      %v1664 = vadd.f32 0.0, %v1663
      %v1665 = vpop.f32.mrb[0].mxu0
      %v1666 = vpop.f32.mrb[0].mxu0
      %v1667 = vadd.f32 0.0, %v1666
      %v1668 = vpop.f32.mrb[0].mxu0
      %1669 = vmatprep.mubr.bf16.mxu0 0
      %1670 = vmatmul.mubr.bf16.gmra.mrb[0].mxu0 %v403
      %v1671 = vpop.f32.mrb[0].mxu0
      %v1672 = vadd.f32 0.0, %v1671
      %v1673 = vpop.f32.mrb[0].mxu0
      %v1674 = vpop.f32.mrb[0].mxu0
      %v1675 = vadd.f32 0.0, %v1674
      %v1676 = vpop.f32.mrb[0].mxu0
      %1677 = vmatprep.mubr.bf16.mxu0 0
      %1678 = vmatmul.mubr.bf16.gmra.mrb[0].mxu0 %v406
      %v1679 = vpop.f32.mrb[0].mxu0
      %v1680 = vadd.f32 0.0, %v1679
      %v1681 = vpop.f32.mrb[0].mxu0
      %v1682 = vpop.f32.mrb[0].mxu0
      %v1683 = vadd.f32 0.0, %v1682
      %v1684 = vpop.f32.mrb[0].mxu0
      %1685 = vmatprep.mubr.bf16.mxu0 0
      %1686 = vmatmul.mubr.bf16.gmra.mrb[0].mxu0 %v409
      %v1687 = vpop.f32.mrb[0].mxu0
      %v1688 = vadd.f32 0.0, %v1687
      %v1689 = vpop.f32.mrb[0].mxu0
      %v1690 = vpop.f32.mrb[0].mxu0
      %v1691 = vadd.f32 0.0, %v1690
      %v1692 = vpop.f32.mrb[0].mxu0
      %1693 = vmatprep.mubr.bf16.mxu0 0
      %1694 = vmatmul.mubr.bf16.gmra.mrb[0].mxu0 %v412
      %v1695 = vpop.f32.mrb[0].mxu0
      %v1696 = vadd.f32 0.0, %v1695
      %v1697 = vpop.f32.mrb[0].mxu0
      %v1698 = vpop.f32.mrb[0].mxu0
      %v1699 = vadd.f32 0.0, %v1698
      %v1700 = vpop.f32.mrb[0].mxu0
      %1701 = vmatprep.mubr.bf16.mxu0 0
      %1702 = vmatmul.mubr.bf16.gmra.mrb[0].mxu0 %v415
      %v1703 = vpop.f32.mrb[0].mxu0
      %v1704 = vadd.f32 0.0, %v1703
      %v1705 = vpop.f32.mrb[0].mxu0
      %v1706 = vpop.f32.mrb[0].mxu0
      %v1707 = vadd.f32 0.0, %v1706
      %v1708 = vpop.f32.mrb[0].mxu0
      %1709 = vdwg.mxu0
      %v1710 = vld [vmem:[#allocation2] sm:$0xff]
      %v1711 = vld [vmem:[#allocation2 + $0x8] sm:$0xff]
      %v1712 = vld [vmem:[#allocation2 + $0x10] sm:$0xff]
      %v1713 = vld [vmem:[#allocation2 + $0x18] sm:$0xff]
      %v1714 = vld [vmem:[#allocation2 + $0x20] sm:$0xff]
      %v1715 = vld [vmem:[#allocation2 + $0x28] sm:$0xff]
      %v1716 = vld [vmem:[#allocation2 + $0x30] sm:$0xff]
      %v1717 = vld [vmem:[#allocation2 + $0x38] sm:$0xff]
      %v1718 = vld [vmem:[#allocation2 + $0x40] sm:$0xff]
      %v1719 = vld [vmem:[#allocation2 + $0x48] sm:$0xff]
      %v1720 = vld [vmem:[#allocation2 + $0x50] sm:$0xff]
      %v1721 = vld [vmem:[#allocation2 + $0x58] sm:$0xff]
      %v1728 = vrot.slane %v1667, 1
      %v1729 = vrot.slane %v1675, 1
      %v1730 = vrot.slane %v1683, 1
      %v1731 = vrot.slane %v1691, 1
      %v1732 = vrot.slane %v1699, 1
      %v1733 = vrot.slane %v1707, 1
      %vm1746 = vcmask 1046528
      %v1747 = vrot.slane %v1664, 1
      %v1748 = vsel %vm1746, %v1747, %v1728
      %v1749 = vrot.slane %v1672, 1
      %v1750 = vsel %vm1746, %v1749, %v1729
      %v1751 = vrot.slane %v1680, 1
      %v1752 = vsel %vm1746, %v1751, %v1730
      %v1753 = vrot.slane %v1688, 1
      %v1754 = vsel %vm1746, %v1753, %v1731
      %v1755 = vrot.slane %v1696, 1
      %v1756 = vsel %vm1746, %v1755, %v1732
      %v1757 = vrot.slane %v1704, 1
      %v1758 = vsel %vm1746, %v1757, %v1733
      %v1771 = vsel %vm1746, %v1728, %v1747
      %v1772 = vsel %vm1746, %v1729, %v1749
      %v1773 = vsel %vm1746, %v1730, %v1751
      %v1774 = vsel %vm1746, %v1731, %v1753
      %v1775 = vsel %vm1746, %v1732, %v1755
      %v1776 = vsel %vm1746, %v1733, %v1757
      %v1777 = vadd.f32 %v1710, %v1771
      %v1778 = vadd.f32 %v1711, %v1748
      %v1779 = vadd.f32 %v1712, %v1772
      %v1780 = vadd.f32 %v1713, %v1750
      %v1781 = vadd.f32 %v1714, %v1773
      %v1782 = vadd.f32 %v1715, %v1752
      %v1783 = vadd.f32 %v1716, %v1774
      %v1784 = vadd.f32 %v1717, %v1754
      %v1785 = vadd.f32 %v1718, %v1775
      %v1786 = vadd.f32 %v1719, %v1756
      %v1787 = vadd.f32 %v1720, %v1776
      %v1788 = vadd.f32 %v1721, %v1758
      %1789 = vst.msk [vmem:[#allocation2] sm:$0xff] %vm398, %v1777
      %1790 = vst.msk [vmem:[#allocation2 + $0x8] sm:$0xff] %vm398, %v1778
      %1791 = vst.msk [vmem:[#allocation2 + $0x10] sm:$0xff] %vm398, %v1779
      %1792 = vst.msk [vmem:[#allocation2 + $0x18] sm:$0xff] %vm398, %v1780
      %1793 = vst.msk [vmem:[#allocation2 + $0x20] sm:$0xff] %vm398, %v1781
      %1794 = vst.msk [vmem:[#allocation2 + $0x28] sm:$0xff] %vm398, %v1782
      %1795 = vst.msk [vmem:[#allocation2 + $0x30] sm:$0xff] %vm398, %v1783
      %1796 = vst.msk [vmem:[#allocation2 + $0x38] sm:$0xff] %vm398, %v1784
      %1797 = vst.msk [vmem:[#allocation2 + $0x40] sm:$0xff] %vm398, %v1785
      %1798 = vst.msk [vmem:[#allocation2 + $0x48] sm:$0xff] %vm398, %v1786
      %1799 = vst.msk [vmem:[#allocation2 + $0x50] sm:$0xff] %vm398, %v1787
      %1800 = vst.msk [vmem:[#allocation2 + $0x58] sm:$0xff] %vm398, %v1788
      %s1801 = scalar_lea.vmem %s297, 64
      %v1802 = vld [vmem:[%s1801] sm:$0xf]
      %v1803 = vld [vmem:[%s1801 + $0x4] sm:$0xf]
      %v1806 = vunpack.c.l.b16 %v1802
      %v1807 = vunpack.c.l.b16 %v1803
      %v1808 = vpack.c.b16 %v1807, %v1806
      %1810 = vmatprep.subr.bf16.mxu0 0
      %1811 = vmatpush1.bf16.msra.mxu0 %v1808
      %1812 = vmatprep.subr.bf16.mxu0 0
      %1813 = vmatpush1.bf16.msra.mxu0 0
      %1814 = vmatprep.subr.bf16.mxu0 0
      %1815 = vmatpush1.bf16.msra.mxu0 0
      %1816 = vmatprep.subr.bf16.mxu0 0
      %1817 = vmatpush1.bf16.msra.mxu0 0
      %1818 = vmatprep.subr.bf16.mxu0 0
      %1819 = vmatpush1.bf16.msra.mxu0 0
      %1820 = vmatprep.subr.bf16.mxu0 0
      %1821 = vmatpush1.bf16.msra.mxu0 0
      %1822 = vmatprep.subr.bf16.mxu0 0
      %1823 = vmatpush1.bf16.msra.mxu0 0
      %1824 = vmatprep.subr.bf16.mxu0 0
      %1825 = vmatpush1.bf16.msra.mxu0 0
      %1826 = vmatprep.subr.bf16.mxu0 0
      %1827 = vmatpush1.bf16.msra.mxu0 0
      %1828 = vmatprep.subr.bf16.mxu0 0
      %1829 = vmatpush1.bf16.msra.mxu0 0
      %1830 = vmatprep.subr.bf16.mxu0 0
      %1831 = vmatpush1.bf16.msra.mxu0 0
      %1832 = vmatprep.subr.bf16.mxu0 0
      %1833 = vmatpush1.bf16.msra.mxu0 0
      %1834 = vmatprep.subr.bf16.mxu0 0
      %1835 = vmatpush1.bf16.msra.mxu0 0
      %1836 = vmatprep.subr.bf16.mxu0 0
      %1837 = vmatpush1.bf16.msra.mxu0 0
      %1838 = vmatprep.subr.bf16.mxu0 0
      %1839 = vmatpush1.bf16.msra.mxu0 0
      %1840 = vmatprep.subr.bf16.mxu0 0
      %1841 = vmatpush1.bf16.msra.mxu0 0
      %1842 = vmatprep.mubr.bf16.mxu0 0
      %1843 = vmatmul.mubr.bf16.gmra.mrb[0].mxu0 %v400
      %v1844 = vpop.f32.mrb[0].mxu0
      %v1845 = vadd.f32 0.0, %v1844
      %v1846 = vpop.f32.mrb[0].mxu0
      %v1847 = vpop.f32.mrb[0].mxu0
      %v1848 = vadd.f32 0.0, %v1847
      %v1849 = vpop.f32.mrb[0].mxu0
      %1850 = vmatprep.mubr.bf16.mxu0 0
      %1851 = vmatmul.mubr.bf16.gmra.mrb[0].mxu0 %v403
      %v1852 = vpop.f32.mrb[0].mxu0
      %v1853 = vadd.f32 0.0, %v1852
      %v1854 = vpop.f32.mrb[0].mxu0
      %v1855 = vpop.f32.mrb[0].mxu0
      %v1856 = vadd.f32 0.0, %v1855
      %v1857 = vpop.f32.mrb[0].mxu0
      %1858 = vmatprep.mubr.bf16.mxu0 0
      %1859 = vmatmul.mubr.bf16.gmra.mrb[0].mxu0 %v406
      %v1860 = vpop.f32.mrb[0].mxu0
      %v1861 = vadd.f32 0.0, %v1860
      %v1862 = vpop.f32.mrb[0].mxu0
      %v1863 = vpop.f32.mrb[0].mxu0
      %v1864 = vadd.f32 0.0, %v1863
      %v1865 = vpop.f32.mrb[0].mxu0
      %1866 = vmatprep.mubr.bf16.mxu0 0
      %1867 = vmatmul.mubr.bf16.gmra.mrb[0].mxu0 %v409
      %v1868 = vpop.f32.mrb[0].mxu0
      %v1869 = vadd.f32 0.0, %v1868
      %v1870 = vpop.f32.mrb[0].mxu0
      %v1871 = vpop.f32.mrb[0].mxu0
      %v1872 = vadd.f32 0.0, %v1871
      %v1873 = vpop.f32.mrb[0].mxu0
      %1874 = vmatprep.mubr.bf16.mxu0 0
      %1875 = vmatmul.mubr.bf16.gmra.mrb[0].mxu0 %v412
      %v1876 = vpop.f32.mrb[0].mxu0
      %v1877 = vadd.f32 0.0, %v1876
      %v1878 = vpop.f32.mrb[0].mxu0
      %v1879 = vpop.f32.mrb[0].mxu0
      %v1880 = vadd.f32 0.0, %v1879
      %v1881 = vpop.f32.mrb[0].mxu0
      %1882 = vmatprep.mubr.bf16.mxu0 0
      %1883 = vmatmul.mubr.bf16.gmra.mrb[0].mxu0 %v415
      %v1884 = vpop.f32.mrb[0].mxu0
      %v1885 = vadd.f32 0.0, %v1884
      %v1886 = vpop.f32.mrb[0].mxu0
      %v1887 = vpop.f32.mrb[0].mxu0
      %v1888 = vadd.f32 0.0, %v1887
      %v1889 = vpop.f32.mrb[0].mxu0
      %1890 = vdwg.mxu0
      %v1891 = vld [vmem:[#allocation2] sm:$0xff]
      %v1892 = vld [vmem:[#allocation2 + $0x8] sm:$0xff]
      %v1893 = vld [vmem:[#allocation2 + $0x10] sm:$0xff]
      %v1894 = vld [vmem:[#allocation2 + $0x18] sm:$0xff]
      %v1895 = vld [vmem:[#allocation2 + $0x20] sm:$0xff]
      %v1896 = vld [vmem:[#allocation2 + $0x28] sm:$0xff]
      %v1897 = vld [vmem:[#allocation2 + $0x30] sm:$0xff]
      %v1898 = vld [vmem:[#allocation2 + $0x38] sm:$0xff]
      %v1899 = vld [vmem:[#allocation2 + $0x40] sm:$0xff]
      %v1900 = vld [vmem:[#allocation2 + $0x48] sm:$0xff]
      %v1901 = vld [vmem:[#allocation2 + $0x50] sm:$0xff]
      %v1902 = vld [vmem:[#allocation2 + $0x58] sm:$0xff]
      %v1903 = vadd.f32 %v1891, %v1848
      %v1904 = vadd.f32 %v1892, %v1845
      %v1905 = vadd.f32 %v1893, %v1856
      %v1906 = vadd.f32 %v1894, %v1853
      %v1907 = vadd.f32 %v1895, %v1864
      %v1908 = vadd.f32 %v1896, %v1861
      %v1909 = vadd.f32 %v1897, %v1872
      %v1910 = vadd.f32 %v1898, %v1869
      %v1911 = vadd.f32 %v1899, %v1880
      %v1912 = vadd.f32 %v1900, %v1877
      %v1913 = vadd.f32 %v1901, %v1888
      %v1914 = vadd.f32 %v1902, %v1885
      %1915 = vst.msk [vmem:[#allocation2] sm:$0xff] %vm398, %v1903
      %1916 = vst.msk [vmem:[#allocation2 + $0x8] sm:$0xff] %vm398, %v1904
      %1917 = vst.msk [vmem:[#allocation2 + $0x10] sm:$0xff] %vm398, %v1905
      %1918 = vst.msk [vmem:[#allocation2 + $0x18] sm:$0xff] %vm398, %v1906
      %1919 = vst.msk [vmem:[#allocation2 + $0x20] sm:$0xff] %vm398, %v1907
      %1920 = vst.msk [vmem:[#allocation2 + $0x28] sm:$0xff] %vm398, %v1908
      %1921 = vst.msk [vmem:[#allocation2 + $0x30] sm:$0xff] %vm398, %v1909
      %1922 = vst.msk [vmem:[#allocation2 + $0x38] sm:$0xff] %vm398, %v1910
      %1923 = vst.msk [vmem:[#allocation2 + $0x40] sm:$0xff] %vm398, %v1911
      %1924 = vst.msk [vmem:[#allocation2 + $0x48] sm:$0xff] %vm398, %v1912
      %1925 = vst.msk [vmem:[#allocation2 + $0x50] sm:$0xff] %vm398, %v1913
      %1926 = vst.msk [vmem:[#allocation2 + $0x58] sm:$0xff] %vm398, %v1914
      %s1927 = scalar_lea.vmem %s297, 72
      %v1928 = vld [vmem:[%s1927] sm:$0xf]
      %v1929 = vld [vmem:[%s1927 + $0x4] sm:$0xf]
      %v1932 = vunpack.c.l.b16 %v1928
      %v1933 = vunpack.c.l.b16 %v1929
      %v1934 = vpack.c.b16 %v1933, %v1932
      %1936 = vmatprep.subr.bf16.mxu0 0
      %1937 = vmatpush1.bf16.msra.mxu0 %v1934
      %1938 = vmatprep.subr.bf16.mxu0 0
      %1939 = vmatpush1.bf16.msra.mxu0 0
      %1940 = vmatprep.subr.bf16.mxu0 0
      %1941 = vmatpush1.bf16.msra.mxu0 0
      %1942 = vmatprep.subr.bf16.mxu0 0
      %1943 = vmatpush1.bf16.msra.mxu0 0
      %1944 = vmatprep.subr.bf16.mxu0 0
      %1945 = vmatpush1.bf16.msra.mxu0 0
      %1946 = vmatprep.subr.bf16.mxu0 0
      %1947 = vmatpush1.bf16.msra.mxu0 0
      %1948 = vmatprep.subr.bf16.mxu0 0
      %1949 = vmatpush1.bf16.msra.mxu0 0
      %1950 = vmatprep.subr.bf16.mxu0 0
      %1951 = vmatpush1.bf16.msra.mxu0 0
      %1952 = vmatprep.subr.bf16.mxu0 0
      %1953 = vmatpush1.bf16.msra.mxu0 0
      %1954 = vmatprep.subr.bf16.mxu0 0
      %1955 = vmatpush1.bf16.msra.mxu0 0
      %1956 = vmatprep.subr.bf16.mxu0 0
      %1957 = vmatpush1.bf16.msra.mxu0 0
      %1958 = vmatprep.subr.bf16.mxu0 0
      %1959 = vmatpush1.bf16.msra.mxu0 0
      %1960 = vmatprep.subr.bf16.mxu0 0
      %1961 = vmatpush1.bf16.msra.mxu0 0
      %1962 = vmatprep.subr.bf16.mxu0 0
      %1963 = vmatpush1.bf16.msra.mxu0 0
      %1964 = vmatprep.subr.bf16.mxu0 0
      %1965 = vmatpush1.bf16.msra.mxu0 0
      %1966 = vmatprep.subr.bf16.mxu0 0
      %1967 = vmatpush1.bf16.msra.mxu0 0
      %1968 = vmatprep.mubr.bf16.mxu0 0
      %1969 = vmatmul.mubr.bf16.gmra.mrb[0].mxu0 %v400
      %v1970 = vpop.f32.mrb[0].mxu0
      %v1971 = vadd.f32 0.0, %v1970
      %v1972 = vpop.f32.mrb[0].mxu0
      %v1973 = vpop.f32.mrb[0].mxu0
      %v1974 = vadd.f32 0.0, %v1973
      %v1975 = vpop.f32.mrb[0].mxu0
      %1976 = vmatprep.mubr.bf16.mxu0 0
      %1977 = vmatmul.mubr.bf16.gmra.mrb[0].mxu0 %v403
      %v1978 = vpop.f32.mrb[0].mxu0
      %v1979 = vadd.f32 0.0, %v1978
      %v1980 = vpop.f32.mrb[0].mxu0
      %v1981 = vpop.f32.mrb[0].mxu0
      %v1982 = vadd.f32 0.0, %v1981
      %v1983 = vpop.f32.mrb[0].mxu0
      %1984 = vmatprep.mubr.bf16.mxu0 0
      %1985 = vmatmul.mubr.bf16.gmra.mrb[0].mxu0 %v406
      %v1986 = vpop.f32.mrb[0].mxu0
      %v1987 = vadd.f32 0.0, %v1986
      %v1988 = vpop.f32.mrb[0].mxu0
      %v1989 = vpop.f32.mrb[0].mxu0
      %v1990 = vadd.f32 0.0, %v1989
      %v1991 = vpop.f32.mrb[0].mxu0
      %1992 = vmatprep.mubr.bf16.mxu0 0
      %1993 = vmatmul.mubr.bf16.gmra.mrb[0].mxu0 %v409
      %v1994 = vpop.f32.mrb[0].mxu0
      %v1995 = vadd.f32 0.0, %v1994
      %v1996 = vpop.f32.mrb[0].mxu0
      %v1997 = vpop.f32.mrb[0].mxu0
      %v1998 = vadd.f32 0.0, %v1997
      %v1999 = vpop.f32.mrb[0].mxu0
      %2000 = vmatprep.mubr.bf16.mxu0 0
      %2001 = vmatmul.mubr.bf16.gmra.mrb[0].mxu0 %v412
      %v2002 = vpop.f32.mrb[0].mxu0
      %v2003 = vadd.f32 0.0, %v2002
      %v2004 = vpop.f32.mrb[0].mxu0
      %v2005 = vpop.f32.mrb[0].mxu0
      %v2006 = vadd.f32 0.0, %v2005
      %v2007 = vpop.f32.mrb[0].mxu0
      %2008 = vmatprep.mubr.bf16.mxu0 0
      %2009 = vmatmul.mubr.bf16.gmra.mrb[0].mxu0 %v415
      %v2010 = vpop.f32.mrb[0].mxu0
      %v2011 = vadd.f32 0.0, %v2010
      %v2012 = vpop.f32.mrb[0].mxu0
      %v2013 = vpop.f32.mrb[0].mxu0
      %v2014 = vadd.f32 0.0, %v2013
      %v2015 = vpop.f32.mrb[0].mxu0
      %2016 = vdwg.mxu0
      %v2017 = vld [vmem:[#allocation2] sm:$0xff]
      %v2018 = vld [vmem:[#allocation2 + $0x8] sm:$0xff]
      %v2019 = vld [vmem:[#allocation2 + $0x10] sm:$0xff]
      %v2020 = vld [vmem:[#allocation2 + $0x18] sm:$0xff]
      %v2021 = vld [vmem:[#allocation2 + $0x20] sm:$0xff]
      %v2022 = vld [vmem:[#allocation2 + $0x28] sm:$0xff]
      %v2023 = vld [vmem:[#allocation2 + $0x30] sm:$0xff]
      %v2024 = vld [vmem:[#allocation2 + $0x38] sm:$0xff]
      %v2025 = vld [vmem:[#allocation2 + $0x40] sm:$0xff]
      %v2026 = vld [vmem:[#allocation2 + $0x48] sm:$0xff]
      %v2027 = vld [vmem:[#allocation2 + $0x50] sm:$0xff]
      %v2028 = vld [vmem:[#allocation2 + $0x58] sm:$0xff]
      %v2041 = vrot.slane %v1971, 7
      %v2042 = vrot.slane %v1974, 7
      %v2043 = vsel %vm660, %v2041, %v2042
      %v2044 = vrot.slane %v1979, 7
      %v2045 = vrot.slane %v1982, 7
      %v2046 = vsel %vm660, %v2044, %v2045
      %v2047 = vrot.slane %v1987, 7
      %v2048 = vrot.slane %v1990, 7
      %v2049 = vsel %vm660, %v2047, %v2048
      %v2050 = vrot.slane %v1995, 7
      %v2051 = vrot.slane %v1998, 7
      %v2052 = vsel %vm660, %v2050, %v2051
      %v2053 = vrot.slane %v2003, 7
      %v2054 = vrot.slane %v2006, 7
      %v2055 = vsel %vm660, %v2053, %v2054
      %v2056 = vrot.slane %v2011, 7
      %v2057 = vrot.slane %v2014, 7
      %v2058 = vsel %vm660, %v2056, %v2057
      %v2077 = vsel %vm660, %v2042, %v2041
      %v2078 = vsel %vm660, %v2045, %v2044
      %v2079 = vsel %vm660, %v2048, %v2047
      %v2080 = vsel %vm660, %v2051, %v2050
      %v2081 = vsel %vm660, %v2054, %v2053
      %v2082 = vsel %vm660, %v2057, %v2056
      %v2083 = vadd.f32 %v2017, %v2043
      %v2084 = vadd.f32 %v2018, %v2077
      %v2085 = vadd.f32 %v2019, %v2046
      %v2086 = vadd.f32 %v2020, %v2078
      %v2087 = vadd.f32 %v2021, %v2049
      %v2088 = vadd.f32 %v2022, %v2079
      %v2089 = vadd.f32 %v2023, %v2052
      %v2090 = vadd.f32 %v2024, %v2080
      %v2091 = vadd.f32 %v2025, %v2055
      %v2092 = vadd.f32 %v2026, %v2081
      %v2093 = vadd.f32 %v2027, %v2058
      %v2094 = vadd.f32 %v2028, %v2082
      %2095 = vst.msk [vmem:[#allocation2] sm:$0xff] %vm398, %v2083
      %2096 = vst.msk [vmem:[#allocation2 + $0x8] sm:$0xff] %vm398, %v2084
      %2097 = vst.msk [vmem:[#allocation2 + $0x10] sm:$0xff] %vm398, %v2085
      %2098 = vst.msk [vmem:[#allocation2 + $0x18] sm:$0xff] %vm398, %v2086
      %2099 = vst.msk [vmem:[#allocation2 + $0x20] sm:$0xff] %vm398, %v2087
      %2100 = vst.msk [vmem:[#allocation2 + $0x28] sm:$0xff] %vm398, %v2088
      %2101 = vst.msk [vmem:[#allocation2 + $0x30] sm:$0xff] %vm398, %v2089
      %2102 = vst.msk [vmem:[#allocation2 + $0x38] sm:$0xff] %vm398, %v2090
      %2103 = vst.msk [vmem:[#allocation2 + $0x40] sm:$0xff] %vm398, %v2091
      %2104 = vst.msk [vmem:[#allocation2 + $0x48] sm:$0xff] %vm398, %v2092
      %2105 = vst.msk [vmem:[#allocation2 + $0x50] sm:$0xff] %vm398, %v2093
      %2106 = vst.msk [vmem:[#allocation2 + $0x58] sm:$0xff] %vm398, %v2094
      %s2107 = scalar_lea.vmem %s297, 80
      %v2108 = vld [vmem:[%s2107] sm:$0xf]
      %v2109 = vld [vmem:[%s2107 + $0x4] sm:$0xf]
      %v2112 = vunpack.c.l.b16 %v2108
      %v2113 = vunpack.c.l.b16 %v2109
      %v2114 = vpack.c.b16 %v2113, %v2112
      %2116 = vmatprep.subr.bf16.mxu0 0
      %2117 = vmatpush1.bf16.msra.mxu0 %v2114
      %2118 = vmatprep.subr.bf16.mxu0 0
      %2119 = vmatpush1.bf16.msra.mxu0 0
      %2120 = vmatprep.subr.bf16.mxu0 0
      %2121 = vmatpush1.bf16.msra.mxu0 0
      %2122 = vmatprep.subr.bf16.mxu0 0
      %2123 = vmatpush1.bf16.msra.mxu0 0
      %2124 = vmatprep.subr.bf16.mxu0 0
      %2125 = vmatpush1.bf16.msra.mxu0 0
      %2126 = vmatprep.subr.bf16.mxu0 0
      %2127 = vmatpush1.bf16.msra.mxu0 0
      %2128 = vmatprep.subr.bf16.mxu0 0
      %2129 = vmatpush1.bf16.msra.mxu0 0
      %2130 = vmatprep.subr.bf16.mxu0 0
      %2131 = vmatpush1.bf16.msra.mxu0 0
      %2132 = vmatprep.subr.bf16.mxu0 0
      %2133 = vmatpush1.bf16.msra.mxu0 0
      %2134 = vmatprep.subr.bf16.mxu0 0
      %2135 = vmatpush1.bf16.msra.mxu0 0
      %2136 = vmatprep.subr.bf16.mxu0 0
      %2137 = vmatpush1.bf16.msra.mxu0 0
      %2138 = vmatprep.subr.bf16.mxu0 0
      %2139 = vmatpush1.bf16.msra.mxu0 0
      %2140 = vmatprep.subr.bf16.mxu0 0
      %2141 = vmatpush1.bf16.msra.mxu0 0
      %2142 = vmatprep.subr.bf16.mxu0 0
      %2143 = vmatpush1.bf16.msra.mxu0 0
      %2144 = vmatprep.subr.bf16.mxu0 0
      %2145 = vmatpush1.bf16.msra.mxu0 0
      %2146 = vmatprep.subr.bf16.mxu0 0
      %2147 = vmatpush1.bf16.msra.mxu0 0
      %2148 = vmatprep.mubr.bf16.mxu0 0
      %2149 = vmatmul.mubr.bf16.gmra.mrb[0].mxu0 %v400
      %v2150 = vpop.f32.mrb[0].mxu0
      %v2151 = vadd.f32 0.0, %v2150
      %v2152 = vpop.f32.mrb[0].mxu0
      %v2153 = vpop.f32.mrb[0].mxu0
      %v2154 = vadd.f32 0.0, %v2153
      %v2155 = vpop.f32.mrb[0].mxu0
      %2156 = vmatprep.mubr.bf16.mxu0 0
      %2157 = vmatmul.mubr.bf16.gmra.mrb[0].mxu0 %v403
      %v2158 = vpop.f32.mrb[0].mxu0
      %v2159 = vadd.f32 0.0, %v2158
      %v2160 = vpop.f32.mrb[0].mxu0
      %v2161 = vpop.f32.mrb[0].mxu0
      %v2162 = vadd.f32 0.0, %v2161
      %v2163 = vpop.f32.mrb[0].mxu0
      %2164 = vmatprep.mubr.bf16.mxu0 0
      %2165 = vmatmul.mubr.bf16.gmra.mrb[0].mxu0 %v406
      %v2166 = vpop.f32.mrb[0].mxu0
      %v2167 = vadd.f32 0.0, %v2166
      %v2168 = vpop.f32.mrb[0].mxu0
      %v2169 = vpop.f32.mrb[0].mxu0
      %v2170 = vadd.f32 0.0, %v2169
      %v2171 = vpop.f32.mrb[0].mxu0
      %2172 = vmatprep.mubr.bf16.mxu0 0
      %2173 = vmatmul.mubr.bf16.gmra.mrb[0].mxu0 %v409
      %v2174 = vpop.f32.mrb[0].mxu0
      %v2175 = vadd.f32 0.0, %v2174
      %v2176 = vpop.f32.mrb[0].mxu0
      %v2177 = vpop.f32.mrb[0].mxu0
      %v2178 = vadd.f32 0.0, %v2177
      %v2179 = vpop.f32.mrb[0].mxu0
      %2180 = vmatprep.mubr.bf16.mxu0 0
      %2181 = vmatmul.mubr.bf16.gmra.mrb[0].mxu0 %v412
      %v2182 = vpop.f32.mrb[0].mxu0
      %v2183 = vadd.f32 0.0, %v2182
      %v2184 = vpop.f32.mrb[0].mxu0
      %v2185 = vpop.f32.mrb[0].mxu0
      %v2186 = vadd.f32 0.0, %v2185
      %v2187 = vpop.f32.mrb[0].mxu0
      %2188 = vmatprep.mubr.bf16.mxu0 0
      %2189 = vmatmul.mubr.bf16.gmra.mrb[0].mxu0 %v415
      %v2190 = vpop.f32.mrb[0].mxu0
      %v2191 = vadd.f32 0.0, %v2190
      %v2192 = vpop.f32.mrb[0].mxu0
      %v2193 = vpop.f32.mrb[0].mxu0
      %v2194 = vadd.f32 0.0, %v2193
      %v2195 = vpop.f32.mrb[0].mxu0
      %2196 = vdwg.mxu0
      %v2197 = vld [vmem:[#allocation2] sm:$0xff]
      %v2198 = vld [vmem:[#allocation2 + $0x8] sm:$0xff]
      %v2199 = vld [vmem:[#allocation2 + $0x10] sm:$0xff]
      %v2200 = vld [vmem:[#allocation2 + $0x18] sm:$0xff]
      %v2201 = vld [vmem:[#allocation2 + $0x20] sm:$0xff]
      %v2202 = vld [vmem:[#allocation2 + $0x28] sm:$0xff]
      %v2203 = vld [vmem:[#allocation2 + $0x30] sm:$0xff]
      %v2204 = vld [vmem:[#allocation2 + $0x38] sm:$0xff]
      %v2205 = vld [vmem:[#allocation2 + $0x40] sm:$0xff]
      %v2206 = vld [vmem:[#allocation2 + $0x48] sm:$0xff]
      %v2207 = vld [vmem:[#allocation2 + $0x50] sm:$0xff]
      %v2208 = vld [vmem:[#allocation2 + $0x58] sm:$0xff]
      %v2221 = vrot.slane %v2151, 6
      %v2222 = vrot.slane %v2154, 6
      %v2223 = vsel %vm841, %v2221, %v2222
      %v2224 = vrot.slane %v2159, 6
      %v2225 = vrot.slane %v2162, 6
      %v2226 = vsel %vm841, %v2224, %v2225
      %v2227 = vrot.slane %v2167, 6
      %v2228 = vrot.slane %v2170, 6
      %v2229 = vsel %vm841, %v2227, %v2228
      %v2230 = vrot.slane %v2175, 6
      %v2231 = vrot.slane %v2178, 6
      %v2232 = vsel %vm841, %v2230, %v2231
      %v2233 = vrot.slane %v2183, 6
      %v2234 = vrot.slane %v2186, 6
      %v2235 = vsel %vm841, %v2233, %v2234
      %v2236 = vrot.slane %v2191, 6
      %v2237 = vrot.slane %v2194, 6
      %v2238 = vsel %vm841, %v2236, %v2237
      %v2257 = vsel %vm841, %v2222, %v2221
      %v2258 = vsel %vm841, %v2225, %v2224
      %v2259 = vsel %vm841, %v2228, %v2227
      %v2260 = vsel %vm841, %v2231, %v2230
      %v2261 = vsel %vm841, %v2234, %v2233
      %v2262 = vsel %vm841, %v2237, %v2236
      %v2263 = vadd.f32 %v2197, %v2223
      %v2264 = vadd.f32 %v2198, %v2257
      %v2265 = vadd.f32 %v2199, %v2226
      %v2266 = vadd.f32 %v2200, %v2258
      %v2267 = vadd.f32 %v2201, %v2229
      %v2268 = vadd.f32 %v2202, %v2259
      %v2269 = vadd.f32 %v2203, %v2232
      %v2270 = vadd.f32 %v2204, %v2260
      %v2271 = vadd.f32 %v2205, %v2235
      %v2272 = vadd.f32 %v2206, %v2261
      %v2273 = vadd.f32 %v2207, %v2238
      %v2274 = vadd.f32 %v2208, %v2262
      %2275 = vst.msk [vmem:[#allocation2] sm:$0xff] %vm398, %v2263
      %2276 = vst.msk [vmem:[#allocation2 + $0x8] sm:$0xff] %vm398, %v2264
      %2277 = vst.msk [vmem:[#allocation2 + $0x10] sm:$0xff] %vm398, %v2265
      %2278 = vst.msk [vmem:[#allocation2 + $0x18] sm:$0xff] %vm398, %v2266
      %2279 = vst.msk [vmem:[#allocation2 + $0x20] sm:$0xff] %vm398, %v2267
      %2280 = vst.msk [vmem:[#allocation2 + $0x28] sm:$0xff] %vm398, %v2268
      %2281 = vst.msk [vmem:[#allocation2 + $0x30] sm:$0xff] %vm398, %v2269
      %2282 = vst.msk [vmem:[#allocation2 + $0x38] sm:$0xff] %vm398, %v2270
      %2283 = vst.msk [vmem:[#allocation2 + $0x40] sm:$0xff] %vm398, %v2271
      %2284 = vst.msk [vmem:[#allocation2 + $0x48] sm:$0xff] %vm398, %v2272
      %2285 = vst.msk [vmem:[#allocation2 + $0x50] sm:$0xff] %vm398, %v2273
      %2286 = vst.msk [vmem:[#allocation2 + $0x58] sm:$0xff] %vm398, %v2274
      %s2287 = scalar_lea.vmem %s297, 88
      %v2288 = vld [vmem:[%s2287] sm:$0xf]
      %v2289 = vld [vmem:[%s2287 + $0x4] sm:$0xf]
      %v2292 = vunpack.c.l.b16 %v2288
      %v2293 = vunpack.c.l.b16 %v2289
      %v2294 = vpack.c.b16 %v2293, %v2292
      %2296 = vmatprep.subr.bf16.mxu0 0
      %2297 = vmatpush1.bf16.msra.mxu0 %v2294
      %2298 = vmatprep.subr.bf16.mxu0 0
      %2299 = vmatpush1.bf16.msra.mxu0 0
      %2300 = vmatprep.subr.bf16.mxu0 0
      %2301 = vmatpush1.bf16.msra.mxu0 0
      %2302 = vmatprep.subr.bf16.mxu0 0
      %2303 = vmatpush1.bf16.msra.mxu0 0
      %2304 = vmatprep.subr.bf16.mxu0 0
      %2305 = vmatpush1.bf16.msra.mxu0 0
      %2306 = vmatprep.subr.bf16.mxu0 0
      %2307 = vmatpush1.bf16.msra.mxu0 0
      %2308 = vmatprep.subr.bf16.mxu0 0
      %2309 = vmatpush1.bf16.msra.mxu0 0
      %2310 = vmatprep.subr.bf16.mxu0 0
      %2311 = vmatpush1.bf16.msra.mxu0 0
      %2312 = vmatprep.subr.bf16.mxu0 0
      %2313 = vmatpush1.bf16.msra.mxu0 0
      %2314 = vmatprep.subr.bf16.mxu0 0
      %2315 = vmatpush1.bf16.msra.mxu0 0
      %2316 = vmatprep.subr.bf16.mxu0 0
      %2317 = vmatpush1.bf16.msra.mxu0 0
      %2318 = vmatprep.subr.bf16.mxu0 0
      %2319 = vmatpush1.bf16.msra.mxu0 0
      %2320 = vmatprep.subr.bf16.mxu0 0
      %2321 = vmatpush1.bf16.msra.mxu0 0
      %2322 = vmatprep.subr.bf16.mxu0 0
      %2323 = vmatpush1.bf16.msra.mxu0 0
      %2324 = vmatprep.subr.bf16.mxu0 0
      %2325 = vmatpush1.bf16.msra.mxu0 0
      %2326 = vmatprep.subr.bf16.mxu0 0
      %2327 = vmatpush1.bf16.msra.mxu0 0
      %2328 = vmatprep.mubr.bf16.mxu0 0
      %2329 = vmatmul.mubr.bf16.gmra.mrb[0].mxu0 %v400
      %v2330 = vpop.f32.mrb[0].mxu0
      %v2331 = vadd.f32 0.0, %v2330
      %v2332 = vpop.f32.mrb[0].mxu0
      %v2333 = vpop.f32.mrb[0].mxu0
      %v2334 = vadd.f32 0.0, %v2333
      %v2335 = vpop.f32.mrb[0].mxu0
      %2336 = vmatprep.mubr.bf16.mxu0 0
      %2337 = vmatmul.mubr.bf16.gmra.mrb[0].mxu0 %v403
      %v2338 = vpop.f32.mrb[0].mxu0
      %v2339 = vadd.f32 0.0, %v2338
      %v2340 = vpop.f32.mrb[0].mxu0
      %v2341 = vpop.f32.mrb[0].mxu0
      %v2342 = vadd.f32 0.0, %v2341
      %v2343 = vpop.f32.mrb[0].mxu0
      %2344 = vmatprep.mubr.bf16.mxu0 0
      %2345 = vmatmul.mubr.bf16.gmra.mrb[0].mxu0 %v406
      %v2346 = vpop.f32.mrb[0].mxu0
      %v2347 = vadd.f32 0.0, %v2346
      %v2348 = vpop.f32.mrb[0].mxu0
      %v2349 = vpop.f32.mrb[0].mxu0
      %v2350 = vadd.f32 0.0, %v2349
      %v2351 = vpop.f32.mrb[0].mxu0
      %2352 = vmatprep.mubr.bf16.mxu0 0
      %2353 = vmatmul.mubr.bf16.gmra.mrb[0].mxu0 %v409
      %v2354 = vpop.f32.mrb[0].mxu0
      %v2355 = vadd.f32 0.0, %v2354
      %v2356 = vpop.f32.mrb[0].mxu0
      %v2357 = vpop.f32.mrb[0].mxu0
      %v2358 = vadd.f32 0.0, %v2357
      %v2359 = vpop.f32.mrb[0].mxu0
      %2360 = vmatprep.mubr.bf16.mxu0 0
      %2361 = vmatmul.mubr.bf16.gmra.mrb[0].mxu0 %v412
      %v2362 = vpop.f32.mrb[0].mxu0
      %v2363 = vadd.f32 0.0, %v2362
      %v2364 = vpop.f32.mrb[0].mxu0
      %v2365 = vpop.f32.mrb[0].mxu0
      %v2366 = vadd.f32 0.0, %v2365
      %v2367 = vpop.f32.mrb[0].mxu0
      %2368 = vmatprep.mubr.bf16.mxu0 0
      %2369 = vmatmul.mubr.bf16.gmra.mrb[0].mxu0 %v415
      %v2370 = vpop.f32.mrb[0].mxu0
      %v2371 = vadd.f32 0.0, %v2370
      %v2372 = vpop.f32.mrb[0].mxu0
      %v2373 = vpop.f32.mrb[0].mxu0
      %v2374 = vadd.f32 0.0, %v2373
      %v2375 = vpop.f32.mrb[0].mxu0
      %2376 = vdwg.mxu0
      %v2377 = vld [vmem:[#allocation2] sm:$0xff]
      %v2378 = vld [vmem:[#allocation2 + $0x8] sm:$0xff]
      %v2379 = vld [vmem:[#allocation2 + $0x10] sm:$0xff]
      %v2380 = vld [vmem:[#allocation2 + $0x18] sm:$0xff]
      %v2381 = vld [vmem:[#allocation2 + $0x20] sm:$0xff]
      %v2382 = vld [vmem:[#allocation2 + $0x28] sm:$0xff]
      %v2383 = vld [vmem:[#allocation2 + $0x30] sm:$0xff]
      %v2384 = vld [vmem:[#allocation2 + $0x38] sm:$0xff]
      %v2385 = vld [vmem:[#allocation2 + $0x40] sm:$0xff]
      %v2386 = vld [vmem:[#allocation2 + $0x48] sm:$0xff]
      %v2387 = vld [vmem:[#allocation2 + $0x50] sm:$0xff]
      %v2388 = vld [vmem:[#allocation2 + $0x58] sm:$0xff]
      %v2401 = vrot.slane %v2331, 5
      %v2402 = vrot.slane %v2334, 5
      %v2403 = vsel %vm1022, %v2401, %v2402
      %v2404 = vrot.slane %v2339, 5
      %v2405 = vrot.slane %v2342, 5
      %v2406 = vsel %vm1022, %v2404, %v2405
      %v2407 = vrot.slane %v2347, 5
      %v2408 = vrot.slane %v2350, 5
      %v2409 = vsel %vm1022, %v2407, %v2408
      %v2410 = vrot.slane %v2355, 5
      %v2411 = vrot.slane %v2358, 5
      %v2412 = vsel %vm1022, %v2410, %v2411
      %v2413 = vrot.slane %v2363, 5
      %v2414 = vrot.slane %v2366, 5
      %v2415 = vsel %vm1022, %v2413, %v2414
      %v2416 = vrot.slane %v2371, 5
      %v2417 = vrot.slane %v2374, 5
      %v2418 = vsel %vm1022, %v2416, %v2417
      %v2437 = vsel %vm1022, %v2402, %v2401
      %v2438 = vsel %vm1022, %v2405, %v2404
      %v2439 = vsel %vm1022, %v2408, %v2407
      %v2440 = vsel %vm1022, %v2411, %v2410
      %v2441 = vsel %vm1022, %v2414, %v2413
      %v2442 = vsel %vm1022, %v2417, %v2416
      %v2443 = vadd.f32 %v2377, %v2403
      %v2444 = vadd.f32 %v2378, %v2437
      %v2445 = vadd.f32 %v2379, %v2406
      %v2446 = vadd.f32 %v2380, %v2438
      %v2447 = vadd.f32 %v2381, %v2409
      %v2448 = vadd.f32 %v2382, %v2439
      %v2449 = vadd.f32 %v2383, %v2412
      %v2450 = vadd.f32 %v2384, %v2440
      %v2451 = vadd.f32 %v2385, %v2415
      %v2452 = vadd.f32 %v2386, %v2441
      %v2453 = vadd.f32 %v2387, %v2418
      %v2454 = vadd.f32 %v2388, %v2442
      %2455 = vst.msk [vmem:[#allocation2] sm:$0xff] %vm398, %v2443
      %2456 = vst.msk [vmem:[#allocation2 + $0x8] sm:$0xff] %vm398, %v2444
      %2457 = vst.msk [vmem:[#allocation2 + $0x10] sm:$0xff] %vm398, %v2445
      %2458 = vst.msk [vmem:[#allocation2 + $0x18] sm:$0xff] %vm398, %v2446
      %2459 = vst.msk [vmem:[#allocation2 + $0x20] sm:$0xff] %vm398, %v2447
      %2460 = vst.msk [vmem:[#allocation2 + $0x28] sm:$0xff] %vm398, %v2448
      %2461 = vst.msk [vmem:[#allocation2 + $0x30] sm:$0xff] %vm398, %v2449
      %2462 = vst.msk [vmem:[#allocation2 + $0x38] sm:$0xff] %vm398, %v2450
      %2463 = vst.msk [vmem:[#allocation2 + $0x40] sm:$0xff] %vm398, %v2451
      %2464 = vst.msk [vmem:[#allocation2 + $0x48] sm:$0xff] %vm398, %v2452
      %2465 = vst.msk [vmem:[#allocation2 + $0x50] sm:$0xff] %vm398, %v2453
      %2466 = vst.msk [vmem:[#allocation2 + $0x58] sm:$0xff] %vm398, %v2454
      %s2467 = scalar_lea.vmem %s297, 96
      %v2468 = vld [vmem:[%s2467] sm:$0xf]
      %v2469 = vld [vmem:[%s2467 + $0x4] sm:$0xf]
      %v2472 = vunpack.c.l.b16 %v2468
      %v2473 = vunpack.c.l.b16 %v2469
      %v2474 = vpack.c.b16 %v2473, %v2472
      %2476 = vmatprep.subr.bf16.mxu0 0
      %2477 = vmatpush1.bf16.msra.mxu0 %v2474
      %2478 = vmatprep.subr.bf16.mxu0 0
      %2479 = vmatpush1.bf16.msra.mxu0 0
      %2480 = vmatprep.subr.bf16.mxu0 0
      %2481 = vmatpush1.bf16.msra.mxu0 0
      %2482 = vmatprep.subr.bf16.mxu0 0
      %2483 = vmatpush1.bf16.msra.mxu0 0
      %2484 = vmatprep.subr.bf16.mxu0 0
      %2485 = vmatpush1.bf16.msra.mxu0 0
      %2486 = vmatprep.subr.bf16.mxu0 0
      %2487 = vmatpush1.bf16.msra.mxu0 0
      %2488 = vmatprep.subr.bf16.mxu0 0
      %2489 = vmatpush1.bf16.msra.mxu0 0
      %2490 = vmatprep.subr.bf16.mxu0 0
      %2491 = vmatpush1.bf16.msra.mxu0 0
      %2492 = vmatprep.subr.bf16.mxu0 0
      %2493 = vmatpush1.bf16.msra.mxu0 0
      %2494 = vmatprep.subr.bf16.mxu0 0
      %2495 = vmatpush1.bf16.msra.mxu0 0
      %2496 = vmatprep.subr.bf16.mxu0 0
      %2497 = vmatpush1.bf16.msra.mxu0 0
      %2498 = vmatprep.subr.bf16.mxu0 0
      %2499 = vmatpush1.bf16.msra.mxu0 0
      %2500 = vmatprep.subr.bf16.mxu0 0
      %2501 = vmatpush1.bf16.msra.mxu0 0
      %2502 = vmatprep.subr.bf16.mxu0 0
      %2503 = vmatpush1.bf16.msra.mxu0 0
      %2504 = vmatprep.subr.bf16.mxu0 0
      %2505 = vmatpush1.bf16.msra.mxu0 0
      %2506 = vmatprep.subr.bf16.mxu0 0
      %2507 = vmatpush1.bf16.msra.mxu0 0
      %2508 = vmatprep.mubr.bf16.mxu0 0
      %2509 = vmatmul.mubr.bf16.gmra.mrb[0].mxu0 %v400
      %v2510 = vpop.f32.mrb[0].mxu0
      %v2511 = vadd.f32 0.0, %v2510
      %v2512 = vpop.f32.mrb[0].mxu0
      %v2513 = vpop.f32.mrb[0].mxu0
      %v2514 = vadd.f32 0.0, %v2513
      %v2515 = vpop.f32.mrb[0].mxu0
      %2516 = vmatprep.mubr.bf16.mxu0 0
      %2517 = vmatmul.mubr.bf16.gmra.mrb[0].mxu0 %v403
      %v2518 = vpop.f32.mrb[0].mxu0
      %v2519 = vadd.f32 0.0, %v2518
      %v2520 = vpop.f32.mrb[0].mxu0
      %v2521 = vpop.f32.mrb[0].mxu0
      %v2522 = vadd.f32 0.0, %v2521
      %v2523 = vpop.f32.mrb[0].mxu0
      %2524 = vmatprep.mubr.bf16.mxu0 0
      %2525 = vmatmul.mubr.bf16.gmra.mrb[0].mxu0 %v406
      %v2526 = vpop.f32.mrb[0].mxu0
      %v2527 = vadd.f32 0.0, %v2526
      %v2528 = vpop.f32.mrb[0].mxu0
      %v2529 = vpop.f32.mrb[0].mxu0
      %v2530 = vadd.f32 0.0, %v2529
      %v2531 = vpop.f32.mrb[0].mxu0
      %2532 = vmatprep.mubr.bf16.mxu0 0
      %2533 = vmatmul.mubr.bf16.gmra.mrb[0].mxu0 %v409
      %v2534 = vpop.f32.mrb[0].mxu0
      %v2535 = vadd.f32 0.0, %v2534
      %v2536 = vpop.f32.mrb[0].mxu0
      %v2537 = vpop.f32.mrb[0].mxu0
      %v2538 = vadd.f32 0.0, %v2537
      %v2539 = vpop.f32.mrb[0].mxu0
      %2540 = vmatprep.mubr.bf16.mxu0 0
      %2541 = vmatmul.mubr.bf16.gmra.mrb[0].mxu0 %v412
      %v2542 = vpop.f32.mrb[0].mxu0
      %v2543 = vadd.f32 0.0, %v2542
      %v2544 = vpop.f32.mrb[0].mxu0
      %v2545 = vpop.f32.mrb[0].mxu0
      %v2546 = vadd.f32 0.0, %v2545
      %v2547 = vpop.f32.mrb[0].mxu0
      %2548 = vmatprep.mubr.bf16.mxu0 0
      %2549 = vmatmul.mubr.bf16.gmra.mrb[0].mxu0 %v415
      %v2550 = vpop.f32.mrb[0].mxu0
      %v2551 = vadd.f32 0.0, %v2550
      %v2552 = vpop.f32.mrb[0].mxu0
      %v2553 = vpop.f32.mrb[0].mxu0
      %v2554 = vadd.f32 0.0, %v2553
      %v2555 = vpop.f32.mrb[0].mxu0
      %2556 = vdwg.mxu0
      %v2557 = vld [vmem:[#allocation2] sm:$0xff]
      %v2558 = vld [vmem:[#allocation2 + $0x8] sm:$0xff]
      %v2559 = vld [vmem:[#allocation2 + $0x10] sm:$0xff]
      %v2560 = vld [vmem:[#allocation2 + $0x18] sm:$0xff]
      %v2561 = vld [vmem:[#allocation2 + $0x20] sm:$0xff]
      %v2562 = vld [vmem:[#allocation2 + $0x28] sm:$0xff]
      %v2563 = vld [vmem:[#allocation2 + $0x30] sm:$0xff]
      %v2564 = vld [vmem:[#allocation2 + $0x38] sm:$0xff]
      %v2565 = vld [vmem:[#allocation2 + $0x40] sm:$0xff]
      %v2566 = vld [vmem:[#allocation2 + $0x48] sm:$0xff]
      %v2567 = vld [vmem:[#allocation2 + $0x50] sm:$0xff]
      %v2568 = vld [vmem:[#allocation2 + $0x58] sm:$0xff]
      %v2581 = vrot.slane %v2511, 4
      %v2582 = vrot.slane %v2514, 4
      %v2583 = vsel %vm1203, %v2581, %v2582
      %v2584 = vrot.slane %v2519, 4
      %v2585 = vrot.slane %v2522, 4
      %v2586 = vsel %vm1203, %v2584, %v2585
      %v2587 = vrot.slane %v2527, 4
      %v2588 = vrot.slane %v2530, 4
      %v2589 = vsel %vm1203, %v2587, %v2588
      %v2590 = vrot.slane %v2535, 4
      %v2591 = vrot.slane %v2538, 4
      %v2592 = vsel %vm1203, %v2590, %v2591
      %v2593 = vrot.slane %v2543, 4
      %v2594 = vrot.slane %v2546, 4
      %v2595 = vsel %vm1203, %v2593, %v2594
      %v2596 = vrot.slane %v2551, 4
      %v2597 = vrot.slane %v2554, 4
      %v2598 = vsel %vm1203, %v2596, %v2597
      %v2617 = vsel %vm1203, %v2582, %v2581
      %v2618 = vsel %vm1203, %v2585, %v2584
      %v2619 = vsel %vm1203, %v2588, %v2587
      %v2620 = vsel %vm1203, %v2591, %v2590
      %v2621 = vsel %vm1203, %v2594, %v2593
      %v2622 = vsel %vm1203, %v2597, %v2596
      %v2623 = vadd.f32 %v2557, %v2583
      %v2624 = vadd.f32 %v2558, %v2617
      %v2625 = vadd.f32 %v2559, %v2586
      %v2626 = vadd.f32 %v2560, %v2618
      %v2627 = vadd.f32 %v2561, %v2589
      %v2628 = vadd.f32 %v2562, %v2619
      %v2629 = vadd.f32 %v2563, %v2592
      %v2630 = vadd.f32 %v2564, %v2620
      %v2631 = vadd.f32 %v2565, %v2595
      %v2632 = vadd.f32 %v2566, %v2621
      %v2633 = vadd.f32 %v2567, %v2598
      %v2634 = vadd.f32 %v2568, %v2622
      %2635 = vst.msk [vmem:[#allocation2] sm:$0xff] %vm398, %v2623
      %2636 = vst.msk [vmem:[#allocation2 + $0x8] sm:$0xff] %vm398, %v2624
      %2637 = vst.msk [vmem:[#allocation2 + $0x10] sm:$0xff] %vm398, %v2625
      %2638 = vst.msk [vmem:[#allocation2 + $0x18] sm:$0xff] %vm398, %v2626
      %2639 = vst.msk [vmem:[#allocation2 + $0x20] sm:$0xff] %vm398, %v2627
      %2640 = vst.msk [vmem:[#allocation2 + $0x28] sm:$0xff] %vm398, %v2628
      %2641 = vst.msk [vmem:[#allocation2 + $0x30] sm:$0xff] %vm398, %v2629
      %2642 = vst.msk [vmem:[#allocation2 + $0x38] sm:$0xff] %vm398, %v2630
      %2643 = vst.msk [vmem:[#allocation2 + $0x40] sm:$0xff] %vm398, %v2631
      %2644 = vst.msk [vmem:[#allocation2 + $0x48] sm:$0xff] %vm398, %v2632
      %2645 = vst.msk [vmem:[#allocation2 + $0x50] sm:$0xff] %vm398, %v2633
      %2646 = vst.msk [vmem:[#allocation2 + $0x58] sm:$0xff] %vm398, %v2634
      %s2647 = scalar_lea.vmem %s297, 104
      %v2648 = vld [vmem:[%s2647] sm:$0xf]
      %v2649 = vld [vmem:[%s2647 + $0x4] sm:$0xf]
      %v2652 = vunpack.c.l.b16 %v2648
      %v2653 = vunpack.c.l.b16 %v2649
      %v2654 = vpack.c.b16 %v2653, %v2652
      %2656 = vmatprep.subr.bf16.mxu0 0
      %2657 = vmatpush1.bf16.msra.mxu0 %v2654
      %2658 = vmatprep.subr.bf16.mxu0 0
      %2659 = vmatpush1.bf16.msra.mxu0 0
      %2660 = vmatprep.subr.bf16.mxu0 0
      %2661 = vmatpush1.bf16.msra.mxu0 0
      %2662 = vmatprep.subr.bf16.mxu0 0
      %2663 = vmatpush1.bf16.msra.mxu0 0
      %2664 = vmatprep.subr.bf16.mxu0 0
      %2665 = vmatpush1.bf16.msra.mxu0 0
      %2666 = vmatprep.subr.bf16.mxu0 0
      %2667 = vmatpush1.bf16.msra.mxu0 0
      %2668 = vmatprep.subr.bf16.mxu0 0
      %2669 = vmatpush1.bf16.msra.mxu0 0
      %2670 = vmatprep.subr.bf16.mxu0 0
      %2671 = vmatpush1.bf16.msra.mxu0 0
      %2672 = vmatprep.subr.bf16.mxu0 0
      %2673 = vmatpush1.bf16.msra.mxu0 0
      %2674 = vmatprep.subr.bf16.mxu0 0
      %2675 = vmatpush1.bf16.msra.mxu0 0
      %2676 = vmatprep.subr.bf16.mxu0 0
      %2677 = vmatpush1.bf16.msra.mxu0 0
      %2678 = vmatprep.subr.bf16.mxu0 0
      %2679 = vmatpush1.bf16.msra.mxu0 0
      %2680 = vmatprep.subr.bf16.mxu0 0
      %2681 = vmatpush1.bf16.msra.mxu0 0
      %2682 = vmatprep.subr.bf16.mxu0 0
      %2683 = vmatpush1.bf16.msra.mxu0 0
      %2684 = vmatprep.subr.bf16.mxu0 0
      %2685 = vmatpush1.bf16.msra.mxu0 0
      %2686 = vmatprep.subr.bf16.mxu0 0
      %2687 = vmatpush1.bf16.msra.mxu0 0
      %2688 = vmatprep.mubr.bf16.mxu0 0
      %2689 = vmatmul.mubr.bf16.gmra.mrb[0].mxu0 %v400
      %v2690 = vpop.f32.mrb[0].mxu0
      %v2691 = vadd.f32 0.0, %v2690
      %v2692 = vpop.f32.mrb[0].mxu0
      %v2693 = vpop.f32.mrb[0].mxu0
      %v2694 = vadd.f32 0.0, %v2693
      %v2695 = vpop.f32.mrb[0].mxu0
      %2696 = vmatprep.mubr.bf16.mxu0 0
      %2697 = vmatmul.mubr.bf16.gmra.mrb[0].mxu0 %v403
      %v2698 = vpop.f32.mrb[0].mxu0
      %v2699 = vadd.f32 0.0, %v2698
      %v2700 = vpop.f32.mrb[0].mxu0
      %v2701 = vpop.f32.mrb[0].mxu0
      %v2702 = vadd.f32 0.0, %v2701
      %v2703 = vpop.f32.mrb[0].mxu0
      %2704 = vmatprep.mubr.bf16.mxu0 0
      %2705 = vmatmul.mubr.bf16.gmra.mrb[0].mxu0 %v406
      %v2706 = vpop.f32.mrb[0].mxu0
      %v2707 = vadd.f32 0.0, %v2706
      %v2708 = vpop.f32.mrb[0].mxu0
      %v2709 = vpop.f32.mrb[0].mxu0
      %v2710 = vadd.f32 0.0, %v2709
      %v2711 = vpop.f32.mrb[0].mxu0
      %2712 = vmatprep.mubr.bf16.mxu0 0
      %2713 = vmatmul.mubr.bf16.gmra.mrb[0].mxu0 %v409
      %v2714 = vpop.f32.mrb[0].mxu0
      %v2715 = vadd.f32 0.0, %v2714
      %v2716 = vpop.f32.mrb[0].mxu0
      %v2717 = vpop.f32.mrb[0].mxu0
      %v2718 = vadd.f32 0.0, %v2717
      %v2719 = vpop.f32.mrb[0].mxu0
      %2720 = vmatprep.mubr.bf16.mxu0 0
      %2721 = vmatmul.mubr.bf16.gmra.mrb[0].mxu0 %v412
      %v2722 = vpop.f32.mrb[0].mxu0
      %v2723 = vadd.f32 0.0, %v2722
      %v2724 = vpop.f32.mrb[0].mxu0
      %v2725 = vpop.f32.mrb[0].mxu0
      %v2726 = vadd.f32 0.0, %v2725
      %v2727 = vpop.f32.mrb[0].mxu0
      %2728 = vmatprep.mubr.bf16.mxu0 0
      %2729 = vmatmul.mubr.bf16.gmra.mrb[0].mxu0 %v415
      %v2730 = vpop.f32.mrb[0].mxu0
      %v2731 = vadd.f32 0.0, %v2730
      %v2732 = vpop.f32.mrb[0].mxu0
      %v2733 = vpop.f32.mrb[0].mxu0
      %v2734 = vadd.f32 0.0, %v2733
      %v2735 = vpop.f32.mrb[0].mxu0
      %2736 = vdwg.mxu0
      %v2737 = vld [vmem:[#allocation2] sm:$0xff]
      %v2738 = vld [vmem:[#allocation2 + $0x8] sm:$0xff]
      %v2739 = vld [vmem:[#allocation2 + $0x10] sm:$0xff]
      %v2740 = vld [vmem:[#allocation2 + $0x18] sm:$0xff]
      %v2741 = vld [vmem:[#allocation2 + $0x20] sm:$0xff]
      %v2742 = vld [vmem:[#allocation2 + $0x28] sm:$0xff]
      %v2743 = vld [vmem:[#allocation2 + $0x30] sm:$0xff]
      %v2744 = vld [vmem:[#allocation2 + $0x38] sm:$0xff]
      %v2745 = vld [vmem:[#allocation2 + $0x40] sm:$0xff]
      %v2746 = vld [vmem:[#allocation2 + $0x48] sm:$0xff]
      %v2747 = vld [vmem:[#allocation2 + $0x50] sm:$0xff]
      %v2748 = vld [vmem:[#allocation2 + $0x58] sm:$0xff]
      %v2761 = vrot.slane %v2691, 3
      %v2762 = vrot.slane %v2694, 3
      %v2763 = vsel %vm1384, %v2761, %v2762
      %v2764 = vrot.slane %v2699, 3
      %v2765 = vrot.slane %v2702, 3
      %v2766 = vsel %vm1384, %v2764, %v2765
      %v2767 = vrot.slane %v2707, 3
      %v2768 = vrot.slane %v2710, 3
      %v2769 = vsel %vm1384, %v2767, %v2768
      %v2770 = vrot.slane %v2715, 3
      %v2771 = vrot.slane %v2718, 3
      %v2772 = vsel %vm1384, %v2770, %v2771
      %v2773 = vrot.slane %v2723, 3
      %v2774 = vrot.slane %v2726, 3
      %v2775 = vsel %vm1384, %v2773, %v2774
      %v2776 = vrot.slane %v2731, 3
      %v2777 = vrot.slane %v2734, 3
      %v2778 = vsel %vm1384, %v2776, %v2777
      %v2797 = vsel %vm1384, %v2762, %v2761
      %v2798 = vsel %vm1384, %v2765, %v2764
      %v2799 = vsel %vm1384, %v2768, %v2767
      %v2800 = vsel %vm1384, %v2771, %v2770
      %v2801 = vsel %vm1384, %v2774, %v2773
      %v2802 = vsel %vm1384, %v2777, %v2776
      %v2803 = vadd.f32 %v2737, %v2763
      %v2804 = vadd.f32 %v2738, %v2797
      %v2805 = vadd.f32 %v2739, %v2766
      %v2806 = vadd.f32 %v2740, %v2798
      %v2807 = vadd.f32 %v2741, %v2769
      %v2808 = vadd.f32 %v2742, %v2799
      %v2809 = vadd.f32 %v2743, %v2772
      %v2810 = vadd.f32 %v2744, %v2800
      %v2811 = vadd.f32 %v2745, %v2775
      %v2812 = vadd.f32 %v2746, %v2801
      %v2813 = vadd.f32 %v2747, %v2778
      %v2814 = vadd.f32 %v2748, %v2802
      %2815 = vst.msk [vmem:[#allocation2] sm:$0xff] %vm398, %v2803
      %2816 = vst.msk [vmem:[#allocation2 + $0x8] sm:$0xff] %vm398, %v2804
      %2817 = vst.msk [vmem:[#allocation2 + $0x10] sm:$0xff] %vm398, %v2805
      %2818 = vst.msk [vmem:[#allocation2 + $0x18] sm:$0xff] %vm398, %v2806
      %2819 = vst.msk [vmem:[#allocation2 + $0x20] sm:$0xff] %vm398, %v2807
      %2820 = vst.msk [vmem:[#allocation2 + $0x28] sm:$0xff] %vm398, %v2808
      %2821 = vst.msk [vmem:[#allocation2 + $0x30] sm:$0xff] %vm398, %v2809
      %2822 = vst.msk [vmem:[#allocation2 + $0x38] sm:$0xff] %vm398, %v2810
      %2823 = vst.msk [vmem:[#allocation2 + $0x40] sm:$0xff] %vm398, %v2811
      %2824 = vst.msk [vmem:[#allocation2 + $0x48] sm:$0xff] %vm398, %v2812
      %2825 = vst.msk [vmem:[#allocation2 + $0x50] sm:$0xff] %vm398, %v2813
      %2826 = vst.msk [vmem:[#allocation2 + $0x58] sm:$0xff] %vm398, %v2814
      %s2827 = scalar_lea.vmem %s297, 112
      %v2828 = vld [vmem:[%s2827] sm:$0xf]
      %v2829 = vld [vmem:[%s2827 + $0x4] sm:$0xf]
      %v2832 = vunpack.c.l.b16 %v2828
      %v2833 = vunpack.c.l.b16 %v2829
      %v2834 = vpack.c.b16 %v2833, %v2832
      %2836 = vmatprep.subr.bf16.mxu0 0
      %2837 = vmatpush1.bf16.msra.mxu0 %v2834
      %2838 = vmatprep.subr.bf16.mxu0 0
      %2839 = vmatpush1.bf16.msra.mxu0 0
      %2840 = vmatprep.subr.bf16.mxu0 0
      %2841 = vmatpush1.bf16.msra.mxu0 0
      %2842 = vmatprep.subr.bf16.mxu0 0
      %2843 = vmatpush1.bf16.msra.mxu0 0
      %2844 = vmatprep.subr.bf16.mxu0 0
      %2845 = vmatpush1.bf16.msra.mxu0 0
      %2846 = vmatprep.subr.bf16.mxu0 0
      %2847 = vmatpush1.bf16.msra.mxu0 0
      %2848 = vmatprep.subr.bf16.mxu0 0
      %2849 = vmatpush1.bf16.msra.mxu0 0
      %2850 = vmatprep.subr.bf16.mxu0 0
      %2851 = vmatpush1.bf16.msra.mxu0 0
      %2852 = vmatprep.subr.bf16.mxu0 0
      %2853 = vmatpush1.bf16.msra.mxu0 0
      %2854 = vmatprep.subr.bf16.mxu0 0
      %2855 = vmatpush1.bf16.msra.mxu0 0
      %2856 = vmatprep.subr.bf16.mxu0 0
      %2857 = vmatpush1.bf16.msra.mxu0 0
      %2858 = vmatprep.subr.bf16.mxu0 0
      %2859 = vmatpush1.bf16.msra.mxu0 0
      %2860 = vmatprep.subr.bf16.mxu0 0
      %2861 = vmatpush1.bf16.msra.mxu0 0
      %2862 = vmatprep.subr.bf16.mxu0 0
      %2863 = vmatpush1.bf16.msra.mxu0 0
      %2864 = vmatprep.subr.bf16.mxu0 0
      %2865 = vmatpush1.bf16.msra.mxu0 0
      %2866 = vmatprep.subr.bf16.mxu0 0
      %2867 = vmatpush1.bf16.msra.mxu0 0
      %2868 = vmatprep.mubr.bf16.mxu0 0
      %2869 = vmatmul.mubr.bf16.gmra.mrb[0].mxu0 %v400
      %v2870 = vpop.f32.mrb[0].mxu0
      %v2871 = vadd.f32 0.0, %v2870
      %v2872 = vpop.f32.mrb[0].mxu0
      %v2873 = vpop.f32.mrb[0].mxu0
      %v2874 = vadd.f32 0.0, %v2873
      %v2875 = vpop.f32.mrb[0].mxu0
      %2876 = vmatprep.mubr.bf16.mxu0 0
      %2877 = vmatmul.mubr.bf16.gmra.mrb[0].mxu0 %v403
      %v2878 = vpop.f32.mrb[0].mxu0
      %v2879 = vadd.f32 0.0, %v2878
      %v2880 = vpop.f32.mrb[0].mxu0
      %v2881 = vpop.f32.mrb[0].mxu0
      %v2882 = vadd.f32 0.0, %v2881
      %v2883 = vpop.f32.mrb[0].mxu0
      %2884 = vmatprep.mubr.bf16.mxu0 0
      %2885 = vmatmul.mubr.bf16.gmra.mrb[0].mxu0 %v406
      %v2886 = vpop.f32.mrb[0].mxu0
      %v2887 = vadd.f32 0.0, %v2886
      %v2888 = vpop.f32.mrb[0].mxu0
      %v2889 = vpop.f32.mrb[0].mxu0
      %v2890 = vadd.f32 0.0, %v2889
      %v2891 = vpop.f32.mrb[0].mxu0
      %2892 = vmatprep.mubr.bf16.mxu0 0
      %2893 = vmatmul.mubr.bf16.gmra.mrb[0].mxu0 %v409
      %v2894 = vpop.f32.mrb[0].mxu0
      %v2895 = vadd.f32 0.0, %v2894
      %v2896 = vpop.f32.mrb[0].mxu0
      %v2897 = vpop.f32.mrb[0].mxu0
      %v2898 = vadd.f32 0.0, %v2897
      %v2899 = vpop.f32.mrb[0].mxu0
      %2900 = vmatprep.mubr.bf16.mxu0 0
      %2901 = vmatmul.mubr.bf16.gmra.mrb[0].mxu0 %v412
      %v2902 = vpop.f32.mrb[0].mxu0
      %v2903 = vadd.f32 0.0, %v2902
      %v2904 = vpop.f32.mrb[0].mxu0
      %v2905 = vpop.f32.mrb[0].mxu0
      %v2906 = vadd.f32 0.0, %v2905
      %v2907 = vpop.f32.mrb[0].mxu0
      %2908 = vmatprep.mubr.bf16.mxu0 0
      %2909 = vmatmul.mubr.bf16.gmra.mrb[0].mxu0 %v415
      %v2910 = vpop.f32.mrb[0].mxu0
      %v2911 = vadd.f32 0.0, %v2910
      %v2912 = vpop.f32.mrb[0].mxu0
      %v2913 = vpop.f32.mrb[0].mxu0
      %v2914 = vadd.f32 0.0, %v2913
      %v2915 = vpop.f32.mrb[0].mxu0
      %2916 = vdwg.mxu0
      %v2917 = vld [vmem:[#allocation2] sm:$0xff]
      %v2918 = vld [vmem:[#allocation2 + $0x8] sm:$0xff]
      %v2919 = vld [vmem:[#allocation2 + $0x10] sm:$0xff]
      %v2920 = vld [vmem:[#allocation2 + $0x18] sm:$0xff]
      %v2921 = vld [vmem:[#allocation2 + $0x20] sm:$0xff]
      %v2922 = vld [vmem:[#allocation2 + $0x28] sm:$0xff]
      %v2923 = vld [vmem:[#allocation2 + $0x30] sm:$0xff]
      %v2924 = vld [vmem:[#allocation2 + $0x38] sm:$0xff]
      %v2925 = vld [vmem:[#allocation2 + $0x40] sm:$0xff]
      %v2926 = vld [vmem:[#allocation2 + $0x48] sm:$0xff]
      %v2927 = vld [vmem:[#allocation2 + $0x50] sm:$0xff]
      %v2928 = vld [vmem:[#allocation2 + $0x58] sm:$0xff]
      %v2941 = vrot.slane %v2871, 2
      %v2942 = vrot.slane %v2874, 2
      %v2943 = vsel %vm1565, %v2941, %v2942
      %v2944 = vrot.slane %v2879, 2
      %v2945 = vrot.slane %v2882, 2
      %v2946 = vsel %vm1565, %v2944, %v2945
      %v2947 = vrot.slane %v2887, 2
      %v2948 = vrot.slane %v2890, 2
      %v2949 = vsel %vm1565, %v2947, %v2948
      %v2950 = vrot.slane %v2895, 2
      %v2951 = vrot.slane %v2898, 2
      %v2952 = vsel %vm1565, %v2950, %v2951
      %v2953 = vrot.slane %v2903, 2
      %v2954 = vrot.slane %v2906, 2
      %v2955 = vsel %vm1565, %v2953, %v2954
      %v2956 = vrot.slane %v2911, 2
      %v2957 = vrot.slane %v2914, 2
      %v2958 = vsel %vm1565, %v2956, %v2957
      %v2977 = vsel %vm1565, %v2942, %v2941
      %v2978 = vsel %vm1565, %v2945, %v2944
      %v2979 = vsel %vm1565, %v2948, %v2947
      %v2980 = vsel %vm1565, %v2951, %v2950
      %v2981 = vsel %vm1565, %v2954, %v2953
      %v2982 = vsel %vm1565, %v2957, %v2956
      %v2983 = vadd.f32 %v2917, %v2943
      %v2984 = vadd.f32 %v2918, %v2977
      %v2985 = vadd.f32 %v2919, %v2946
      %v2986 = vadd.f32 %v2920, %v2978
      %v2987 = vadd.f32 %v2921, %v2949
      %v2988 = vadd.f32 %v2922, %v2979
      %v2989 = vadd.f32 %v2923, %v2952
      %v2990 = vadd.f32 %v2924, %v2980
      %v2991 = vadd.f32 %v2925, %v2955
      %v2992 = vadd.f32 %v2926, %v2981
      %v2993 = vadd.f32 %v2927, %v2958
      %v2994 = vadd.f32 %v2928, %v2982
      %2995 = vst.msk [vmem:[#allocation2] sm:$0xff] %vm398, %v2983
      %2996 = vst.msk [vmem:[#allocation2 + $0x8] sm:$0xff] %vm398, %v2984
      %2997 = vst.msk [vmem:[#allocation2 + $0x10] sm:$0xff] %vm398, %v2985
      %2998 = vst.msk [vmem:[#allocation2 + $0x18] sm:$0xff] %vm398, %v2986
      %2999 = vst.msk [vmem:[#allocation2 + $0x20] sm:$0xff] %vm398, %v2987
      %3000 = vst.msk [vmem:[#allocation2 + $0x28] sm:$0xff] %vm398, %v2988
      %3001 = vst.msk [vmem:[#allocation2 + $0x30] sm:$0xff] %vm398, %v2989
      %3002 = vst.msk [vmem:[#allocation2 + $0x38] sm:$0xff] %vm398, %v2990
      %3003 = vst.msk [vmem:[#allocation2 + $0x40] sm:$0xff] %vm398, %v2991
      %3004 = vst.msk [vmem:[#allocation2 + $0x48] sm:$0xff] %vm398, %v2992
      %3005 = vst.msk [vmem:[#allocation2 + $0x50] sm:$0xff] %vm398, %v2993
      %3006 = vst.msk [vmem:[#allocation2 + $0x58] sm:$0xff] %vm398, %v2994
      %s3007 = scalar_lea.vmem %s297, 120
      %v3008 = vld [vmem:[%s3007] sm:$0xf]
      %v3009 = vld [vmem:[%s3007 + $0x4] sm:$0xf]
      %v3012 = vunpack.c.l.b16 %v3008
      %v3013 = vunpack.c.l.b16 %v3009
      %v3014 = vpack.c.b16 %v3013, %v3012
      %3016 = vmatprep.subr.bf16.mxu0 0
      %3017 = vmatpush1.bf16.msra.mxu0 %v3014
      %3018 = vmatprep.subr.bf16.mxu0 0
      %3019 = vmatpush1.bf16.msra.mxu0 0
      %3020 = vmatprep.subr.bf16.mxu0 0
      %3021 = vmatpush1.bf16.msra.mxu0 0
      %3022 = vmatprep.subr.bf16.mxu0 0
      %3023 = vmatpush1.bf16.msra.mxu0 0
      %3024 = vmatprep.subr.bf16.mxu0 0
      %3025 = vmatpush1.bf16.msra.mxu0 0
      %3026 = vmatprep.subr.bf16.mxu0 0
      %3027 = vmatpush1.bf16.msra.mxu0 0
      %3028 = vmatprep.subr.bf16.mxu0 0
      %3029 = vmatpush1.bf16.msra.mxu0 0
      %3030 = vmatprep.subr.bf16.mxu0 0
      %3031 = vmatpush1.bf16.msra.mxu0 0
      %3032 = vmatprep.subr.bf16.mxu0 0
      %3033 = vmatpush1.bf16.msra.mxu0 0
      %3034 = vmatprep.subr.bf16.mxu0 0
      %3035 = vmatpush1.bf16.msra.mxu0 0
      %3036 = vmatprep.subr.bf16.mxu0 0
      %3037 = vmatpush1.bf16.msra.mxu0 0
      %3038 = vmatprep.subr.bf16.mxu0 0
      %3039 = vmatpush1.bf16.msra.mxu0 0
      %3040 = vmatprep.subr.bf16.mxu0 0
      %3041 = vmatpush1.bf16.msra.mxu0 0
      %3042 = vmatprep.subr.bf16.mxu0 0
      %3043 = vmatpush1.bf16.msra.mxu0 0
      %3044 = vmatprep.subr.bf16.mxu0 0
      %3045 = vmatpush1.bf16.msra.mxu0 0
      %3046 = vmatprep.subr.bf16.mxu0 0
      %3047 = vmatpush1.bf16.msra.mxu0 0
      %3048 = vmatprep.mubr.bf16.mxu0 0
      %3049 = vmatmul.mubr.bf16.gmra.mrb[0].mxu0 %v400
      %v3050 = vpop.f32.mrb[0].mxu0
      %v3051 = vadd.f32 0.0, %v3050
      %v3052 = vpop.f32.mrb[0].mxu0
      %v3053 = vpop.f32.mrb[0].mxu0
      %v3054 = vadd.f32 0.0, %v3053
      %v3055 = vpop.f32.mrb[0].mxu0
      %3056 = vmatprep.mubr.bf16.mxu0 0
      %3057 = vmatmul.mubr.bf16.gmra.mrb[0].mxu0 %v403
      %v3058 = vpop.f32.mrb[0].mxu0
      %v3059 = vadd.f32 0.0, %v3058
      %v3060 = vpop.f32.mrb[0].mxu0
      %v3061 = vpop.f32.mrb[0].mxu0
      %v3062 = vadd.f32 0.0, %v3061
      %v3063 = vpop.f32.mrb[0].mxu0
      %3064 = vmatprep.mubr.bf16.mxu0 0
      %3065 = vmatmul.mubr.bf16.gmra.mrb[0].mxu0 %v406
      %v3066 = vpop.f32.mrb[0].mxu0
      %v3067 = vadd.f32 0.0, %v3066
      %v3068 = vpop.f32.mrb[0].mxu0
      %v3069 = vpop.f32.mrb[0].mxu0
      %v3070 = vadd.f32 0.0, %v3069
      %v3071 = vpop.f32.mrb[0].mxu0
      %3072 = vmatprep.mubr.bf16.mxu0 0
      %3073 = vmatmul.mubr.bf16.gmra.mrb[0].mxu0 %v409
      %v3074 = vpop.f32.mrb[0].mxu0
      %v3075 = vadd.f32 0.0, %v3074
      %v3076 = vpop.f32.mrb[0].mxu0
      %v3077 = vpop.f32.mrb[0].mxu0
      %v3078 = vadd.f32 0.0, %v3077
      %v3079 = vpop.f32.mrb[0].mxu0
      %3080 = vmatprep.mubr.bf16.mxu0 0
      %3081 = vmatmul.mubr.bf16.gmra.mrb[0].mxu0 %v412
      %v3082 = vpop.f32.mrb[0].mxu0
      %v3083 = vadd.f32 0.0, %v3082
      %v3084 = vpop.f32.mrb[0].mxu0
      %v3085 = vpop.f32.mrb[0].mxu0
      %v3086 = vadd.f32 0.0, %v3085
      %v3087 = vpop.f32.mrb[0].mxu0
      %3088 = vmatprep.mubr.bf16.mxu0 0
      %3089 = vmatmul.mubr.bf16.gmra.mrb[0].mxu0 %v415
      %v3090 = vpop.f32.mrb[0].mxu0
      %v3091 = vadd.f32 0.0, %v3090
      %v3092 = vpop.f32.mrb[0].mxu0
      %v3093 = vpop.f32.mrb[0].mxu0
      %v3094 = vadd.f32 0.0, %v3093
      %v3095 = vpop.f32.mrb[0].mxu0
      %3096 = vdwg.mxu0
      %v3097 = vld [vmem:[#allocation2] sm:$0xff]
      %v3098 = vld [vmem:[#allocation2 + $0x8] sm:$0xff]
      %v3099 = vld [vmem:[#allocation2 + $0x10] sm:$0xff]
      %v3100 = vld [vmem:[#allocation2 + $0x18] sm:$0xff]
      %v3101 = vld [vmem:[#allocation2 + $0x20] sm:$0xff]
      %v3102 = vld [vmem:[#allocation2 + $0x28] sm:$0xff]
      %v3103 = vld [vmem:[#allocation2 + $0x30] sm:$0xff]
      %v3104 = vld [vmem:[#allocation2 + $0x38] sm:$0xff]
      %v3105 = vld [vmem:[#allocation2 + $0x40] sm:$0xff]
      %v3106 = vld [vmem:[#allocation2 + $0x48] sm:$0xff]
      %v3107 = vld [vmem:[#allocation2 + $0x50] sm:$0xff]
      %v3108 = vld [vmem:[#allocation2 + $0x58] sm:$0xff]
      %v3121 = vrot.slane %v3051, 1
      %v3122 = vrot.slane %v3054, 1
      %v3123 = vsel %vm1746, %v3121, %v3122
      %v3124 = vrot.slane %v3059, 1
      %v3125 = vrot.slane %v3062, 1
      %v3126 = vsel %vm1746, %v3124, %v3125
      %v3127 = vrot.slane %v3067, 1
      %v3128 = vrot.slane %v3070, 1
      %v3129 = vsel %vm1746, %v3127, %v3128
      %v3130 = vrot.slane %v3075, 1
      %v3131 = vrot.slane %v3078, 1
      %v3132 = vsel %vm1746, %v3130, %v3131
      %v3133 = vrot.slane %v3083, 1
      %v3134 = vrot.slane %v3086, 1
      %v3135 = vsel %vm1746, %v3133, %v3134
      %v3136 = vrot.slane %v3091, 1
      %v3137 = vrot.slane %v3094, 1
      %v3138 = vsel %vm1746, %v3136, %v3137
      %v3157 = vsel %vm1746, %v3122, %v3121
      %v3158 = vsel %vm1746, %v3125, %v3124
      %v3159 = vsel %vm1746, %v3128, %v3127
      %v3160 = vsel %vm1746, %v3131, %v3130
      %v3161 = vsel %vm1746, %v3134, %v3133
      %v3162 = vsel %vm1746, %v3137, %v3136
      %v3163 = vadd.f32 %v3097, %v3123
      %v3164 = vadd.f32 %v3098, %v3157
      %v3165 = vadd.f32 %v3099, %v3126
      %v3166 = vadd.f32 %v3100, %v3158
      %v3167 = vadd.f32 %v3101, %v3129
      %v3168 = vadd.f32 %v3102, %v3159
      %v3169 = vadd.f32 %v3103, %v3132
      %v3170 = vadd.f32 %v3104, %v3160
      %v3171 = vadd.f32 %v3105, %v3135
      %v3172 = vadd.f32 %v3106, %v3161
      %v3173 = vadd.f32 %v3107, %v3138
      %v3174 = vadd.f32 %v3108, %v3162
      %3175 = vst.msk [vmem:[#allocation2] sm:$0xff] %vm398, %v3163
      %3176 = vst.msk [vmem:[#allocation2 + $0x8] sm:$0xff] %vm398, %v3164
      %3177 = vst.msk [vmem:[#allocation2 + $0x10] sm:$0xff] %vm398, %v3165
      %3178 = vst.msk [vmem:[#allocation2 + $0x18] sm:$0xff] %vm398, %v3166
      %3179 = vst.msk [vmem:[#allocation2 + $0x20] sm:$0xff] %vm398, %v3167
      %3180 = vst.msk [vmem:[#allocation2 + $0x28] sm:$0xff] %vm398, %v3168
      %3181 = vst.msk [vmem:[#allocation2 + $0x30] sm:$0xff] %vm398, %v3169
      %3182 = vst.msk [vmem:[#allocation2 + $0x38] sm:$0xff] %vm398, %v3170
      %3183 = vst.msk [vmem:[#allocation2 + $0x40] sm:$0xff] %vm398, %v3171
      %3184 = vst.msk [vmem:[#allocation2 + $0x48] sm:$0xff] %vm398, %v3172
      %3185 = vst.msk [vmem:[#allocation2 + $0x50] sm:$0xff] %vm398, %v3173
      %3186 = vst.msk [vmem:[#allocation2 + $0x58] sm:$0xff] %vm398, %v3174
      // Predicated region
      $region37: #{convolve3dfft_forward.1} parent=27 // pred_check
        %p3187 = pneg %p318
      $region38: #{convolve3dfft_forward.1} parent=27 // pred_check_branch
        %3189 = sbr.rel (%p3187) target = $region40
      $region39: #{convolve3dfft_forward.1} parent=27 // pred_region
        %v3190 = vld [vmem:[#allocation2] sm:$0xff]
        %v3191 = vld [vmem:[#allocation2 + $0x8] sm:$0xff]
        %v3192 = vld [vmem:[#allocation2 + $0x10] sm:$0xff]
        %v3193 = vld [vmem:[#allocation2 + $0x18] sm:$0xff]
        %s3194 = scalar_lea.vmem [#allocation2], 32
        %v3195 = vld [vmem:[%s3194] sm:$0xff]
        %v3196 = vld [vmem:[%s3194 + $0x8] sm:$0xff]
        %v3197 = vld [vmem:[%s3194 + $0x10] sm:$0xff]
        %v3198 = vld [vmem:[%s3194 + $0x18] sm:$0xff]
        %s3199 = scalar_lea.vmem [#allocation2], 64
        %v3200 = vld [vmem:[%s3199] sm:$0xff]
        %v3201 = vld [vmem:[%s3199 + $0x8] sm:$0xff]
        %v3202 = vld [vmem:[%s3199 + $0x10] sm:$0xff]
        %v3203 = vld [vmem:[%s3199 + $0x18] sm:$0xff]
        %v3204 = vadd.f32 %v3200, 0.001
        %v3205 = vadd.f32 %v3201, 0.001
        %v3206 = vadd.f32 %v3202, 0.001
        %v3207 = vadd.f32 %v3203, 0.001
        %v3208 = vrcp.pop %v3204
        %v3209 = vrcp.pop %v3205
        %v3210 = vrcp.pop %v3206
        %v3211 = vrcp.pop %v3207
        %v3212 = vmul.f32 %v3204, %v3208
        %v3213 = vmul.f32 %v3205, %v3209
        %v3214 = vmul.f32 %v3206, %v3210
        %v3215 = vmul.f32 %v3207, %v3211
        %v3216 = vsub.f32 2.0, %v3212
        %v3217 = vsub.f32 2.0, %v3213
        %v3218 = vsub.f32 2.0, %v3214
        %v3219 = vsub.f32 2.0, %v3215
        %v3220 = vmul.f32 %v3208, %v3216
        %v3221 = vmul.f32 %v3209, %v3217
        %v3222 = vmul.f32 %v3210, %v3218
        %v3223 = vmul.f32 %v3211, %v3219
        %v3224 = vld [vmem:[%s315] sm:$0xff]
        %v3225 = vld [vmem:[%s315 + $0x8] sm:$0xff]
        %v3226 = vld [vmem:[%s315 + $0x10] sm:$0xff]
        %v3227 = vld [vmem:[%s315 + $0x18] sm:$0xff]
        %v3228 = vld [vmem:[#allocation3] sm:$0xff]
        %v3229 = vld [vmem:[#allocation3 + $0x8] sm:$0xff]
        %v3230 = vld [vmem:[#allocation3 + $0x10] sm:$0xff]
        %v3231 = vld [vmem:[#allocation3 + $0x18] sm:$0xff]
        %v3232 = vmul.f32 %v3190, %v3220
        %v3233 = vmul.f32 %v3191, %v3221
        %v3234 = vmul.f32 %v3192, %v3222
        %v3235 = vmul.f32 %v3193, %v3223
        %v3236 = vmul.f32 %v3228, %v3232
        %v3237 = vmul.f32 %v3229, %v3233
        %v3238 = vmul.f32 %v3230, %v3234
        %v3239 = vmul.f32 %v3231, %v3235
        %v3240 = vadd.f32 %v3224, %v3236
        %v3241 = vadd.f32 %v3225, %v3237
        %v3242 = vadd.f32 %v3226, %v3238
        %v3243 = vadd.f32 %v3227, %v3239
        %3244 = vst.msk [vmem:[%s315] sm:$0xff] %vm398, %v3240
        %3245 = vst.msk [vmem:[%s315 + $0x8] sm:$0xff] %vm398, %v3241
        %3246 = vst.msk [vmem:[%s315 + $0x10] sm:$0xff] %vm398, %v3242
        %3247 = vst.msk [vmem:[%s315 + $0x18] sm:$0xff] %vm398, %v3243
        %v3248 = vld [vmem:[#allocation3] sm:$0xff]
        %v3249 = vld [vmem:[#allocation3 + $0x8] sm:$0xff]
        %v3250 = vld [vmem:[#allocation3 + $0x10] sm:$0xff]
        %v3251 = vld [vmem:[#allocation3 + $0x18] sm:$0xff]
        %v3252 = vmul.f32 %v3195, %v3220
        %v3253 = vmul.f32 %v3196, %v3221
        %v3254 = vmul.f32 %v3197, %v3222
        %v3255 = vmul.f32 %v3198, %v3223
        %v3256 = vsub.f32 1.0, %v3252
        %v3257 = vsub.f32 1.0, %v3253
        %v3258 = vsub.f32 1.0, %v3254
        %v3259 = vsub.f32 1.0, %v3255
        %v3260 = vmul.f32 %v3248, %v3256
        %v3261 = vmul.f32 %v3249, %v3257
        %v3262 = vmul.f32 %v3250, %v3258
        %v3263 = vmul.f32 %v3251, %v3259
        %3264 = vst.msk [vmem:[#allocation3] sm:$0xff] %vm398, %v3260
        %3265 = vst.msk [vmem:[#allocation3 + $0x8] sm:$0xff] %vm398, %v3261
        %3266 = vst.msk [vmem:[#allocation3 + $0x10] sm:$0xff] %vm398, %v3262
        %3267 = vst.msk [vmem:[#allocation3 + $0x18] sm:$0xff] %vm398, %v3263
      $region40: #{convolve3dfft_forward.1} parent=27 // pred_fallthru
        _
      %p3268 = scmp.lt.s32.totalorder %s18, 2
      %s3269 = scalar_select %p3268, %s18, 2
      %s3270 = smul.addr %s3269, 4
      %s3271 = smul.addr %s3270, 8
      %s3272 = scalar_lea.vmem %s2, %s3271
      // Predicated region
      $region41: #{convolve3dfft_forward.1} parent=27 // pred_check
        %p3273 = pneg %p134
      $region42: #{convolve3dfft_forward.1} parent=27 // pred_check_branch
        %3275 = sbr.rel (%p3273) target = $region44
      $region43: #{convolve3dfft_forward.1} parent=27 // pred_region
        _
      $region44: #{convolve3dfft_forward.1} parent=27 // pred_fallthru
        _
    $region28: #{convolve3dfft_forward.1} parent=5 // pred_fallthru
      _
    %p3276 = scmp.le.s32.totalorder 2, %s8
    // Predicated region
    $region45: #{convolve3dfft_forward.1} parent=5 // pred_check
      %p3277 = pneg %p3276
    $region46: #{convolve3dfft_forward.1} parent=5 // pred_check_branch
      %3279 = sbr.rel (%p3277) target = $region48
    $region47: #{convolve3dfft_forward.1} parent=5 // pred_region
      %s3280 = ssub.s32 %s8, 2
      // Predicated region
      $region49: #{convolve3dfft_forward.1} parent=47 // pred_check
        %p3281 = pneg %p140
      $region50: #{convolve3dfft_forward.1} parent=47 // pred_check_branch
        %3283 = sbr.rel (%p3281) target = $region52
      $region51: #{convolve3dfft_forward.1} parent=47 // pred_region
        %p3284 = scmp.lt.s32.totalorder %s21, 2
        %s3285 = scalar_select %p3284, %s21, 2
        %s3286 = smul.addr %s3285, 4
        %s3287 = smul.addr %s3286, 8
        %s3288 = scalar_lea.vmem %s2, %s3287
      $region52: #{convolve3dfft_forward.1} parent=47 // pred_fallthru
        _
    $region48: #{convolve3dfft_forward.1} parent=5 // pred_fallthru
      _
  $region6: #{convolve3dfft_forward.1} parent=0 // loop_footer
    %s12 = sadd.s32 1, %s8
  $region7: #{convolve3dfft_forward.1} parent=0 // loop_footer_branch
    %7 = sbr.rel target = $region3
  $region8: #{convolve3dfft_forward.1} parent=0 // loop_exit
    _

</llo_original>
